<compile_context>
chip_gen: v5e
topology: v5e:2x2
jax: 0.10.0
libtpu: 0.0.40
codegen_flags: <defaults>
</compile_context>

<pallas_src>
import functools

import jax
import jax.numpy as jnp
from jax import lax
from jax.experimental import pallas as pl
from jax.experimental.pallas import tpu as pltpu


def _round_up(n, m):
    return ((n + m - 1) // m) * m


def _ojr_kernel(x_ref,                               # (T, BT, D) time-major input block (param_dtype)
                xlast_ref,                           # (BT, D) f32 last frame (exact passthrough)
                wih_ref, whh_ref, bih_ref, bhh_ref,  # GRU params (weights stored transposed)
                wa1_ref, ba1_ref, wa2_ref, ba2_ref,  # attention MLP (wa2 stored as a (1, H//2) row)
                wp1_ref, bp1_ref, wp2_ref, bp2_ref,  # predictor MLP
                mask_ref,                            # (1, D) occlusion mask
                out_ref,                             # (BT, D) f32
                gru_out,                             # VMEM scratch (T, BT, H) param_dtype
                *, nsplit):
    T, BT, D = x_ref.shape
    H = gru_out.shape[2]
    HBT = BT // nsplit

    wih = wih_ref[...]                               # (D, 3H)  param_dtype
    whh = whh_ref[...]                               # (H, 3H)  param_dtype
    bih = bih_ref[...].astype(jnp.float32)           # (1, 3H)
    bhh = bhh_ref[...].astype(jnp.float32)           # (1, 3H)

    # ---- Hoisted input-to-hidden projection: one well-shaped matmul for all timesteps. ----
    x2d = x_ref[...].reshape(T * BT, D)
    gi_all = jnp.dot(x2d, wih, preferred_element_type=jnp.float32) + bih     # (T*BT, 3H) f32

    # Hoist the (1,3H)->(HBT,3H) hidden-bias broadcast out of the unrolled recurrence.
    bhh_rows = jnp.broadcast_to(bhh, (HBT, 3 * H))

    # ---- GRU recurrence, fully unrolled over T; `nsplit` independent batch sub-tiles are
    # interleaved inside each step so the scheduler can hide the matmul->EUP->VPU latency. ----
    hs = [jnp.zeros((HBT, H), jnp.float32) for _ in range(nsplit)]
    for t in range(T):
        for s in range(nsplit):
            base = t * BT + s * HBT
            gi = gi_all[base:base + HBT, :]                                   # static slice, (HBT, 3H)
            gh = jnp.dot(hs[s].astype(whh.dtype), whh,
                         preferred_element_type=jnp.float32) + bhh_rows       # (HBT, 3H) f32
            # PyTorch GRU gate ordering: r, z, n
            r = jax.nn.sigmoid(gi[:, 0:H] + gh[:, 0:H])
            z = jax.nn.sigmoid(gi[:, H:2 * H] + gh[:, H:2 * H])
            n = jnp.tanh(gi[:, 2 * H:3 * H] + r * gh[:, 2 * H:3 * H])
            hs[s] = (1.0 - z) * n + z * hs[s]
            gru_out[t, s * HBT:(s + 1) * HBT, :] = hs[s].astype(gru_out.dtype)

    # ---- Attention: flat lane-dense matmul; scalar logit via lane reduce (no (...,1) matmul). ----
    g2d = gru_out[...].reshape(T * BT, H)
    wa1 = wa1_ref[...]
    a1 = jnp.maximum(
        jnp.dot(g2d.astype(wa1.dtype), wa1, preferred_element_type=jnp.float32)
        + ba1_ref[...], 0.0)                                                  # (T*BT, H//2) f32
    w2row = wa2_ref[...].astype(jnp.float32)                                  # (1, H//2)
    logits = jnp.sum(a1 * w2row, axis=1, keepdims=True) + ba2_ref[...]        # (T*BT, 1) f32

    # Numerically-stable softmax over time + pooling (unrolled over T, 2-D VPU ops only);
    # accumulate un-normalized context and divide by the denominator once at the end.
    lrows = [logits[t * BT:(t + 1) * BT, :] for t in range(T)]                # each (BT, 1)
    m = lrows[0]
    for t in range(1, T):
        m = jnp.maximum(m, lrows[t])
    ctx = jnp.zeros((BT, H), jnp.float32)
    denom = jnp.zeros((BT, 1), jnp.float32)
    for t in range(T):
        e = jnp.exp(lrows[t] - m)                                             # (BT, 1)
        denom = denom + e
        ctx = ctx + gru_out[t].astype(jnp.float32) * e                        # (BT, H)
    context = ctx * (1.0 / denom)                                             # normalize once

    # ---- Predictor MLP.  TODO(synk): Dropout(0.2) is identity in eval mode; training-mode
    # dropout is not implemented. ----
    wp1 = wp1_ref[...]
    wp2 = wp2_ref[...]
    p1 = jnp.maximum(
        jnp.dot(context.astype(wp1.dtype), wp1, preferred_element_type=jnp.float32)
        + bp1_ref[...], 0.0)                                                  # (BT, H) f32
    recovered = jnp.dot(p1.astype(wp2.dtype), wp2,
                        preferred_element_type=jnp.float32) + bp2_ref[...]    # (BT, D) f32

    # ---- Occlusion select against the exact f32 last frame. ----
    out_ref[...] = jnp.where(mask_ref[...] > 0, recovered, xlast_ref[...])


def ojr_forward(x, params, occlusion_mask, *, block_b=256, param_dtype=jnp.bfloat16):
    """x: [B, T, D] float32; occlusion_mask: [D]; returns [B, D] float32.

    param_dtype=bfloat16 (default) halves weight/input DMA and doubles MXU throughput on
    v6e/v7x; all accumulation and gate/softmax math stays f32, and unoccluded coordinates are
    returned exactly via a separate f32 last-frame input.  Use param_dtype=jnp.float32 for
    bit-accurate comparison against an f32 reference.
    """
    B, T, D = x.shape
    H = params["whh_t"].shape[0]
    itemsize = jnp.dtype(param_dtype).itemsize

    # Batch tile: multiple of 16 (bf16 sublane packing; lets the recurrence interleave two
    # 8-row-aligned sub-tiles), capped at block_b (256 fills the v6e/v7x MXU rows).
    BT = min(block_b, _round_up(B, 8))
    BT = _round_up(max(BT, 16), 16)
    # v7x megacore: if everything fits in one grid step, halve BT so the parallel grid axis
    # has >= 2 steps and both TensorCores get work (no effect on v5e/v6e correctness).
    if _round_up(B, BT) // BT < 2 and BT >= 32:
        BT = _round_up(BT // 2, 16)
    B_pad = _round_up(B, BT)
    n_blocks = B_pad // BT
    nsplit = 2 if BT >= 16 else 1

    # Time-major layout so the hoisted GI matmul and per-step slices are contiguous.
    x_tm = jnp.transpose(x, (1, 0, 2)).astype(param_dtype)        # (T, B, D)
    x_last = x[:, -1, :].astype(jnp.float32)                      # (B, D) exact passthrough
    if B_pad != B:
        x_tm = jnp.pad(x_tm, ((0, 0), (0, B_pad - B), (0, 0)))
        x_last = jnp.pad(x_last, ((0, B_pad - B), (0, 0)))

    mask2d = occlusion_mask.reshape(1, D).astype(jnp.float32)

    # Weight matrices in param_dtype; biases and the tiny wa2 row stay f32.
    wih = params["wih_t"].astype(param_dtype)
    whh = params["whh_t"].astype(param_dtype)
    wa1 = params["wa1_t"].astype(param_dtype)
    wa2 = params["wa2"].astype(jnp.float32)
    wp1 = params["wp1_t"].astype(param_dtype)
    wp2 = params["wp2_t"].astype(param_dtype)
    bih = params["bih"].astype(jnp.float32)
    bhh = params["bhh"].astype(jnp.float32)
    ba1 = params["ba1"].astype(jnp.float32)
    ba2 = params["ba2"].astype(jnp.float32)
    bp1 = params["bp1"].astype(jnp.float32)
    bp2 = params["bp2"].astype(jnp.float32)

    # Rough VMEM budget (lane/sublane padded) -> explicit limit with headroom, capped at the
    # v7x physical 64 MiB; never below the 32 MiB v6e/v7x default (raises v5e's 16 MiB default).
    lp = lambda n: _round_up(n, 128)
    block_bytes = (
        2 * T * BT * lp(D) * itemsize          # x block, double-buffered
        + 2 * BT * lp(D) * 4                   # x_last block (f32)
        + 2 * BT * lp(D) * 4                   # out block (f32)
        + T * BT * lp(H) * itemsize            # gru_out scratch
        + T * BT * lp(3 * H) * 4               # gi_all temporary (f32)
        + T * BT * lp(H // 2) * 4              # a1 temporary (f32)
    )
    weight_bytes = sum(
        _round_up(w.shape[0], 8) * lp(w.shape[1]) * jnp.dtype(w.dtype).itemsize
        for w in (wih, whh, wa1, wp1, wp2, bih, bhh, ba1, ba2, bp1, bp2, wa2, mask2d))
    vmem_limit = int(min(64 << 20, max(32 << 20, 2 * (block_bytes + weight_bytes))))

    # Constant index_maps -> weights stay resident in VMEM across batch blocks (no re-DMA).
    def full(arr):
        nd = arr.ndim
        return pl.BlockSpec(arr.shape, lambda b, _nd=nd: (0,) * _nd)

    out = pl.pallas_call(
        functools.partial(_ojr_kernel, nsplit=nsplit),
        out_shape=jax.ShapeDtypeStruct((B_pad, D), jnp.float32),
        grid_spec=pltpu.PrefetchScalarGridSpec(
            num_scalar_prefetch=0,
            grid=(n_blocks,),
            in_specs=[
                pl.BlockSpec((T, BT, D), lambda b: (0, b, 0)),     # x (time-major, param_dtype)
                pl.BlockSpec((BT, D), lambda b: (b, 0)),           # x_last (f32)
                full(wih), full(whh), full(bih), full(bhh),
                full(wa1), full(ba1), full(wa2), full(ba2),
                full(wp1), full(bp1), full(wp2), full(bp2),
                full(mask2d),
            ],
            out_specs=pl.BlockSpec((BT, D), lambda b: (b, 0)),
            scratch_shapes=[pltpu.VMEM((T, BT, H), param_dtype)],
        ),
        compiler_params=pltpu.CompilerParams(
            dimension_semantics=("parallel",),
            vmem_limit_bytes=vmem_limit),
    )(x_tm, x_last, wih, whh, bih, bhh, wa1, ba1, wa2, ba2, wp1, bp1, wp2, bp2, mask2d)

    return out[:B]


def ojr_reference(x, params, occlusion_mask):
    """Pure-JAX f32 reference of the PyTorch forward pass (eval mode)."""
    B, T, D = x.shape
    H = params["whh_t"].shape[0]

    def gru_cell(h, x_t):
        gi = x_t @ params["wih_t"] + params["bih"][0]
        gh = h @ params["whh_t"] + params["bhh"][0]
        r = jax.nn.sigmoid(gi[:, :H] + gh[:, :H])
        z = jax.nn.sigmoid(gi[:, H:2 * H] + gh[:, H:2 * H])
        n = jnp.tanh(gi[:, 2 * H:] + r * gh[:, 2 * H:])
        h_new = (1 - z) * n + z * h
        return h_new, h_new

    h0 = jnp.zeros((B, H), jnp.float32)
    _, outs = lax.scan(gru_cell, h0, jnp.transpose(x, (1, 0, 2)))
    gru_out = jnp.transpose(outs, (1, 0, 2))                                  # (B, T, H)

    a1 = jnp.maximum(gru_out @ params["wa1_t"] + params["ba1"][0], 0.0)
    logits = a1 @ params["wa2"].T + params["ba2"][0]                          # (B, T, 1)
    attn = jax.nn.softmax(logits, axis=1)
    context = jnp.sum(gru_out * attn, axis=1)                                 # (B, H)
    p1 = jnp.maximum(context @ params["wp1_t"] + params["bp1"][0], 0.0)
    recovered = p1 @ params["wp2_t"] + params["bp2"][0]                       # (B, D)
    original = x[:, -1, :]
    mask = jnp.broadcast_to(occlusion_mask[None, :], original.shape)
    return jnp.where(mask > 0, recovered, original)


def init_params(key, input_dim, hidden_dim):
    """Deterministic uniform init matching PyTorch parameter shapes (matmul weights stored transposed)."""
    ks = jax.random.split(key, 12)
    u = lambda k, shape, s: jax.random.uniform(k, shape, jnp.float32, -s, s)
    s_gru = 1.0 / jnp.sqrt(hidden_dim)
    return {
        # GRU: weight_ih (3H, D) -> stored (D, 3H); weight_hh (3H, H) -> stored (H, 3H)
        "wih_t": u(ks[0], (input_dim, 3 * hidden_dim), s_gru),
        "whh_t": u(ks[1], (hidden_dim, 3 * hidden_dim), s_gru),
        "bih":   u(ks[2], (1, 3 * hidden_dim), s_gru),
        "bhh":   u(ks[3], (1, 3 * hidden_dim), s_gru),
        # attention: Linear(H, H//2) stored transposed; Linear(H//2, 1) stored as its raw (1, H//2) row
        "wa1_t": u(ks[4], (hidden_dim, hidden_dim // 2), 1.0 / jnp.sqrt(hidden_dim)),
        "ba1":   u(ks[5], (1, hidden_dim // 2), 1.0 / jnp.sqrt(hidden_dim)),
        "wa2":   u(ks[6], (1, hidden_dim // 2), 1.0 / jnp.sqrt(hidden_dim // 2)),
        "ba2":   u(ks[7], (1, 1), 1.0 / jnp.sqrt(hidden_dim // 2)),
        # predictor: Linear(H, H), Linear(H, D) stored transposed
        "wp1_t": u(ks[8], (hidden_dim, hidden_dim), 1.0 / jnp.sqrt(hidden_dim)),
        "bp1":   u(ks[9], (1, hidden_dim), 1.0 / jnp.sqrt(hidden_dim)),
        "wp2_t": u(ks[10], (hidden_dim, input_dim), 1.0 / jnp.sqrt(hidden_dim)),
        "bp2":   u(ks[11], (1, input_dim), 1.0 / jnp.sqrt(hidden_dim)),
    }


if __name__ == "__main__":
    B, T = 2, 8
    num_keypoints = 8
    input_dim = num_keypoints * 2   # 16
    hidden_dim = 32

    key = jax.random.PRNGKey(0)
    k_x, k_p, k_m = jax.random.split(key, 3)

    x = jax.random.normal(k_x, (B, T, input_dim), jnp.float32)
    params = init_params(k_p, input_dim, hidden_dim)
    # binary occlusion mask over the D=K*2 flattened keypoint coords
    occ_joint = (jax.random.uniform(k_m, (num_keypoints,)) < 0.4).astype(jnp.float32)
    occlusion_mask = jnp.repeat(occ_joint, 2)   # [K*2]

    ref = ojr_reference(x, params, occlusion_mask)

    # 1) Default (bf16 weights/inputs, f32 accumulation): loose tolerance vs f32 reference,
    #    but unoccluded coordinates must be bit-exact (f32 passthrough path).
    out_bf16 = jax.block_until_ready(ojr_forward(x, params, occlusion_mask))
    assert out_bf16.shape == (B, input_dim)
    assert jnp.allclose(out_bf16, ref, rtol=1e-1, atol=1e-1), (out_bf16, ref)
    keep = occlusion_mask[None, :] <= 0
    assert jnp.array_equal(jnp.where(keep, out_bf16, 0.0),
                           jnp.where(keep, x[:, -1, :], 0.0))

    # 2) f32 mode: tight tolerance against the reference.
    out_f32 = jax.block_until_ready(
        ojr_forward(x, params, occlusion_mask, param_dtype=jnp.float32))
    assert jnp.allclose(out_f32, ref, rtol=1e-3, atol=1e-3), (out_f32, ref)

    print("KERNEL_OK")
</pallas_src>

<mosaic_0001>
module attributes {stable_mosaic.version = 11 : i64} {
  func.func @_ojr_kernel(%arg0: i32, %arg1: memref<8x16x16xbf16, #tpu.memory_space<vmem>>, %arg2: memref<16x16xf32, #tpu.memory_space<vmem>>, %arg3: memref<16x96xbf16, #tpu.memory_space<vmem>>, %arg4: memref<32x96xbf16, #tpu.memory_space<vmem>>, %arg5: memref<1x96xf32, #tpu.memory_space<vmem>>, %arg6: memref<1x96xf32, #tpu.memory_space<vmem>>, %arg7: memref<32x16xbf16, #tpu.memory_space<vmem>>, %arg8: memref<1x16xf32, #tpu.memory_space<vmem>>, %arg9: memref<1x16xf32, #tpu.memory_space<vmem>>, %arg10: memref<1x1xf32, #tpu.memory_space<vmem>>, %arg11: memref<32x32xbf16, #tpu.memory_space<vmem>>, %arg12: memref<1x32xf32, #tpu.memory_space<vmem>>, %arg13: memref<32x16xbf16, #tpu.memory_space<vmem>>, %arg14: memref<1x16xf32, #tpu.memory_space<vmem>>, %arg15: memref<1x16xf32, #tpu.memory_space<vmem>>, %arg16: memref<16x16xf32, #tpu.memory_space<vmem>>, %arg17: memref<8x16x32xbf16, #tpu.memory_space<vmem>>) attributes {dimension_semantics = [#tpu.dimension_semantics<parallel>], iteration_bounds = array<i64: 1>, scalar_prefetch = 0 : i64, scratch_operands = 1 : i64, tpu.core_type = #tpu.core_type<tc>, window_params = [{transform_indices = @transform_0, window_bounds = array<i64: 8, 16, 16>}, {transform_indices = @transform_1, window_bounds = array<i64: 16, 16>}, {pipeline_mode = #tpu.pipeline_mode<synchronous>, transform_indices = @transform_2, window_bounds = array<i64: 16, 96>}, {pipeline_mode = #tpu.pipeline_mode<synchronous>, transform_indices = @transform_3, window_bounds = array<i64: 32, 96>}, {pipeline_mode = #tpu.pipeline_mode<synchronous>, transform_indices = @transform_4, window_bounds = array<i64: 1, 96>}, {pipeline_mode = #tpu.pipeline_mode<synchronous>, transform_indices = @transform_5, window_bounds = array<i64: 1, 96>}, {pipeline_mode = #tpu.pipeline_mode<synchronous>, transform_indices = @transform_6, window_bounds = array<i64: 32, 16>}, {pipeline_mode = #tpu.pipeline_mode<synchronous>, transform_indices = @transform_7, window_bounds = array<i64: 1, 16>}, {pipeline_mode = #tpu.pipeline_mode<synchronous>, transform_indices = @transform_8, window_bounds = array<i64: 1, 16>}, {pipeline_mode = #tpu.pipeline_mode<synchronous>, transform_indices = @transform_9, window_bounds = array<i64: 1, 1>}, {pipeline_mode = #tpu.pipeline_mode<synchronous>, transform_indices = @transform_10, window_bounds = array<i64: 32, 32>}, {pipeline_mode = #tpu.pipeline_mode<synchronous>, transform_indices = @transform_11, window_bounds = array<i64: 1, 32>}, {pipeline_mode = #tpu.pipeline_mode<synchronous>, transform_indices = @transform_12, window_bounds = array<i64: 32, 16>}, {pipeline_mode = #tpu.pipeline_mode<synchronous>, transform_indices = @transform_13, window_bounds = array<i64: 1, 16>}, {pipeline_mode = #tpu.pipeline_mode<synchronous>, transform_indices = @transform_14, window_bounds = array<i64: 1, 16>}, {transform_indices = @transform_15, window_bounds = array<i64: 16, 16>}]} {
    %c0 = arith.constant 0 : index
    %c0_0 = arith.constant 0 : index
    %0 = vector.load %arg3[%c0, %c0_0] : memref<16x96xbf16, #tpu.memory_space<vmem>>, vector<16x96xbf16>
    %c0_1 = arith.constant 0 : index
    %c0_2 = arith.constant 0 : index
    %1 = vector.load %arg4[%c0_1, %c0_2] : memref<32x96xbf16, #tpu.memory_space<vmem>>, vector<32x96xbf16>
    %c0_3 = arith.constant 0 : index
    %c0_4 = arith.constant 0 : index
    %2 = vector.load %arg5[%c0_3, %c0_4] : memref<1x96xf32, #tpu.memory_space<vmem>>, vector<1x96xf32>
    %c0_5 = arith.constant 0 : index
    %c0_6 = arith.constant 0 : index
    %3 = vector.load %arg6[%c0_5, %c0_6] : memref<1x96xf32, #tpu.memory_space<vmem>>, vector<1x96xf32>
    %c0_7 = arith.constant 0 : index
    %c0_8 = arith.constant 0 : index
    %c0_9 = arith.constant 0 : index
    %4 = vector.load %arg1[%c0_7, %c0_8, %c0_9] : memref<8x16x16xbf16, #tpu.memory_space<vmem>>, vector<8x16x16xbf16>
    %5 = vector.shape_cast %4 : vector<8x16x16xbf16> to vector<128x16xbf16>
    %cst = arith.constant dense<0.000000e+00> : vector<128x96xf32>
    %6 = tpu.matmul %5, %0, %cst {dimension_numbers = #tpu.dot_dimension_numbers<[1], [0], [0], [1], [0, 0, 1, 1], [], []>} : vector<128x16xbf16>, vector<16x96xbf16>, vector<128x96xf32> -> vector<128x96xf32>
    %7 = vector.broadcast %2 : vector<1x96xf32> to vector<128x96xf32>
    %8 = arith.addf %6, %7 : vector<128x96xf32>
    %9 = vector.shape_cast %3 : vector<1x96xf32> to vector<1x96xf32>
    %10 = vector.broadcast %9 : vector<1x96xf32> to vector<8x96xf32>
    %cst_10 = arith.constant 0.000000e+00 : f32
    %11 = vector.broadcast %cst_10 : f32 to vector<8x32xf32>
    %cst_11 = arith.constant 0.000000e+00 : f32
    %12 = vector.broadcast %cst_11 : f32 to vector<8x32xf32>
    %13 = vector.extract_strided_slice %8 {offsets = [0, 0], sizes = [8, 96], strides = [1, 1]} : vector<128x96xf32> to vector<8x96xf32>
    %14 = arith.truncf %11 : vector<8x32xf32> to vector<8x32xbf16>
    %cst_12 = arith.constant dense<0.000000e+00> : vector<8x96xf32>
    %15 = tpu.matmul %14, %1, %cst_12 {dimension_numbers = #tpu.dot_dimension_numbers<[1], [0], [0], [1], [0, 0, 1, 1], [], []>} : vector<8x32xbf16>, vector<32x96xbf16>, vector<8x96xf32> -> vector<8x96xf32>
    %16 = arith.addf %15, %10 : vector<8x96xf32>
    %17 = vector.extract_strided_slice %13 {offsets = [0, 0], sizes = [8, 32], strides = [1, 1]} : vector<8x96xf32> to vector<8x32xf32>
    %18 = vector.extract_strided_slice %16 {offsets = [0, 0], sizes = [8, 32], strides = [1, 1]} : vector<8x96xf32> to vector<8x32xf32>
    %19 = arith.addf %17, %18 : vector<8x32xf32>
    %20 = arith.negf %19 : vector<8x32xf32>
    %21 = math.exp %20 : vector<8x32xf32>
    %cst_13 = arith.constant 1.000000e+00 : f32
    %22 = vector.broadcast %cst_13 : f32 to vector<8x32xf32>
    %23 = arith.addf %22, %21 : vector<8x32xf32>
    %24 = arith.divf %22, %23 : vector<8x32xf32>
    %25 = vector.extract_strided_slice %13 {offsets = [0, 32], sizes = [8, 32], strides = [1, 1]} : vector<8x96xf32> to vector<8x32xf32>
    %26 = vector.extract_strided_slice %16 {offsets = [0, 32], sizes = [8, 32], strides = [1, 1]} : vector<8x96xf32> to vector<8x32xf32>
    %27 = arith.addf %25, %26 : vector<8x32xf32>
    %28 = arith.negf %27 : vector<8x32xf32>
    %29 = math.exp %28 : vector<8x32xf32>
    %cst_14 = arith.constant 1.000000e+00 : f32
    %30 = vector.broadcast %cst_14 : f32 to vector<8x32xf32>
    %31 = arith.addf %30, %29 : vector<8x32xf32>
    %32 = arith.divf %30, %31 : vector<8x32xf32>
    %33 = vector.extract_strided_slice %13 {offsets = [0, 64], sizes = [8, 32], strides = [1, 1]} : vector<8x96xf32> to vector<8x32xf32>
    %34 = vector.extract_strided_slice %16 {offsets = [0, 64], sizes = [8, 32], strides = [1, 1]} : vector<8x96xf32> to vector<8x32xf32>
    %35 = arith.mulf %24, %34 : vector<8x32xf32>
    %36 = arith.addf %33, %35 : vector<8x32xf32>
    %37 = math.tanh %36 : vector<8x32xf32>
    %cst_15 = arith.constant 1.000000e+00 : f32
    %38 = vector.broadcast %cst_15 : f32 to vector<8x32xf32>
    %39 = arith.subf %38, %32 : vector<8x32xf32>
    %40 = arith.mulf %39, %37 : vector<8x32xf32>
    %41 = arith.mulf %32, %11 : vector<8x32xf32>
    %42 = arith.addf %40, %41 : vector<8x32xf32>
    %43 = arith.truncf %42 : vector<8x32xf32> to vector<8x32xbf16>
    %c0_16 = arith.constant 0 : index
    %c0_17 = arith.constant 0 : index
    %c0_18 = arith.constant 0 : index
    %44 = vector.load %arg17[%c0_16, %c0_17, %c0_18] : memref<8x16x32xbf16, #tpu.memory_space<vmem>>, vector<1x8x32xbf16>
    %45 = vector.shape_cast %44 : vector<1x8x32xbf16> to vector<8x32xbf16>
    %46 = vector.shape_cast %43 : vector<8x32xbf16> to vector<1x8x32xbf16>
    tpu.vector_store %arg17[%c0_16, %c0_17, %c0_18], %46 {strides = array<i32>} : memref<8x16x32xbf16, #tpu.memory_space<vmem>>, vector<1x8x32xbf16>,
    %47 = vector.extract_strided_slice %8 {offsets = [8, 0], sizes = [8, 96], strides = [1, 1]} : vector<128x96xf32> to vector<8x96xf32>
    %48 = arith.truncf %12 : vector<8x32xf32> to vector<8x32xbf16>
    %cst_19 = arith.constant dense<0.000000e+00> : vector<8x96xf32>
    %49 = tpu.matmul %48, %1, %cst_19 {dimension_numbers = #tpu.dot_dimension_numbers<[1], [0], [0], [1], [0, 0, 1, 1], [], []>} : vector<8x32xbf16>, vector<32x96xbf16>, vector<8x96xf32> -> vector<8x96xf32>
    %50 = arith.addf %49, %10 : vector<8x96xf32>
    %51 = vector.extract_strided_slice %47 {offsets = [0, 0], sizes = [8, 32], strides = [1, 1]} : vector<8x96xf32> to vector<8x32xf32>
    %52 = vector.extract_strided_slice %50 {offsets = [0, 0], sizes = [8, 32], strides = [1, 1]} : vector<8x96xf32> to vector<8x32xf32>
    %53 = arith.addf %51, %52 : vector<8x32xf32>
    %54 = arith.negf %53 : vector<8x32xf32>
    %55 = math.exp %54 : vector<8x32xf32>
    %cst_20 = arith.constant 1.000000e+00 : f32
    %56 = vector.broadcast %cst_20 : f32 to vector<8x32xf32>
    %57 = arith.addf %56, %55 : vector<8x32xf32>
    %58 = arith.divf %56, %57 : vector<8x32xf32>
    %59 = vector.extract_strided_slice %47 {offsets = [0, 32], sizes = [8, 32], strides = [1, 1]} : vector<8x96xf32> to vector<8x32xf32>
    %60 = vector.extract_strided_slice %50 {offsets = [0, 32], sizes = [8, 32], strides = [1, 1]} : vector<8x96xf32> to vector<8x32xf32>
    %61 = arith.addf %59, %60 : vector<8x32xf32>
    %62 = arith.negf %61 : vector<8x32xf32>
    %63 = math.exp %62 : vector<8x32xf32>
    %cst_21 = arith.constant 1.000000e+00 : f32
    %64 = vector.broadcast %cst_21 : f32 to vector<8x32xf32>
    %65 = arith.addf %64, %63 : vector<8x32xf32>
    %66 = arith.divf %64, %65 : vector<8x32xf32>
    %67 = vector.extract_strided_slice %47 {offsets = [0, 64], sizes = [8, 32], strides = [1, 1]} : vector<8x96xf32> to vector<8x32xf32>
    %68 = vector.extract_strided_slice %50 {offsets = [0, 64], sizes = [8, 32], strides = [1, 1]} : vector<8x96xf32> to vector<8x32xf32>
    %69 = arith.mulf %58, %68 : vector<8x32xf32>
    %70 = arith.addf %67, %69 : vector<8x32xf32>
    %71 = math.tanh %70 : vector<8x32xf32>
    %cst_22 = arith.constant 1.000000e+00 : f32
    %72 = vector.broadcast %cst_22 : f32 to vector<8x32xf32>
    %73 = arith.subf %72, %66 : vector<8x32xf32>
    %74 = arith.mulf %73, %71 : vector<8x32xf32>
    %75 = arith.mulf %66, %12 : vector<8x32xf32>
    %76 = arith.addf %74, %75 : vector<8x32xf32>
    %77 = arith.truncf %76 : vector<8x32xf32> to vector<8x32xbf16>
    %c0_23 = arith.constant 0 : index
    %c8 = arith.constant 8 : index
    %c0_24 = arith.constant 0 : index
    %78 = vector.load %arg17[%c0_23, %c8, %c0_24] : memref<8x16x32xbf16, #tpu.memory_space<vmem>>, vector<1x8x32xbf16>
    %79 = vector.shape_cast %78 : vector<1x8x32xbf16> to vector<8x32xbf16>
    %80 = vector.shape_cast %77 : vector<8x32xbf16> to vector<1x8x32xbf16>
    tpu.vector_store %arg17[%c0_23, %c8, %c0_24], %80 {strides = array<i32>} : memref<8x16x32xbf16, #tpu.memory_space<vmem>>, vector<1x8x32xbf16>,
    %81 = vector.extract_strided_slice %8 {offsets = [16, 0], sizes = [8, 96], strides = [1, 1]} : vector<128x96xf32> to vector<8x96xf32>
    %82 = arith.truncf %42 : vector<8x32xf32> to vector<8x32xbf16>
    %cst_25 = arith.constant dense<0.000000e+00> : vector<8x96xf32>
    %83 = tpu.matmul %82, %1, %cst_25 {dimension_numbers = #tpu.dot_dimension_numbers<[1], [0], [0], [1], [0, 0, 1, 1], [], []>} : vector<8x32xbf16>, vector<32x96xbf16>, vector<8x96xf32> -> vector<8x96xf32>
    %84 = arith.addf %83, %10 : vector<8x96xf32>
    %85 = vector.extract_strided_slice %81 {offsets = [0, 0], sizes = [8, 32], strides = [1, 1]} : vector<8x96xf32> to vector<8x32xf32>
    %86 = vector.extract_strided_slice %84 {offsets = [0, 0], sizes = [8, 32], strides = [1, 1]} : vector<8x96xf32> to vector<8x32xf32>
    %87 = arith.addf %85, %86 : vector<8x32xf32>
    %88 = arith.negf %87 : vector<8x32xf32>
    %89 = math.exp %88 : vector<8x32xf32>
    %cst_26 = arith.constant 1.000000e+00 : f32
    %90 = vector.broadcast %cst_26 : f32 to vector<8x32xf32>
    %91 = arith.addf %90, %89 : vector<8x32xf32>
    %92 = arith.divf %90, %91 : vector<8x32xf32>
    %93 = vector.extract_strided_slice %81 {offsets = [0, 32], sizes = [8, 32], strides = [1, 1]} : vector<8x96xf32> to vector<8x32xf32>
    %94 = vector.extract_strided_slice %84 {offsets = [0, 32], sizes = [8, 32], strides = [1, 1]} : vector<8x96xf32> to vector<8x32xf32>
    %95 = arith.addf %93, %94 : vector<8x32xf32>
    %96 = arith.negf %95 : vector<8x32xf32>
    %97 = math.exp %96 : vector<8x32xf32>
    %cst_27 = arith.constant 1.000000e+00 : f32
    %98 = vector.broadcast %cst_27 : f32 to vector<8x32xf32>
    %99 = arith.addf %98, %97 : vector<8x32xf32>
    %100 = arith.divf %98, %99 : vector<8x32xf32>
    %101 = vector.extract_strided_slice %81 {offsets = [0, 64], sizes = [8, 32], strides = [1, 1]} : vector<8x96xf32> to vector<8x32xf32>
    %102 = vector.extract_strided_slice %84 {offsets = [0, 64], sizes = [8, 32], strides = [1, 1]} : vector<8x96xf32> to vector<8x32xf32>
    %103 = arith.mulf %92, %102 : vector<8x32xf32>
    %104 = arith.addf %101, %103 : vector<8x32xf32>
    %105 = math.tanh %104 : vector<8x32xf32>
    %cst_28 = arith.constant 1.000000e+00 : f32
    %106 = vector.broadcast %cst_28 : f32 to vector<8x32xf32>
    %107 = arith.subf %106, %100 : vector<8x32xf32>
    %108 = arith.mulf %107, %105 : vector<8x32xf32>
    %109 = arith.mulf %100, %42 : vector<8x32xf32>
    %110 = arith.addf %108, %109 : vector<8x32xf32>
    %111 = arith.truncf %110 : vector<8x32xf32> to vector<8x32xbf16>
    %c1 = arith.constant 1 : index
    %c0_29 = arith.constant 0 : index
    %c0_30 = arith.constant 0 : index
    %112 = vector.load %arg17[%c1, %c0_29, %c0_30] : memref<8x16x32xbf16, #tpu.memory_space<vmem>>, vector<1x8x32xbf16>
    %113 = vector.shape_cast %112 : vector<1x8x32xbf16> to vector<8x32xbf16>
    %114 = vector.shape_cast %111 : vector<8x32xbf16> to vector<1x8x32xbf16>
    tpu.vector_store %arg17[%c1, %c0_29, %c0_30], %114 {strides = array<i32>} : memref<8x16x32xbf16, #tpu.memory_space<vmem>>, vector<1x8x32xbf16>,
    %115 = vector.extract_strided_slice %8 {offsets = [24, 0], sizes = [8, 96], strides = [1, 1]} : vector<128x96xf32> to vector<8x96xf32>
    %116 = arith.truncf %76 : vector<8x32xf32> to vector<8x32xbf16>
    %cst_31 = arith.constant dense<0.000000e+00> : vector<8x96xf32>
    %117 = tpu.matmul %116, %1, %cst_31 {dimension_numbers = #tpu.dot_dimension_numbers<[1], [0], [0], [1], [0, 0, 1, 1], [], []>} : vector<8x32xbf16>, vector<32x96xbf16>, vector<8x96xf32> -> vector<8x96xf32>
    %118 = arith.addf %117, %10 : vector<8x96xf32>
    %119 = vector.extract_strided_slice %115 {offsets = [0, 0], sizes = [8, 32], strides = [1, 1]} : vector<8x96xf32> to vector<8x32xf32>
    %120 = vector.extract_strided_slice %118 {offsets = [0, 0], sizes = [8, 32], strides = [1, 1]} : vector<8x96xf32> to vector<8x32xf32>
    %121 = arith.addf %119, %120 : vector<8x32xf32>
    %122 = arith.negf %121 : vector<8x32xf32>
    %123 = math.exp %122 : vector<8x32xf32>
    %cst_32 = arith.constant 1.000000e+00 : f32
    %124 = vector.broadcast %cst_32 : f32 to vector<8x32xf32>
    %125 = arith.addf %124, %123 : vector<8x32xf32>
    %126 = arith.divf %124, %125 : vector<8x32xf32>
    %127 = vector.extract_strided_slice %115 {offsets = [0, 32], sizes = [8, 32], strides = [1, 1]} : vector<8x96xf32> to vector<8x32xf32>
    %128 = vector.extract_strided_slice %118 {offsets = [0, 32], sizes = [8, 32], strides = [1, 1]} : vector<8x96xf32> to vector<8x32xf32>
    %129 = arith.addf %127, %128 : vector<8x32xf32>
    %130 = arith.negf %129 : vector<8x32xf32>
    %131 = math.exp %130 : vector<8x32xf32>
    %cst_33 = arith.constant 1.000000e+00 : f32
    %132 = vector.broadcast %cst_33 : f32 to vector<8x32xf32>
    %133 = arith.addf %132, %131 : vector<8x32xf32>
    %134 = arith.divf %132, %133 : vector<8x32xf32>
    %135 = vector.extract_strided_slice %115 {offsets = [0, 64], sizes = [8, 32], strides = [1, 1]} : vector<8x96xf32> to vector<8x32xf32>
    %136 = vector.extract_strided_slice %118 {offsets = [0, 64], sizes = [8, 32], strides = [1, 1]} : vector<8x96xf32> to vector<8x32xf32>
    %137 = arith.mulf %126, %136 : vector<8x32xf32>
    %138 = arith.addf %135, %137 : vector<8x32xf32>
    %139 = math.tanh %138 : vector<8x32xf32>
    %cst_34 = arith.constant 1.000000e+00 : f32
    %140 = vector.broadcast %cst_34 : f32 to vector<8x32xf32>
    %141 = arith.subf %140, %134 : vector<8x32xf32>
    %142 = arith.mulf %141, %139 : vector<8x32xf32>
    %143 = arith.mulf %134, %76 : vector<8x32xf32>
    %144 = arith.addf %142, %143 : vector<8x32xf32>
    %145 = arith.truncf %144 : vector<8x32xf32> to vector<8x32xbf16>
    %c1_35 = arith.constant 1 : index
    %c8_36 = arith.constant 8 : index
    %c0_37 = arith.constant 0 : index
    %146 = vector.load %arg17[%c1_35, %c8_36, %c0_37] : memref<8x16x32xbf16, #tpu.memory_space<vmem>>, vector<1x8x32xbf16>
    %147 = vector.shape_cast %146 : vector<1x8x32xbf16> to vector<8x32xbf16>
    %148 = vector.shape_cast %145 : vector<8x32xbf16> to vector<1x8x32xbf16>
    tpu.vector_store %arg17[%c1_35, %c8_36, %c0_37], %148 {strides = array<i32>} : memref<8x16x32xbf16, #tpu.memory_space<vmem>>, vector<1x8x32xbf16>,
    %149 = vector.extract_strided_slice %8 {offsets = [32, 0], sizes = [8, 96], strides = [1, 1]} : vector<128x96xf32> to vector<8x96xf32>
    %150 = arith.truncf %110 : vector<8x32xf32> to vector<8x32xbf16>
    %cst_38 = arith.constant dense<0.000000e+00> : vector<8x96xf32>
    %151 = tpu.matmul %150, %1, %cst_38 {dimension_numbers = #tpu.dot_dimension_numbers<[1], [0], [0], [1], [0, 0, 1, 1], [], []>} : vector<8x32xbf16>, vector<32x96xbf16>, vector<8x96xf32> -> vector<8x96xf32>
    %152 = arith.addf %151, %10 : vector<8x96xf32>
    %153 = vector.extract_strided_slice %149 {offsets = [0, 0], sizes = [8, 32], strides = [1, 1]} : vector<8x96xf32> to vector<8x32xf32>
    %154 = vector.extract_strided_slice %152 {offsets = [0, 0], sizes = [8, 32], strides = [1, 1]} : vector<8x96xf32> to vector<8x32xf32>
    %155 = arith.addf %153, %154 : vector<8x32xf32>
    %156 = arith.negf %155 : vector<8x32xf32>
    %157 = math.exp %156 : vector<8x32xf32>
    %cst_39 = arith.constant 1.000000e+00 : f32
    %158 = vector.broadcast %cst_39 : f32 to vector<8x32xf32>
    %159 = arith.addf %158, %157 : vector<8x32xf32>
    %160 = arith.divf %158, %159 : vector<8x32xf32>
    %161 = vector.extract_strided_slice %149 {offsets = [0, 32], sizes = [8, 32], strides = [1, 1]} : vector<8x96xf32> to vector<8x32xf32>
    %162 = vector.extract_strided_slice %152 {offsets = [0, 32], sizes = [8, 32], strides = [1, 1]} : vector<8x96xf32> to vector<8x32xf32>
    %163 = arith.addf %161, %162 : vector<8x32xf32>
    %164 = arith.negf %163 : vector<8x32xf32>
    %165 = math.exp %164 : vector<8x32xf32>
    %cst_40 = arith.constant 1.000000e+00 : f32
    %166 = vector.broadcast %cst_40 : f32 to vector<8x32xf32>
    %167 = arith.addf %166, %165 : vector<8x32xf32>
    %168 = arith.divf %166, %167 : vector<8x32xf32>
    %169 = vector.extract_strided_slice %149 {offsets = [0, 64], sizes = [8, 32], strides = [1, 1]} : vector<8x96xf32> to vector<8x32xf32>
    %170 = vector.extract_strided_slice %152 {offsets = [0, 64], sizes = [8, 32], strides = [1, 1]} : vector<8x96xf32> to vector<8x32xf32>
    %171 = arith.mulf %160, %170 : vector<8x32xf32>
    %172 = arith.addf %169, %171 : vector<8x32xf32>
    %173 = math.tanh %172 : vector<8x32xf32>
    %cst_41 = arith.constant 1.000000e+00 : f32
    %174 = vector.broadcast %cst_41 : f32 to vector<8x32xf32>
    %175 = arith.subf %174, %168 : vector<8x32xf32>
    %176 = arith.mulf %175, %173 : vector<8x32xf32>
    %177 = arith.mulf %168, %110 : vector<8x32xf32>
    %178 = arith.addf %176, %177 : vector<8x32xf32>
    %179 = arith.truncf %178 : vector<8x32xf32> to vector<8x32xbf16>
    %c2 = arith.constant 2 : index
    %c0_42 = arith.constant 0 : index
    %c0_43 = arith.constant 0 : index
    %180 = vector.load %arg17[%c2, %c0_42, %c0_43] : memref<8x16x32xbf16, #tpu.memory_space<vmem>>, vector<1x8x32xbf16>
    %181 = vector.shape_cast %180 : vector<1x8x32xbf16> to vector<8x32xbf16>
    %182 = vector.shape_cast %179 : vector<8x32xbf16> to vector<1x8x32xbf16>
    tpu.vector_store %arg17[%c2, %c0_42, %c0_43], %182 {strides = array<i32>} : memref<8x16x32xbf16, #tpu.memory_space<vmem>>, vector<1x8x32xbf16>,
    %183 = vector.extract_strided_slice %8 {offsets = [40, 0], sizes = [8, 96], strides = [1, 1]} : vector<128x96xf32> to vector<8x96xf32>
    %184 = arith.truncf %144 : vector<8x32xf32> to vector<8x32xbf16>
    %cst_44 = arith.constant dense<0.000000e+00> : vector<8x96xf32>
    %185 = tpu.matmul %184, %1, %cst_44 {dimension_numbers = #tpu.dot_dimension_numbers<[1], [0], [0], [1], [0, 0, 1, 1], [], []>} : vector<8x32xbf16>, vector<32x96xbf16>, vector<8x96xf32> -> vector<8x96xf32>
    %186 = arith.addf %185, %10 : vector<8x96xf32>
    %187 = vector.extract_strided_slice %183 {offsets = [0, 0], sizes = [8, 32], strides = [1, 1]} : vector<8x96xf32> to vector<8x32xf32>
    %188 = vector.extract_strided_slice %186 {offsets = [0, 0], sizes = [8, 32], strides = [1, 1]} : vector<8x96xf32> to vector<8x32xf32>
    %189 = arith.addf %187, %188 : vector<8x32xf32>
    %190 = arith.negf %189 : vector<8x32xf32>
    %191 = math.exp %190 : vector<8x32xf32>
    %cst_45 = arith.constant 1.000000e+00 : f32
    %192 = vector.broadcast %cst_45 : f32 to vector<8x32xf32>
    %193 = arith.addf %192, %191 : vector<8x32xf32>
    %194 = arith.divf %192, %193 : vector<8x32xf32>
    %195 = vector.extract_strided_slice %183 {offsets = [0, 32], sizes = [8, 32], strides = [1, 1]} : vector<8x96xf32> to vector<8x32xf32>
    %196 = vector.extract_strided_slice %186 {offsets = [0, 32], sizes = [8, 32], strides = [1, 1]} : vector<8x96xf32> to vector<8x32xf32>
    %197 = arith.addf %195, %196 : vector<8x32xf32>
    %198 = arith.negf %197 : vector<8x32xf32>
    %199 = math.exp %198 : vector<8x32xf32>
    %cst_46 = arith.constant 1.000000e+00 : f32
    %200 = vector.broadcast %cst_46 : f32 to vector<8x32xf32>
    %201 = arith.addf %200, %199 : vector<8x32xf32>
    %202 = arith.divf %200, %201 : vector<8x32xf32>
    %203 = vector.extract_strided_slice %183 {offsets = [0, 64], sizes = [8, 32], strides = [1, 1]} : vector<8x96xf32> to vector<8x32xf32>
    %204 = vector.extract_strided_slice %186 {offsets = [0, 64], sizes = [8, 32], strides = [1, 1]} : vector<8x96xf32> to vector<8x32xf32>
    %205 = arith.mulf %194, %204 : vector<8x32xf32>
    %206 = arith.addf %203, %205 : vector<8x32xf32>
    %207 = math.tanh %206 : vector<8x32xf32>
    %cst_47 = arith.constant 1.000000e+00 : f32
    %208 = vector.broadcast %cst_47 : f32 to vector<8x32xf32>
    %209 = arith.subf %208, %202 : vector<8x32xf32>
    %210 = arith.mulf %209, %207 : vector<8x32xf32>
    %211 = arith.mulf %202, %144 : vector<8x32xf32>
    %212 = arith.addf %210, %211 : vector<8x32xf32>
    %213 = arith.truncf %212 : vector<8x32xf32> to vector<8x32xbf16>
    %c2_48 = arith.constant 2 : index
    %c8_49 = arith.constant 8 : index
    %c0_50 = arith.constant 0 : index
    %214 = vector.load %arg17[%c2_48, %c8_49, %c0_50] : memref<8x16x32xbf16, #tpu.memory_space<vmem>>, vector<1x8x32xbf16>
    %215 = vector.shape_cast %214 : vector<1x8x32xbf16> to vector<8x32xbf16>
    %216 = vector.shape_cast %213 : vector<8x32xbf16> to vector<1x8x32xbf16>
    tpu.vector_store %arg17[%c2_48, %c8_49, %c0_50], %216 {strides = array<i32>} : memref<8x16x32xbf16, #tpu.memory_space<vmem>>, vector<1x8x32xbf16>,
    %217 = vector.extract_strided_slice %8 {offsets = [48, 0], sizes = [8, 96], strides = [1, 1]} : vector<128x96xf32> to vector<8x96xf32>
    %218 = arith.truncf %178 : vector<8x32xf32> to vector<8x32xbf16>
    %cst_51 = arith.constant dense<0.000000e+00> : vector<8x96xf32>
    %219 = tpu.matmul %218, %1, %cst_51 {dimension_numbers = #tpu.dot_dimension_numbers<[1], [0], [0], [1], [0, 0, 1, 1], [], []>} : vector<8x32xbf16>, vector<32x96xbf16>, vector<8x96xf32> -> vector<8x96xf32>
    %220 = arith.addf %219, %10 : vector<8x96xf32>
    %221 = vector.extract_strided_slice %217 {offsets = [0, 0], sizes = [8, 32], strides = [1, 1]} : vector<8x96xf32> to vector<8x32xf32>
    %222 = vector.extract_strided_slice %220 {offsets = [0, 0], sizes = [8, 32], strides = [1, 1]} : vector<8x96xf32> to vector<8x32xf32>
    %223 = arith.addf %221, %222 : vector<8x32xf32>
    %224 = arith.negf %223 : vector<8x32xf32>
    %225 = math.exp %224 : vector<8x32xf32>
    %cst_52 = arith.constant 1.000000e+00 : f32
    %226 = vector.broadcast %cst_52 : f32 to vector<8x32xf32>
    %227 = arith.addf %226, %225 : vector<8x32xf32>
    %228 = arith.divf %226, %227 : vector<8x32xf32>
    %229 = vector.extract_strided_slice %217 {offsets = [0, 32], sizes = [8, 32], strides = [1, 1]} : vector<8x96xf32> to vector<8x32xf32>
    %230 = vector.extract_strided_slice %220 {offsets = [0, 32], sizes = [8, 32], strides = [1, 1]} : vector<8x96xf32> to vector<8x32xf32>
    %231 = arith.addf %229, %230 : vector<8x32xf32>
    %232 = arith.negf %231 : vector<8x32xf32>
    %233 = math.exp %232 : vector<8x32xf32>
    %cst_53 = arith.constant 1.000000e+00 : f32
    %234 = vector.broadcast %cst_53 : f32 to vector<8x32xf32>
    %235 = arith.addf %234, %233 : vector<8x32xf32>
    %236 = arith.divf %234, %235 : vector<8x32xf32>
    %237 = vector.extract_strided_slice %217 {offsets = [0, 64], sizes = [8, 32], strides = [1, 1]} : vector<8x96xf32> to vector<8x32xf32>
    %238 = vector.extract_strided_slice %220 {offsets = [0, 64], sizes = [8, 32], strides = [1, 1]} : vector<8x96xf32> to vector<8x32xf32>
    %239 = arith.mulf %228, %238 : vector<8x32xf32>
    %240 = arith.addf %237, %239 : vector<8x32xf32>
    %241 = math.tanh %240 : vector<8x32xf32>
    %cst_54 = arith.constant 1.000000e+00 : f32
    %242 = vector.broadcast %cst_54 : f32 to vector<8x32xf32>
    %243 = arith.subf %242, %236 : vector<8x32xf32>
    %244 = arith.mulf %243, %241 : vector<8x32xf32>
    %245 = arith.mulf %236, %178 : vector<8x32xf32>
    %246 = arith.addf %244, %245 : vector<8x32xf32>
    %247 = arith.truncf %246 : vector<8x32xf32> to vector<8x32xbf16>
    %c3 = arith.constant 3 : index
    %c0_55 = arith.constant 0 : index
    %c0_56 = arith.constant 0 : index
    %248 = vector.load %arg17[%c3, %c0_55, %c0_56] : memref<8x16x32xbf16, #tpu.memory_space<vmem>>, vector<1x8x32xbf16>
    %249 = vector.shape_cast %248 : vector<1x8x32xbf16> to vector<8x32xbf16>
    %250 = vector.shape_cast %247 : vector<8x32xbf16> to vector<1x8x32xbf16>
    tpu.vector_store %arg17[%c3, %c0_55, %c0_56], %250 {strides = array<i32>} : memref<8x16x32xbf16, #tpu.memory_space<vmem>>, vector<1x8x32xbf16>,
    %251 = vector.extract_strided_slice %8 {offsets = [56, 0], sizes = [8, 96], strides = [1, 1]} : vector<128x96xf32> to vector<8x96xf32>
    %252 = arith.truncf %212 : vector<8x32xf32> to vector<8x32xbf16>
    %cst_57 = arith.constant dense<0.000000e+00> : vector<8x96xf32>
    %253 = tpu.matmul %252, %1, %cst_57 {dimension_numbers = #tpu.dot_dimension_numbers<[1], [0], [0], [1], [0, 0, 1, 1], [], []>} : vector<8x32xbf16>, vector<32x96xbf16>, vector<8x96xf32> -> vector<8x96xf32>
    %254 = arith.addf %253, %10 : vector<8x96xf32>
    %255 = vector.extract_strided_slice %251 {offsets = [0, 0], sizes = [8, 32], strides = [1, 1]} : vector<8x96xf32> to vector<8x32xf32>
    %256 = vector.extract_strided_slice %254 {offsets = [0, 0], sizes = [8, 32], strides = [1, 1]} : vector<8x96xf32> to vector<8x32xf32>
    %257 = arith.addf %255, %256 : vector<8x32xf32>
    %258 = arith.negf %257 : vector<8x32xf32>
    %259 = math.exp %258 : vector<8x32xf32>
    %cst_58 = arith.constant 1.000000e+00 : f32
    %260 = vector.broadcast %cst_58 : f32 to vector<8x32xf32>
    %261 = arith.addf %260, %259 : vector<8x32xf32>
    %262 = arith.divf %260, %261 : vector<8x32xf32>
    %263 = vector.extract_strided_slice %251 {offsets = [0, 32], sizes = [8, 32], strides = [1, 1]} : vector<8x96xf32> to vector<8x32xf32>
    %264 = vector.extract_strided_slice %254 {offsets = [0, 32], sizes = [8, 32], strides = [1, 1]} : vector<8x96xf32> to vector<8x32xf32>
    %265 = arith.addf %263, %264 : vector<8x32xf32>
    %266 = arith.negf %265 : vector<8x32xf32>
    %267 = math.exp %266 : vector<8x32xf32>
    %cst_59 = arith.constant 1.000000e+00 : f32
    %268 = vector.broadcast %cst_59 : f32 to vector<8x32xf32>
    %269 = arith.addf %268, %267 : vector<8x32xf32>
    %270 = arith.divf %268, %269 : vector<8x32xf32>
    %271 = vector.extract_strided_slice %251 {offsets = [0, 64], sizes = [8, 32], strides = [1, 1]} : vector<8x96xf32> to vector<8x32xf32>
    %272 = vector.extract_strided_slice %254 {offsets = [0, 64], sizes = [8, 32], strides = [1, 1]} : vector<8x96xf32> to vector<8x32xf32>
    %273 = arith.mulf %262, %272 : vector<8x32xf32>
    %274 = arith.addf %271, %273 : vector<8x32xf32>
    %275 = math.tanh %274 : vector<8x32xf32>
    %cst_60 = arith.constant 1.000000e+00 : f32
    %276 = vector.broadcast %cst_60 : f32 to vector<8x32xf32>
    %277 = arith.subf %276, %270 : vector<8x32xf32>
    %278 = arith.mulf %277, %275 : vector<8x32xf32>
    %279 = arith.mulf %270, %212 : vector<8x32xf32>
    %280 = arith.addf %278, %279 : vector<8x32xf32>
    %281 = arith.truncf %280 : vector<8x32xf32> to vector<8x32xbf16>
    %c3_61 = arith.constant 3 : index
    %c8_62 = arith.constant 8 : index
    %c0_63 = arith.constant 0 : index
    %282 = vector.load %arg17[%c3_61, %c8_62, %c0_63] : memref<8x16x32xbf16, #tpu.memory_space<vmem>>, vector<1x8x32xbf16>
    %283 = vector.shape_cast %282 : vector<1x8x32xbf16> to vector<8x32xbf16>
    %284 = vector.shape_cast %281 : vector<8x32xbf16> to vector<1x8x32xbf16>
    tpu.vector_store %arg17[%c3_61, %c8_62, %c0_63], %284 {strides = array<i32>} : memref<8x16x32xbf16, #tpu.memory_space<vmem>>, vector<1x8x32xbf16>,
    %285 = vector.extract_strided_slice %8 {offsets = [64, 0], sizes = [8, 96], strides = [1, 1]} : vector<128x96xf32> to vector<8x96xf32>
    %286 = arith.truncf %246 : vector<8x32xf32> to vector<8x32xbf16>
    %cst_64 = arith.constant dense<0.000000e+00> : vector<8x96xf32>
    %287 = tpu.matmul %286, %1, %cst_64 {dimension_numbers = #tpu.dot_dimension_numbers<[1], [0], [0], [1], [0, 0, 1, 1], [], []>} : vector<8x32xbf16>, vector<32x96xbf16>, vector<8x96xf32> -> vector<8x96xf32>
    %288 = arith.addf %287, %10 : vector<8x96xf32>
    %289 = vector.extract_strided_slice %285 {offsets = [0, 0], sizes = [8, 32], strides = [1, 1]} : vector<8x96xf32> to vector<8x32xf32>
    %290 = vector.extract_strided_slice %288 {offsets = [0, 0], sizes = [8, 32], strides = [1, 1]} : vector<8x96xf32> to vector<8x32xf32>
    %291 = arith.addf %289, %290 : vector<8x32xf32>
    %292 = arith.negf %291 : vector<8x32xf32>
    %293 = math.exp %292 : vector<8x32xf32>
    %cst_65 = arith.constant 1.000000e+00 : f32
    %294 = vector.broadcast %cst_65 : f32 to vector<8x32xf32>
    %295 = arith.addf %294, %293 : vector<8x32xf32>
    %296 = arith.divf %294, %295 : vector<8x32xf32>
    %297 = vector.extract_strided_slice %285 {offsets = [0, 32], sizes = [8, 32], strides = [1, 1]} : vector<8x96xf32> to vector<8x32xf32>
    %298 = vector.extract_strided_slice %288 {offsets = [0, 32], sizes = [8, 32], strides = [1, 1]} : vector<8x96xf32> to vector<8x32xf32>
    %299 = arith.addf %297, %298 : vector<8x32xf32>
    %300 = arith.negf %299 : vector<8x32xf32>
    %301 = math.exp %300 : vector<8x32xf32>
    %cst_66 = arith.constant 1.000000e+00 : f32
    %302 = vector.broadcast %cst_66 : f32 to vector<8x32xf32>
    %303 = arith.addf %302, %301 : vector<8x32xf32>
    %304 = arith.divf %302, %303 : vector<8x32xf32>
    %305 = vector.extract_strided_slice %285 {offsets = [0, 64], sizes = [8, 32], strides = [1, 1]} : vector<8x96xf32> to vector<8x32xf32>
    %306 = vector.extract_strided_slice %288 {offsets = [0, 64], sizes = [8, 32], strides = [1, 1]} : vector<8x96xf32> to vector<8x32xf32>
    %307 = arith.mulf %296, %306 : vector<8x32xf32>
    %308 = arith.addf %305, %307 : vector<8x32xf32>
    %309 = math.tanh %308 : vector<8x32xf32>
    %cst_67 = arith.constant 1.000000e+00 : f32
    %310 = vector.broadcast %cst_67 : f32 to vector<8x32xf32>
    %311 = arith.subf %310, %304 : vector<8x32xf32>
    %312 = arith.mulf %311, %309 : vector<8x32xf32>
    %313 = arith.mulf %304, %246 : vector<8x32xf32>
    %314 = arith.addf %312, %313 : vector<8x32xf32>
    %315 = arith.truncf %314 : vector<8x32xf32> to vector<8x32xbf16>
    %c4 = arith.constant 4 : index
    %c0_68 = arith.constant 0 : index
    %c0_69 = arith.constant 0 : index
    %316 = vector.load %arg17[%c4, %c0_68, %c0_69] : memref<8x16x32xbf16, #tpu.memory_space<vmem>>, vector<1x8x32xbf16>
    %317 = vector.shape_cast %316 : vector<1x8x32xbf16> to vector<8x32xbf16>
    %318 = vector.shape_cast %315 : vector<8x32xbf16> to vector<1x8x32xbf16>
    tpu.vector_store %arg17[%c4, %c0_68, %c0_69], %318 {strides = array<i32>} : memref<8x16x32xbf16, #tpu.memory_space<vmem>>, vector<1x8x32xbf16>,
    %319 = vector.extract_strided_slice %8 {offsets = [72, 0], sizes = [8, 96], strides = [1, 1]} : vector<128x96xf32> to vector<8x96xf32>
    %320 = arith.truncf %280 : vector<8x32xf32> to vector<8x32xbf16>
    %cst_70 = arith.constant dense<0.000000e+00> : vector<8x96xf32>
    %321 = tpu.matmul %320, %1, %cst_70 {dimension_numbers = #tpu.dot_dimension_numbers<[1], [0], [0], [1], [0, 0, 1, 1], [], []>} : vector<8x32xbf16>, vector<32x96xbf16>, vector<8x96xf32> -> vector<8x96xf32>
    %322 = arith.addf %321, %10 : vector<8x96xf32>
    %323 = vector.extract_strided_slice %319 {offsets = [0, 0], sizes = [8, 32], strides = [1, 1]} : vector<8x96xf32> to vector<8x32xf32>
    %324 = vector.extract_strided_slice %322 {offsets = [0, 0], sizes = [8, 32], strides = [1, 1]} : vector<8x96xf32> to vector<8x32xf32>
    %325 = arith.addf %323, %324 : vector<8x32xf32>
    %326 = arith.negf %325 : vector<8x32xf32>
    %327 = math.exp %326 : vector<8x32xf32>
    %cst_71 = arith.constant 1.000000e+00 : f32
    %328 = vector.broadcast %cst_71 : f32 to vector<8x32xf32>
    %329 = arith.addf %328, %327 : vector<8x32xf32>
    %330 = arith.divf %328, %329 : vector<8x32xf32>
    %331 = vector.extract_strided_slice %319 {offsets = [0, 32], sizes = [8, 32], strides = [1, 1]} : vector<8x96xf32> to vector<8x32xf32>
    %332 = vector.extract_strided_slice %322 {offsets = [0, 32], sizes = [8, 32], strides = [1, 1]} : vector<8x96xf32> to vector<8x32xf32>
    %333 = arith.addf %331, %332 : vector<8x32xf32>
    %334 = arith.negf %333 : vector<8x32xf32>
    %335 = math.exp %334 : vector<8x32xf32>
    %cst_72 = arith.constant 1.000000e+00 : f32
    %336 = vector.broadcast %cst_72 : f32 to vector<8x32xf32>
    %337 = arith.addf %336, %335 : vector<8x32xf32>
    %338 = arith.divf %336, %337 : vector<8x32xf32>
    %339 = vector.extract_strided_slice %319 {offsets = [0, 64], sizes = [8, 32], strides = [1, 1]} : vector<8x96xf32> to vector<8x32xf32>
    %340 = vector.extract_strided_slice %322 {offsets = [0, 64], sizes = [8, 32], strides = [1, 1]} : vector<8x96xf32> to vector<8x32xf32>
    %341 = arith.mulf %330, %340 : vector<8x32xf32>
    %342 = arith.addf %339, %341 : vector<8x32xf32>
    %343 = math.tanh %342 : vector<8x32xf32>
    %cst_73 = arith.constant 1.000000e+00 : f32
    %344 = vector.broadcast %cst_73 : f32 to vector<8x32xf32>
    %345 = arith.subf %344, %338 : vector<8x32xf32>
    %346 = arith.mulf %345, %343 : vector<8x32xf32>
    %347 = arith.mulf %338, %280 : vector<8x32xf32>
    %348 = arith.addf %346, %347 : vector<8x32xf32>
    %349 = arith.truncf %348 : vector<8x32xf32> to vector<8x32xbf16>
    %c4_74 = arith.constant 4 : index
    %c8_75 = arith.constant 8 : index
    %c0_76 = arith.constant 0 : index
    %350 = vector.load %arg17[%c4_74, %c8_75, %c0_76] : memref<8x16x32xbf16, #tpu.memory_space<vmem>>, vector<1x8x32xbf16>
    %351 = vector.shape_cast %350 : vector<1x8x32xbf16> to vector<8x32xbf16>
    %352 = vector.shape_cast %349 : vector<8x32xbf16> to vector<1x8x32xbf16>
    tpu.vector_store %arg17[%c4_74, %c8_75, %c0_76], %352 {strides = array<i32>} : memref<8x16x32xbf16, #tpu.memory_space<vmem>>, vector<1x8x32xbf16>,
    %353 = vector.extract_strided_slice %8 {offsets = [80, 0], sizes = [8, 96], strides = [1, 1]} : vector<128x96xf32> to vector<8x96xf32>
    %354 = arith.truncf %314 : vector<8x32xf32> to vector<8x32xbf16>
    %cst_77 = arith.constant dense<0.000000e+00> : vector<8x96xf32>
    %355 = tpu.matmul %354, %1, %cst_77 {dimension_numbers = #tpu.dot_dimension_numbers<[1], [0], [0], [1], [0, 0, 1, 1], [], []>} : vector<8x32xbf16>, vector<32x96xbf16>, vector<8x96xf32> -> vector<8x96xf32>
    %356 = arith.addf %355, %10 : vector<8x96xf32>
    %357 = vector.extract_strided_slice %353 {offsets = [0, 0], sizes = [8, 32], strides = [1, 1]} : vector<8x96xf32> to vector<8x32xf32>
    %358 = vector.extract_strided_slice %356 {offsets = [0, 0], sizes = [8, 32], strides = [1, 1]} : vector<8x96xf32> to vector<8x32xf32>
    %359 = arith.addf %357, %358 : vector<8x32xf32>
    %360 = arith.negf %359 : vector<8x32xf32>
    %361 = math.exp %360 : vector<8x32xf32>
    %cst_78 = arith.constant 1.000000e+00 : f32
    %362 = vector.broadcast %cst_78 : f32 to vector<8x32xf32>
    %363 = arith.addf %362, %361 : vector<8x32xf32>
    %364 = arith.divf %362, %363 : vector<8x32xf32>
    %365 = vector.extract_strided_slice %353 {offsets = [0, 32], sizes = [8, 32], strides = [1, 1]} : vector<8x96xf32> to vector<8x32xf32>
    %366 = vector.extract_strided_slice %356 {offsets = [0, 32], sizes = [8, 32], strides = [1, 1]} : vector<8x96xf32> to vector<8x32xf32>
    %367 = arith.addf %365, %366 : vector<8x32xf32>
    %368 = arith.negf %367 : vector<8x32xf32>
    %369 = math.exp %368 : vector<8x32xf32>
    %cst_79 = arith.constant 1.000000e+00 : f32
    %370 = vector.broadcast %cst_79 : f32 to vector<8x32xf32>
    %371 = arith.addf %370, %369 : vector<8x32xf32>
    %372 = arith.divf %370, %371 : vector<8x32xf32>
    %373 = vector.extract_strided_slice %353 {offsets = [0, 64], sizes = [8, 32], strides = [1, 1]} : vector<8x96xf32> to vector<8x32xf32>
    %374 = vector.extract_strided_slice %356 {offsets = [0, 64], sizes = [8, 32], strides = [1, 1]} : vector<8x96xf32> to vector<8x32xf32>
    %375 = arith.mulf %364, %374 : vector<8x32xf32>
    %376 = arith.addf %373, %375 : vector<8x32xf32>
    %377 = math.tanh %376 : vector<8x32xf32>
    %cst_80 = arith.constant 1.000000e+00 : f32
    %378 = vector.broadcast %cst_80 : f32 to vector<8x32xf32>
    %379 = arith.subf %378, %372 : vector<8x32xf32>
    %380 = arith.mulf %379, %377 : vector<8x32xf32>
    %381 = arith.mulf %372, %314 : vector<8x32xf32>
    %382 = arith.addf %380, %381 : vector<8x32xf32>
    %383 = arith.truncf %382 : vector<8x32xf32> to vector<8x32xbf16>
    %c5 = arith.constant 5 : index
    %c0_81 = arith.constant 0 : index
    %c0_82 = arith.constant 0 : index
    %384 = vector.load %arg17[%c5, %c0_81, %c0_82] : memref<8x16x32xbf16, #tpu.memory_space<vmem>>, vector<1x8x32xbf16>
    %385 = vector.shape_cast %384 : vector<1x8x32xbf16> to vector<8x32xbf16>
    %386 = vector.shape_cast %383 : vector<8x32xbf16> to vector<1x8x32xbf16>
    tpu.vector_store %arg17[%c5, %c0_81, %c0_82], %386 {strides = array<i32>} : memref<8x16x32xbf16, #tpu.memory_space<vmem>>, vector<1x8x32xbf16>,
    %387 = vector.extract_strided_slice %8 {offsets = [88, 0], sizes = [8, 96], strides = [1, 1]} : vector<128x96xf32> to vector<8x96xf32>
    %388 = arith.truncf %348 : vector<8x32xf32> to vector<8x32xbf16>
    %cst_83 = arith.constant dense<0.000000e+00> : vector<8x96xf32>
    %389 = tpu.matmul %388, %1, %cst_83 {dimension_numbers = #tpu.dot_dimension_numbers<[1], [0], [0], [1], [0, 0, 1, 1], [], []>} : vector<8x32xbf16>, vector<32x96xbf16>, vector<8x96xf32> -> vector<8x96xf32>
    %390 = arith.addf %389, %10 : vector<8x96xf32>
    %391 = vector.extract_strided_slice %387 {offsets = [0, 0], sizes = [8, 32], strides = [1, 1]} : vector<8x96xf32> to vector<8x32xf32>
    %392 = vector.extract_strided_slice %390 {offsets = [0, 0], sizes = [8, 32], strides = [1, 1]} : vector<8x96xf32> to vector<8x32xf32>
    %393 = arith.addf %391, %392 : vector<8x32xf32>
    %394 = arith.negf %393 : vector<8x32xf32>
    %395 = math.exp %394 : vector<8x32xf32>
    %cst_84 = arith.constant 1.000000e+00 : f32
    %396 = vector.broadcast %cst_84 : f32 to vector<8x32xf32>
    %397 = arith.addf %396, %395 : vector<8x32xf32>
    %398 = arith.divf %396, %397 : vector<8x32xf32>
    %399 = vector.extract_strided_slice %387 {offsets = [0, 32], sizes = [8, 32], strides = [1, 1]} : vector<8x96xf32> to vector<8x32xf32>
    %400 = vector.extract_strided_slice %390 {offsets = [0, 32], sizes = [8, 32], strides = [1, 1]} : vector<8x96xf32> to vector<8x32xf32>
    %401 = arith.addf %399, %400 : vector<8x32xf32>
    %402 = arith.negf %401 : vector<8x32xf32>
    %403 = math.exp %402 : vector<8x32xf32>
    %cst_85 = arith.constant 1.000000e+00 : f32
    %404 = vector.broadcast %cst_85 : f32 to vector<8x32xf32>
    %405 = arith.addf %404, %403 : vector<8x32xf32>
    %406 = arith.divf %404, %405 : vector<8x32xf32>
    %407 = vector.extract_strided_slice %387 {offsets = [0, 64], sizes = [8, 32], strides = [1, 1]} : vector<8x96xf32> to vector<8x32xf32>
    %408 = vector.extract_strided_slice %390 {offsets = [0, 64], sizes = [8, 32], strides = [1, 1]} : vector<8x96xf32> to vector<8x32xf32>
    %409 = arith.mulf %398, %408 : vector<8x32xf32>
    %410 = arith.addf %407, %409 : vector<8x32xf32>
    %411 = math.tanh %410 : vector<8x32xf32>
    %cst_86 = arith.constant 1.000000e+00 : f32
    %412 = vector.broadcast %cst_86 : f32 to vector<8x32xf32>
    %413 = arith.subf %412, %406 : vector<8x32xf32>
    %414 = arith.mulf %413, %411 : vector<8x32xf32>
    %415 = arith.mulf %406, %348 : vector<8x32xf32>
    %416 = arith.addf %414, %415 : vector<8x32xf32>
    %417 = arith.truncf %416 : vector<8x32xf32> to vector<8x32xbf16>
    %c5_87 = arith.constant 5 : index
    %c8_88 = arith.constant 8 : index
    %c0_89 = arith.constant 0 : index
    %418 = vector.load %arg17[%c5_87, %c8_88, %c0_89] : memref<8x16x32xbf16, #tpu.memory_space<vmem>>, vector<1x8x32xbf16>
    %419 = vector.shape_cast %418 : vector<1x8x32xbf16> to vector<8x32xbf16>
    %420 = vector.shape_cast %417 : vector<8x32xbf16> to vector<1x8x32xbf16>
    tpu.vector_store %arg17[%c5_87, %c8_88, %c0_89], %420 {strides = array<i32>} : memref<8x16x32xbf16, #tpu.memory_space<vmem>>, vector<1x8x32xbf16>,
    %421 = vector.extract_strided_slice %8 {offsets = [96, 0], sizes = [8, 96], strides = [1, 1]} : vector<128x96xf32> to vector<8x96xf32>
    %422 = arith.truncf %382 : vector<8x32xf32> to vector<8x32xbf16>
    %cst_90 = arith.constant dense<0.000000e+00> : vector<8x96xf32>
    %423 = tpu.matmul %422, %1, %cst_90 {dimension_numbers = #tpu.dot_dimension_numbers<[1], [0], [0], [1], [0, 0, 1, 1], [], []>} : vector<8x32xbf16>, vector<32x96xbf16>, vector<8x96xf32> -> vector<8x96xf32>
    %424 = arith.addf %423, %10 : vector<8x96xf32>
    %425 = vector.extract_strided_slice %421 {offsets = [0, 0], sizes = [8, 32], strides = [1, 1]} : vector<8x96xf32> to vector<8x32xf32>
    %426 = vector.extract_strided_slice %424 {offsets = [0, 0], sizes = [8, 32], strides = [1, 1]} : vector<8x96xf32> to vector<8x32xf32>
    %427 = arith.addf %425, %426 : vector<8x32xf32>
    %428 = arith.negf %427 : vector<8x32xf32>
    %429 = math.exp %428 : vector<8x32xf32>
    %cst_91 = arith.constant 1.000000e+00 : f32
    %430 = vector.broadcast %cst_91 : f32 to vector<8x32xf32>
    %431 = arith.addf %430, %429 : vector<8x32xf32>
    %432 = arith.divf %430, %431 : vector<8x32xf32>
    %433 = vector.extract_strided_slice %421 {offsets = [0, 32], sizes = [8, 32], strides = [1, 1]} : vector<8x96xf32> to vector<8x32xf32>
    %434 = vector.extract_strided_slice %424 {offsets = [0, 32], sizes = [8, 32], strides = [1, 1]} : vector<8x96xf32> to vector<8x32xf32>
    %435 = arith.addf %433, %434 : vector<8x32xf32>
    %436 = arith.negf %435 : vector<8x32xf32>
    %437 = math.exp %436 : vector<8x32xf32>
    %cst_92 = arith.constant 1.000000e+00 : f32
    %438 = vector.broadcast %cst_92 : f32 to vector<8x32xf32>
    %439 = arith.addf %438, %437 : vector<8x32xf32>
    %440 = arith.divf %438, %439 : vector<8x32xf32>
    %441 = vector.extract_strided_slice %421 {offsets = [0, 64], sizes = [8, 32], strides = [1, 1]} : vector<8x96xf32> to vector<8x32xf32>
    %442 = vector.extract_strided_slice %424 {offsets = [0, 64], sizes = [8, 32], strides = [1, 1]} : vector<8x96xf32> to vector<8x32xf32>
    %443 = arith.mulf %432, %442 : vector<8x32xf32>
    %444 = arith.addf %441, %443 : vector<8x32xf32>
    %445 = math.tanh %444 : vector<8x32xf32>
    %cst_93 = arith.constant 1.000000e+00 : f32
    %446 = vector.broadcast %cst_93 : f32 to vector<8x32xf32>
    %447 = arith.subf %446, %440 : vector<8x32xf32>
    %448 = arith.mulf %447, %445 : vector<8x32xf32>
    %449 = arith.mulf %440, %382 : vector<8x32xf32>
    %450 = arith.addf %448, %449 : vector<8x32xf32>
    %451 = arith.truncf %450 : vector<8x32xf32> to vector<8x32xbf16>
    %c6 = arith.constant 6 : index
    %c0_94 = arith.constant 0 : index
    %c0_95 = arith.constant 0 : index
    %452 = vector.load %arg17[%c6, %c0_94, %c0_95] : memref<8x16x32xbf16, #tpu.memory_space<vmem>>, vector<1x8x32xbf16>
    %453 = vector.shape_cast %452 : vector<1x8x32xbf16> to vector<8x32xbf16>
    %454 = vector.shape_cast %451 : vector<8x32xbf16> to vector<1x8x32xbf16>
    tpu.vector_store %arg17[%c6, %c0_94, %c0_95], %454 {strides = array<i32>} : memref<8x16x32xbf16, #tpu.memory_space<vmem>>, vector<1x8x32xbf16>,
    %455 = vector.extract_strided_slice %8 {offsets = [104, 0], sizes = [8, 96], strides = [1, 1]} : vector<128x96xf32> to vector<8x96xf32>
    %456 = arith.truncf %416 : vector<8x32xf32> to vector<8x32xbf16>
    %cst_96 = arith.constant dense<0.000000e+00> : vector<8x96xf32>
    %457 = tpu.matmul %456, %1, %cst_96 {dimension_numbers = #tpu.dot_dimension_numbers<[1], [0], [0], [1], [0, 0, 1, 1], [], []>} : vector<8x32xbf16>, vector<32x96xbf16>, vector<8x96xf32> -> vector<8x96xf32>
    %458 = arith.addf %457, %10 : vector<8x96xf32>
    %459 = vector.extract_strided_slice %455 {offsets = [0, 0], sizes = [8, 32], strides = [1, 1]} : vector<8x96xf32> to vector<8x32xf32>
    %460 = vector.extract_strided_slice %458 {offsets = [0, 0], sizes = [8, 32], strides = [1, 1]} : vector<8x96xf32> to vector<8x32xf32>
    %461 = arith.addf %459, %460 : vector<8x32xf32>
    %462 = arith.negf %461 : vector<8x32xf32>
    %463 = math.exp %462 : vector<8x32xf32>
    %cst_97 = arith.constant 1.000000e+00 : f32
    %464 = vector.broadcast %cst_97 : f32 to vector<8x32xf32>
    %465 = arith.addf %464, %463 : vector<8x32xf32>
    %466 = arith.divf %464, %465 : vector<8x32xf32>
    %467 = vector.extract_strided_slice %455 {offsets = [0, 32], sizes = [8, 32], strides = [1, 1]} : vector<8x96xf32> to vector<8x32xf32>
    %468 = vector.extract_strided_slice %458 {offsets = [0, 32], sizes = [8, 32], strides = [1, 1]} : vector<8x96xf32> to vector<8x32xf32>
    %469 = arith.addf %467, %468 : vector<8x32xf32>
    %470 = arith.negf %469 : vector<8x32xf32>
    %471 = math.exp %470 : vector<8x32xf32>
    %cst_98 = arith.constant 1.000000e+00 : f32
    %472 = vector.broadcast %cst_98 : f32 to vector<8x32xf32>
    %473 = arith.addf %472, %471 : vector<8x32xf32>
    %474 = arith.divf %472, %473 : vector<8x32xf32>
    %475 = vector.extract_strided_slice %455 {offsets = [0, 64], sizes = [8, 32], strides = [1, 1]} : vector<8x96xf32> to vector<8x32xf32>
    %476 = vector.extract_strided_slice %458 {offsets = [0, 64], sizes = [8, 32], strides = [1, 1]} : vector<8x96xf32> to vector<8x32xf32>
    %477 = arith.mulf %466, %476 : vector<8x32xf32>
    %478 = arith.addf %475, %477 : vector<8x32xf32>
    %479 = math.tanh %478 : vector<8x32xf32>
    %cst_99 = arith.constant 1.000000e+00 : f32
    %480 = vector.broadcast %cst_99 : f32 to vector<8x32xf32>
    %481 = arith.subf %480, %474 : vector<8x32xf32>
    %482 = arith.mulf %481, %479 : vector<8x32xf32>
    %483 = arith.mulf %474, %416 : vector<8x32xf32>
    %484 = arith.addf %482, %483 : vector<8x32xf32>
    %485 = arith.truncf %484 : vector<8x32xf32> to vector<8x32xbf16>
    %c6_100 = arith.constant 6 : index
    %c8_101 = arith.constant 8 : index
    %c0_102 = arith.constant 0 : index
    %486 = vector.load %arg17[%c6_100, %c8_101, %c0_102] : memref<8x16x32xbf16, #tpu.memory_space<vmem>>, vector<1x8x32xbf16>
    %487 = vector.shape_cast %486 : vector<1x8x32xbf16> to vector<8x32xbf16>
    %488 = vector.shape_cast %485 : vector<8x32xbf16> to vector<1x8x32xbf16>
    tpu.vector_store %arg17[%c6_100, %c8_101, %c0_102], %488 {strides = array<i32>} : memref<8x16x32xbf16, #tpu.memory_space<vmem>>, vector<1x8x32xbf16>,
    %489 = vector.extract_strided_slice %8 {offsets = [112, 0], sizes = [8, 96], strides = [1, 1]} : vector<128x96xf32> to vector<8x96xf32>
    %490 = arith.truncf %450 : vector<8x32xf32> to vector<8x32xbf16>
    %cst_103 = arith.constant dense<0.000000e+00> : vector<8x96xf32>
    %491 = tpu.matmul %490, %1, %cst_103 {dimension_numbers = #tpu.dot_dimension_numbers<[1], [0], [0], [1], [0, 0, 1, 1], [], []>} : vector<8x32xbf16>, vector<32x96xbf16>, vector<8x96xf32> -> vector<8x96xf32>
    %492 = arith.addf %491, %10 : vector<8x96xf32>
    %493 = vector.extract_strided_slice %489 {offsets = [0, 0], sizes = [8, 32], strides = [1, 1]} : vector<8x96xf32> to vector<8x32xf32>
    %494 = vector.extract_strided_slice %492 {offsets = [0, 0], sizes = [8, 32], strides = [1, 1]} : vector<8x96xf32> to vector<8x32xf32>
    %495 = arith.addf %493, %494 : vector<8x32xf32>
    %496 = arith.negf %495 : vector<8x32xf32>
    %497 = math.exp %496 : vector<8x32xf32>
    %cst_104 = arith.constant 1.000000e+00 : f32
    %498 = vector.broadcast %cst_104 : f32 to vector<8x32xf32>
    %499 = arith.addf %498, %497 : vector<8x32xf32>
    %500 = arith.divf %498, %499 : vector<8x32xf32>
    %501 = vector.extract_strided_slice %489 {offsets = [0, 32], sizes = [8, 32], strides = [1, 1]} : vector<8x96xf32> to vector<8x32xf32>
    %502 = vector.extract_strided_slice %492 {offsets = [0, 32], sizes = [8, 32], strides = [1, 1]} : vector<8x96xf32> to vector<8x32xf32>
    %503 = arith.addf %501, %502 : vector<8x32xf32>
    %504 = arith.negf %503 : vector<8x32xf32>
    %505 = math.exp %504 : vector<8x32xf32>
    %cst_105 = arith.constant 1.000000e+00 : f32
    %506 = vector.broadcast %cst_105 : f32 to vector<8x32xf32>
    %507 = arith.addf %506, %505 : vector<8x32xf32>
    %508 = arith.divf %506, %507 : vector<8x32xf32>
    %509 = vector.extract_strided_slice %489 {offsets = [0, 64], sizes = [8, 32], strides = [1, 1]} : vector<8x96xf32> to vector<8x32xf32>
    %510 = vector.extract_strided_slice %492 {offsets = [0, 64], sizes = [8, 32], strides = [1, 1]} : vector<8x96xf32> to vector<8x32xf32>
    %511 = arith.mulf %500, %510 : vector<8x32xf32>
    %512 = arith.addf %509, %511 : vector<8x32xf32>
    %513 = math.tanh %512 : vector<8x32xf32>
    %cst_106 = arith.constant 1.000000e+00 : f32
    %514 = vector.broadcast %cst_106 : f32 to vector<8x32xf32>
    %515 = arith.subf %514, %508 : vector<8x32xf32>
    %516 = arith.mulf %515, %513 : vector<8x32xf32>
    %517 = arith.mulf %508, %450 : vector<8x32xf32>
    %518 = arith.addf %516, %517 : vector<8x32xf32>
    %519 = arith.truncf %518 : vector<8x32xf32> to vector<8x32xbf16>
    %c7 = arith.constant 7 : index
    %c0_107 = arith.constant 0 : index
    %c0_108 = arith.constant 0 : index
    %520 = vector.load %arg17[%c7, %c0_107, %c0_108] : memref<8x16x32xbf16, #tpu.memory_space<vmem>>, vector<1x8x32xbf16>
    %521 = vector.shape_cast %520 : vector<1x8x32xbf16> to vector<8x32xbf16>
    %522 = vector.shape_cast %519 : vector<8x32xbf16> to vector<1x8x32xbf16>
    tpu.vector_store %arg17[%c7, %c0_107, %c0_108], %522 {strides = array<i32>} : memref<8x16x32xbf16, #tpu.memory_space<vmem>>, vector<1x8x32xbf16>,
    %523 = vector.extract_strided_slice %8 {offsets = [120, 0], sizes = [8, 96], strides = [1, 1]} : vector<128x96xf32> to vector<8x96xf32>
    %524 = arith.truncf %484 : vector<8x32xf32> to vector<8x32xbf16>
    %cst_109 = arith.constant dense<0.000000e+00> : vector<8x96xf32>
    %525 = tpu.matmul %524, %1, %cst_109 {dimension_numbers = #tpu.dot_dimension_numbers<[1], [0], [0], [1], [0, 0, 1, 1], [], []>} : vector<8x32xbf16>, vector<32x96xbf16>, vector<8x96xf32> -> vector<8x96xf32>
    %526 = arith.addf %525, %10 : vector<8x96xf32>
    %527 = vector.extract_strided_slice %523 {offsets = [0, 0], sizes = [8, 32], strides = [1, 1]} : vector<8x96xf32> to vector<8x32xf32>
    %528 = vector.extract_strided_slice %526 {offsets = [0, 0], sizes = [8, 32], strides = [1, 1]} : vector<8x96xf32> to vector<8x32xf32>
    %529 = arith.addf %527, %528 : vector<8x32xf32>
    %530 = arith.negf %529 : vector<8x32xf32>
    %531 = math.exp %530 : vector<8x32xf32>
    %cst_110 = arith.constant 1.000000e+00 : f32
    %532 = vector.broadcast %cst_110 : f32 to vector<8x32xf32>
    %533 = arith.addf %532, %531 : vector<8x32xf32>
    %534 = arith.divf %532, %533 : vector<8x32xf32>
    %535 = vector.extract_strided_slice %523 {offsets = [0, 32], sizes = [8, 32], strides = [1, 1]} : vector<8x96xf32> to vector<8x32xf32>
    %536 = vector.extract_strided_slice %526 {offsets = [0, 32], sizes = [8, 32], strides = [1, 1]} : vector<8x96xf32> to vector<8x32xf32>
    %537 = arith.addf %535, %536 : vector<8x32xf32>
    %538 = arith.negf %537 : vector<8x32xf32>
    %539 = math.exp %538 : vector<8x32xf32>
    %cst_111 = arith.constant 1.000000e+00 : f32
    %540 = vector.broadcast %cst_111 : f32 to vector<8x32xf32>
    %541 = arith.addf %540, %539 : vector<8x32xf32>
    %542 = arith.divf %540, %541 : vector<8x32xf32>
    %543 = vector.extract_strided_slice %523 {offsets = [0, 64], sizes = [8, 32], strides = [1, 1]} : vector<8x96xf32> to vector<8x32xf32>
    %544 = vector.extract_strided_slice %526 {offsets = [0, 64], sizes = [8, 32], strides = [1, 1]} : vector<8x96xf32> to vector<8x32xf32>
    %545 = arith.mulf %534, %544 : vector<8x32xf32>
    %546 = arith.addf %543, %545 : vector<8x32xf32>
    %547 = math.tanh %546 : vector<8x32xf32>
    %cst_112 = arith.constant 1.000000e+00 : f32
    %548 = vector.broadcast %cst_112 : f32 to vector<8x32xf32>
    %549 = arith.subf %548, %542 : vector<8x32xf32>
    %550 = arith.mulf %549, %547 : vector<8x32xf32>
    %551 = arith.mulf %542, %484 : vector<8x32xf32>
    %552 = arith.addf %550, %551 : vector<8x32xf32>
    %553 = arith.truncf %552 : vector<8x32xf32> to vector<8x32xbf16>
    %c7_113 = arith.constant 7 : index
    %c8_114 = arith.constant 8 : index
    %c0_115 = arith.constant 0 : index
    %554 = vector.load %arg17[%c7_113, %c8_114, %c0_115] : memref<8x16x32xbf16, #tpu.memory_space<vmem>>, vector<1x8x32xbf16>
    %555 = vector.shape_cast %554 : vector<1x8x32xbf16> to vector<8x32xbf16>
    %556 = vector.shape_cast %553 : vector<8x32xbf16> to vector<1x8x32xbf16>
    tpu.vector_store %arg17[%c7_113, %c8_114, %c0_115], %556 {strides = array<i32>} : memref<8x16x32xbf16, #tpu.memory_space<vmem>>, vector<1x8x32xbf16>,
    %c0_116 = arith.constant 0 : index
    %c0_117 = arith.constant 0 : index
    %c0_118 = arith.constant 0 : index
    %557 = vector.load %arg17[%c0_116, %c0_117, %c0_118] : memref<8x16x32xbf16, #tpu.memory_space<vmem>>, vector<8x16x32xbf16>
    %558 = vector.shape_cast %557 : vector<8x16x32xbf16> to vector<128x32xbf16>
    %c0_119 = arith.constant 0 : index
    %c0_120 = arith.constant 0 : index
    %559 = vector.load %arg7[%c0_119, %c0_120] : memref<32x16xbf16, #tpu.memory_space<vmem>>, vector<32x16xbf16>
    %cst_121 = arith.constant dense<0.000000e+00> : vector<128x16xf32>
    %560 = tpu.matmul %558, %559, %cst_121 {dimension_numbers = #tpu.dot_dimension_numbers<[1], [0], [0], [1], [0, 0, 1, 1], [], []>} : vector<128x32xbf16>, vector<32x16xbf16>, vector<128x16xf32> -> vector<128x16xf32>
    %c0_122 = arith.constant 0 : index
    %c0_123 = arith.constant 0 : index
    %561 = vector.load %arg8[%c0_122, %c0_123] : memref<1x16xf32, #tpu.memory_space<vmem>>, vector<1x16xf32>
    %562 = vector.broadcast %561 : vector<1x16xf32> to vector<128x16xf32>
    %563 = arith.addf %560, %562 : vector<128x16xf32>
    %cst_124 = arith.constant 0.000000e+00 : f32
    %564 = vector.broadcast %cst_124 : f32 to vector<128x16xf32>
    %565 = arith.maximumf %563, %564 : vector<128x16xf32>
    %c0_125 = arith.constant 0 : index
    %c0_126 = arith.constant 0 : index
    %566 = vector.load %arg9[%c0_125, %c0_126] : memref<1x16xf32, #tpu.memory_space<vmem>>, vector<1x16xf32>
    %567 = vector.broadcast %566 : vector<1x16xf32> to vector<128x16xf32>
    %568 = arith.mulf %565, %567 : vector<128x16xf32>
    %cst_127 = arith.constant dense<0.000000e+00> : vector<128xf32>
    %569 = vector.multi_reduction <add>, %568, %cst_127 [1] : vector<128x16xf32> to vector<128xf32>
    %570 = vector.shape_cast %569 : vector<128xf32> to vector<128x1xf32>
    %c0_128 = arith.constant 0 : index
    %c0_129 = arith.constant 0 : index
    %571 = vector.load %arg10[%c0_128, %c0_129] : memref<1x1xf32, #tpu.memory_space<vmem>>, vector<1x1xf32>
    %572 = vector.broadcast %571 : vector<1x1xf32> to vector<128x1xf32>
    %573 = arith.addf %570, %572 : vector<128x1xf32>
    %574 = vector.extract_strided_slice %573 {offsets = [0, 0], sizes = [16, 1], strides = [1, 1]} : vector<128x1xf32> to vector<16x1xf32>
    %575 = vector.extract_strided_slice %573 {offsets = [16, 0], sizes = [16, 1], strides = [1, 1]} : vector<128x1xf32> to vector<16x1xf32>
    %576 = vector.extract_strided_slice %573 {offsets = [32, 0], sizes = [16, 1], strides = [1, 1]} : vector<128x1xf32> to vector<16x1xf32>
    %577 = vector.extract_strided_slice %573 {offsets = [48, 0], sizes = [16, 1], strides = [1, 1]} : vector<128x1xf32> to vector<16x1xf32>
    %578 = vector.extract_strided_slice %573 {offsets = [64, 0], sizes = [16, 1], strides = [1, 1]} : vector<128x1xf32> to vector<16x1xf32>
    %579 = vector.extract_strided_slice %573 {offsets = [80, 0], sizes = [16, 1], strides = [1, 1]} : vector<128x1xf32> to vector<16x1xf32>
    %580 = vector.extract_strided_slice %573 {offsets = [96, 0], sizes = [16, 1], strides = [1, 1]} : vector<128x1xf32> to vector<16x1xf32>
    %581 = vector.extract_strided_slice %573 {offsets = [112, 0], sizes = [16, 1], strides = [1, 1]} : vector<128x1xf32> to vector<16x1xf32>
    %582 = arith.maximumf %574, %575 : vector<16x1xf32>
    %583 = arith.maximumf %582, %576 : vector<16x1xf32>
    %584 = arith.maximumf %583, %577 : vector<16x1xf32>
    %585 = arith.maximumf %584, %578 : vector<16x1xf32>
    %586 = arith.maximumf %585, %579 : vector<16x1xf32>
    %587 = arith.maximumf %586, %580 : vector<16x1xf32>
    %588 = arith.maximumf %587, %581 : vector<16x1xf32>
    %cst_130 = arith.constant 0.000000e+00 : f32
    %589 = vector.broadcast %cst_130 : f32 to vector<16x32xf32>
    %cst_131 = arith.constant 0.000000e+00 : f32
    %590 = vector.broadcast %cst_131 : f32 to vector<16x1xf32>
    %591 = arith.subf %574, %588 : vector<16x1xf32>
    %592 = math.exp %591 : vector<16x1xf32>
    %593 = arith.addf %590, %592 : vector<16x1xf32>
    %c0_132 = arith.constant 0 : index
    %c0_133 = arith.constant 0 : index
    %c0_134 = arith.constant 0 : index
    %594 = vector.load %arg17[%c0_132, %c0_133, %c0_134] : memref<8x16x32xbf16, #tpu.memory_space<vmem>>, vector<1x16x32xbf16>
    %595 = vector.shape_cast %594 : vector<1x16x32xbf16> to vector<16x32xbf16>
    %596 = arith.extf %595 : vector<16x32xbf16> to vector<16x32xf32>
    %597 = vector.broadcast %592 : vector<16x1xf32> to vector<16x32xf32>
    %598 = arith.mulf %596, %597 : vector<16x32xf32>
    %599 = arith.addf %589, %598 : vector<16x32xf32>
    %600 = arith.subf %575, %588 : vector<16x1xf32>
    %601 = math.exp %600 : vector<16x1xf32>
    %602 = arith.addf %593, %601 : vector<16x1xf32>
    %c1_135 = arith.constant 1 : index
    %c0_136 = arith.constant 0 : index
    %c0_137 = arith.constant 0 : index
    %603 = vector.load %arg17[%c1_135, %c0_136, %c0_137] : memref<8x16x32xbf16, #tpu.memory_space<vmem>>, vector<1x16x32xbf16>
    %604 = vector.shape_cast %603 : vector<1x16x32xbf16> to vector<16x32xbf16>
    %605 = arith.extf %604 : vector<16x32xbf16> to vector<16x32xf32>
    %606 = vector.broadcast %601 : vector<16x1xf32> to vector<16x32xf32>
    %607 = arith.mulf %605, %606 : vector<16x32xf32>
    %608 = arith.addf %599, %607 : vector<16x32xf32>
    %609 = arith.subf %576, %588 : vector<16x1xf32>
    %610 = math.exp %609 : vector<16x1xf32>
    %611 = arith.addf %602, %610 : vector<16x1xf32>
    %c2_138 = arith.constant 2 : index
    %c0_139 = arith.constant 0 : index
    %c0_140 = arith.constant 0 : index
    %612 = vector.load %arg17[%c2_138, %c0_139, %c0_140] : memref<8x16x32xbf16, #tpu.memory_space<vmem>>, vector<1x16x32xbf16>
    %613 = vector.shape_cast %612 : vector<1x16x32xbf16> to vector<16x32xbf16>
    %614 = arith.extf %613 : vector<16x32xbf16> to vector<16x32xf32>
    %615 = vector.broadcast %610 : vector<16x1xf32> to vector<16x32xf32>
    %616 = arith.mulf %614, %615 : vector<16x32xf32>
    %617 = arith.addf %608, %616 : vector<16x32xf32>
    %618 = arith.subf %577, %588 : vector<16x1xf32>
    %619 = math.exp %618 : vector<16x1xf32>
    %620 = arith.addf %611, %619 : vector<16x1xf32>
    %c3_141 = arith.constant 3 : index
    %c0_142 = arith.constant 0 : index
    %c0_143 = arith.constant 0 : index
    %621 = vector.load %arg17[%c3_141, %c0_142, %c0_143] : memref<8x16x32xbf16, #tpu.memory_space<vmem>>, vector<1x16x32xbf16>
    %622 = vector.shape_cast %621 : vector<1x16x32xbf16> to vector<16x32xbf16>
    %623 = arith.extf %622 : vector<16x32xbf16> to vector<16x32xf32>
    %624 = vector.broadcast %619 : vector<16x1xf32> to vector<16x32xf32>
    %625 = arith.mulf %623, %624 : vector<16x32xf32>
    %626 = arith.addf %617, %625 : vector<16x32xf32>
    %627 = arith.subf %578, %588 : vector<16x1xf32>
    %628 = math.exp %627 : vector<16x1xf32>
    %629 = arith.addf %620, %628 : vector<16x1xf32>
    %c4_144 = arith.constant 4 : index
    %c0_145 = arith.constant 0 : index
    %c0_146 = arith.constant 0 : index
    %630 = vector.load %arg17[%c4_144, %c0_145, %c0_146] : memref<8x16x32xbf16, #tpu.memory_space<vmem>>, vector<1x16x32xbf16>
    %631 = vector.shape_cast %630 : vector<1x16x32xbf16> to vector<16x32xbf16>
    %632 = arith.extf %631 : vector<16x32xbf16> to vector<16x32xf32>
    %633 = vector.broadcast %628 : vector<16x1xf32> to vector<16x32xf32>
    %634 = arith.mulf %632, %633 : vector<16x32xf32>
    %635 = arith.addf %626, %634 : vector<16x32xf32>
    %636 = arith.subf %579, %588 : vector<16x1xf32>
    %637 = math.exp %636 : vector<16x1xf32>
    %638 = arith.addf %629, %637 : vector<16x1xf32>
    %c5_147 = arith.constant 5 : index
    %c0_148 = arith.constant 0 : index
    %c0_149 = arith.constant 0 : index
    %639 = vector.load %arg17[%c5_147, %c0_148, %c0_149] : memref<8x16x32xbf16, #tpu.memory_space<vmem>>, vector<1x16x32xbf16>
    %640 = vector.shape_cast %639 : vector<1x16x32xbf16> to vector<16x32xbf16>
    %641 = arith.extf %640 : vector<16x32xbf16> to vector<16x32xf32>
    %642 = vector.broadcast %637 : vector<16x1xf32> to vector<16x32xf32>
    %643 = arith.mulf %641, %642 : vector<16x32xf32>
    %644 = arith.addf %635, %643 : vector<16x32xf32>
    %645 = arith.subf %580, %588 : vector<16x1xf32>
    %646 = math.exp %645 : vector<16x1xf32>
    %647 = arith.addf %638, %646 : vector<16x1xf32>
    %c6_150 = arith.constant 6 : index
    %c0_151 = arith.constant 0 : index
    %c0_152 = arith.constant 0 : index
    %648 = vector.load %arg17[%c6_150, %c0_151, %c0_152] : memref<8x16x32xbf16, #tpu.memory_space<vmem>>, vector<1x16x32xbf16>
    %649 = vector.shape_cast %648 : vector<1x16x32xbf16> to vector<16x32xbf16>
    %650 = arith.extf %649 : vector<16x32xbf16> to vector<16x32xf32>
    %651 = vector.broadcast %646 : vector<16x1xf32> to vector<16x32xf32>
    %652 = arith.mulf %650, %651 : vector<16x32xf32>
    %653 = arith.addf %644, %652 : vector<16x32xf32>
    %654 = arith.subf %581, %588 : vector<16x1xf32>
    %655 = math.exp %654 : vector<16x1xf32>
    %656 = arith.addf %647, %655 : vector<16x1xf32>
    %c7_153 = arith.constant 7 : index
    %c0_154 = arith.constant 0 : index
    %c0_155 = arith.constant 0 : index
    %657 = vector.load %arg17[%c7_153, %c0_154, %c0_155] : memref<8x16x32xbf16, #tpu.memory_space<vmem>>, vector<1x16x32xbf16>
    %658 = vector.shape_cast %657 : vector<1x16x32xbf16> to vector<16x32xbf16>
    %659 = arith.extf %658 : vector<16x32xbf16> to vector<16x32xf32>
    %660 = vector.broadcast %655 : vector<16x1xf32> to vector<16x32xf32>
    %661 = arith.mulf %659, %660 : vector<16x32xf32>
    %662 = arith.addf %653, %661 : vector<16x32xf32>
    %cst_156 = arith.constant 1.000000e+00 : f32
    %663 = vector.broadcast %cst_156 : f32 to vector<16x1xf32>
    %664 = arith.divf %663, %656 : vector<16x1xf32>
    %665 = vector.broadcast %664 : vector<16x1xf32> to vector<16x32xf32>
    %666 = arith.mulf %662, %665 : vector<16x32xf32>
    %c0_157 = arith.constant 0 : index
    %c0_158 = arith.constant 0 : index
    %667 = vector.load %arg11[%c0_157, %c0_158] : memref<32x32xbf16, #tpu.memory_space<vmem>>, vector<32x32xbf16>
    %c0_159 = arith.constant 0 : index
    %c0_160 = arith.constant 0 : index
    %668 = vector.load %arg13[%c0_159, %c0_160] : memref<32x16xbf16, #tpu.memory_space<vmem>>, vector<32x16xbf16>
    %669 = arith.truncf %666 : vector<16x32xf32> to vector<16x32xbf16>
    %cst_161 = arith.constant dense<0.000000e+00> : vector<16x32xf32>
    %670 = tpu.matmul %669, %667, %cst_161 {dimension_numbers = #tpu.dot_dimension_numbers<[1], [0], [0], [1], [0, 0, 1, 1], [], []>} : vector<16x32xbf16>, vector<32x32xbf16>, vector<16x32xf32> -> vector<16x32xf32>
    %c0_162 = arith.constant 0 : index
    %c0_163 = arith.constant 0 : index
    %671 = vector.load %arg12[%c0_162, %c0_163] : memref<1x32xf32, #tpu.memory_space<vmem>>, vector<1x32xf32>
    %672 = vector.broadcast %671 : vector<1x32xf32> to vector<16x32xf32>
    %673 = arith.addf %670, %672 : vector<16x32xf32>
    %cst_164 = arith.constant 0.000000e+00 : f32
    %674 = vector.broadcast %cst_164 : f32 to vector<16x32xf32>
    %675 = arith.maximumf %673, %674 : vector<16x32xf32>
    %676 = arith.truncf %675 : vector<16x32xf32> to vector<16x32xbf16>
    %cst_165 = arith.constant dense<0.000000e+00> : vector<16x16xf32>
    %677 = tpu.matmul %676, %668, %cst_165 {dimension_numbers = #tpu.dot_dimension_numbers<[1], [0], [0], [1], [0, 0, 1, 1], [], []>} : vector<16x32xbf16>, vector<32x16xbf16>, vector<16x16xf32> -> vector<16x16xf32>
    %c0_166 = arith.constant 0 : index
    %c0_167 = arith.constant 0 : index
    %678 = vector.load %arg14[%c0_166, %c0_167] : memref<1x16xf32, #tpu.memory_space<vmem>>, vector<1x16xf32>
    %679 = vector.broadcast %678 : vector<1x16xf32> to vector<16x16xf32>
    %680 = arith.addf %677, %679 : vector<16x16xf32>
    %c0_168 = arith.constant 0 : index
    %c0_169 = arith.constant 0 : index
    %681 = vector.load %arg15[%c0_168, %c0_169] : memref<1x16xf32, #tpu.memory_space<vmem>>, vector<1x16xf32>
    %cst_170 = arith.constant 0.000000e+00 : f32
    %682 = vector.broadcast %cst_170 : f32 to vector<1x16xf32>
    %683 = arith.cmpf ogt, %681, %682 : vector<1x16xf32>
    %c0_171 = arith.constant 0 : index
    %c0_172 = arith.constant 0 : index
    %684 = vector.load %arg2[%c0_171, %c0_172] : memref<16x16xf32, #tpu.memory_space<vmem>>, vector<16x16xf32>
    %685 = vector.shape_cast %683 : vector<1x16xi1> to vector<1x16xi1>
    %686 = vector.broadcast %685 : vector<1x16xi1> to vector<16x16xi1>
    %687 = arith.select %686, %680, %684 : vector<16x16xi1>, vector<16x16xf32>
    %c0_173 = arith.constant 0 : index
    %c0_174 = arith.constant 0 : index
    %688 = vector.load %arg16[%c0_173, %c0_174] : memref<16x16xf32, #tpu.memory_space<vmem>>, vector<16x16xf32>
    tpu.vector_store %arg16[%c0_173, %c0_174], %687 {strides = array<i32>} : memref<16x16xf32, #tpu.memory_space<vmem>>, vector<16x16xf32>,
    return
  }
  func.func @transform_0(%arg0: i32) -> (i32, i32, i32) {
    %c0_i32 = arith.constant 0 : i32
    %c0_i32_0 = arith.constant 0 : i32
    %c0_i32_1 = arith.constant 0 : i32
    return %c0_i32, %arg0, %c0_i32_0 : i32, i32, i32
  }
  func.func @transform_1(%arg0: i32) -> (i32, i32) {
    %c0_i32 = arith.constant 0 : i32
    %c0_i32_0 = arith.constant 0 : i32
    return %arg0, %c0_i32 : i32, i32
  }
  func.func @transform_2(%arg0: i32) -> (i32, i32) {
    %c0_i32 = arith.constant 0 : i32
    %c0_i32_0 = arith.constant 0 : i32
    %c0_i32_1 = arith.constant 0 : i32
    return %c0_i32, %c0_i32_0 : i32, i32
  }
  func.func @transform_3(%arg0: i32) -> (i32, i32) {
    %c0_i32 = arith.constant 0 : i32
    %c0_i32_0 = arith.constant 0 : i32
    %c0_i32_1 = arith.constant 0 : i32
    return %c0_i32, %c0_i32_0 : i32, i32
  }
  func.func @transform_4(%arg0: i32) -> (i32, i32) {
    %c0_i32 = arith.constant 0 : i32
    %c0_i32_0 = arith.constant 0 : i32
    %c0_i32_1 = arith.constant 0 : i32
    return %c0_i32, %c0_i32_0 : i32, i32
  }
  func.func @transform_5(%arg0: i32) -> (i32, i32) {
    %c0_i32 = arith.constant 0 : i32
    %c0_i32_0 = arith.constant 0 : i32
    %c0_i32_1 = arith.constant 0 : i32
    return %c0_i32, %c0_i32_0 : i32, i32
  }
  func.func @transform_6(%arg0: i32) -> (i32, i32) {
    %c0_i32 = arith.constant 0 : i32
    %c0_i32_0 = arith.constant 0 : i32
    %c0_i32_1 = arith.constant 0 : i32
    return %c0_i32, %c0_i32_0 : i32, i32
  }
  func.func @transform_7(%arg0: i32) -> (i32, i32) {
    %c0_i32 = arith.constant 0 : i32
    %c0_i32_0 = arith.constant 0 : i32
    %c0_i32_1 = arith.constant 0 : i32
    return %c0_i32, %c0_i32_0 : i32, i32
  }
  func.func @transform_8(%arg0: i32) -> (i32, i32) {
    %c0_i32 = arith.constant 0 : i32
    %c0_i32_0 = arith.constant 0 : i32
    %c0_i32_1 = arith.constant 0 : i32
    return %c0_i32, %c0_i32_0 : i32, i32
  }
  func.func @transform_9(%arg0: i32) -> (i32, i32) {
    %c0_i32 = arith.constant 0 : i32
    %c0_i32_0 = arith.constant 0 : i32
    %c0_i32_1 = arith.constant 0 : i32
    return %c0_i32, %c0_i32_0 : i32, i32
  }
  func.func @transform_10(%arg0: i32) -> (i32, i32) {
    %c0_i32 = arith.constant 0 : i32
    %c0_i32_0 = arith.constant 0 : i32
    %c0_i32_1 = arith.constant 0 : i32
    return %c0_i32, %c0_i32_0 : i32, i32
  }
  func.func @transform_11(%arg0: i32) -> (i32, i32) {
    %c0_i32 = arith.constant 0 : i32
    %c0_i32_0 = arith.constant 0 : i32
    %c0_i32_1 = arith.constant 0 : i32
    return %c0_i32, %c0_i32_0 : i32, i32
  }
  func.func @transform_12(%arg0: i32) -> (i32, i32) {
    %c0_i32 = arith.constant 0 : i32
    %c0_i32_0 = arith.constant 0 : i32
    %c0_i32_1 = arith.constant 0 : i32
    return %c0_i32, %c0_i32_0 : i32, i32
  }
  func.func @transform_13(%arg0: i32) -> (i32, i32) {
    %c0_i32 = arith.constant 0 : i32
    %c0_i32_0 = arith.constant 0 : i32
    %c0_i32_1 = arith.constant 0 : i32
    return %c0_i32, %c0_i32_0 : i32, i32
  }
  func.func @transform_14(%arg0: i32) -> (i32, i32) {
    %c0_i32 = arith.constant 0 : i32
    %c0_i32_0 = arith.constant 0 : i32
    %c0_i32_1 = arith.constant 0 : i32
    return %c0_i32, %c0_i32_0 : i32, i32
  }
  func.func @transform_15(%arg0: i32) -> (i32, i32) {
    %c0_i32 = arith.constant 0 : i32
    %c0_i32_0 = arith.constant 0 : i32
    return %arg0, %c0_i32 : i32, i32
  }
}

</mosaic_0001>

<llo_original>
// kernel: tpu_custom_call.1
$region0: #{tpu_custom_call.1}
  #allocation0 [shape = 'u32[]', space=smem, size = 0x4, offset = 0x4, fixed_abs, tag = 'smem constant byte address 0x4 - core index']
  #allocation1 [shape = 'u32[72,128]{1,0:T(1,128)}', space=vmem, size = 0x9000, scoped, tag = 'internal scratch']
  #allocation2 [shape = 'bf16[8,16,32]{2,1,0:T(8,128)(2,1)}', space=vmem, size = 0x8000, scoped, tag = 'scratch operand']
  #allocation3 [shape = 'f32[1,1]{1,0:T(1,128)S(1)}', space=vmem, size = 0x200, scoped, tag = 'scoped memory for tpu_custom_call.1']
  %s0 = inlined_call_operand.hbm [shape: bf16[8,16,16], index: 0, kind: input, shape index: {}]
  %s1 = inlined_call_operand.vmem [shape: f32[16,16], index: 1, kind: input, shape index: {}]
  %s2 = inlined_call_operand.hbm [shape: bf16[16,96], index: 2, kind: input, shape index: {}]
  %s3 = inlined_call_operand.vmem [shape: bf16[32,96], index: 3, kind: input, shape index: {}]
  %s4 = inlined_call_operand.hbm [shape: f32[1,96], index: 4, kind: input, shape index: {}]
  %s5 = inlined_call_operand.hbm [shape: f32[1,96], index: 5, kind: input, shape index: {}]
  %s6 = inlined_call_operand.vmem [shape: bf16[32,16], index: 6, kind: input, shape index: {}]
  %s7 = inlined_call_operand.hbm [shape: f32[1,16], index: 7, kind: input, shape index: {}]
  %s8 = inlined_call_operand.vmem [shape: f32[1,16], index: 8, kind: input, shape index: {}]
  %s9 = inlined_call_operand.<no memory space> [shape: f32[1,1], index: 9, kind: input, shape index: {}]
  %s10 = inlined_call_operand.vmem [shape: bf16[32,32], index: 10, kind: input, shape index: {}]
  %s11 = inlined_call_operand.vmem [shape: f32[1,32], index: 11, kind: input, shape index: {}]
  %s12 = inlined_call_operand.vmem [shape: bf16[32,16], index: 12, kind: input, shape index: {}]
  %s13 = inlined_call_operand.vmem [shape: f32[1,16], index: 13, kind: input, shape index: {}]
  %s14 = inlined_call_operand.vmem [shape: f32[1,16], index: 14, kind: input, shape index: {}]
  %s15 = inlined_call_operand.hbm [shape: f32[16,16], index: 15, kind: output, shape index: {}]
  %s16 = sld [smem:[#allocation0]]
  $region90: #{tpu_custom_call.1} parent=0
    _
  %s18 = ssub.s32 1, %s16
  %s19 = scalar_select 0, %s18, %s16
  %v20 = vstv %s9
  %21 = vst [vmem:[#allocation3] sm:$0x1] %v20
  $region1: #{tpu_custom_call.1} parent=0
    #allocation4 [shape = 'u8[32768]{0}', space=vmem, size = 0x8000, scoped, tag = 'input window, operand 0, single buffered']
    #allocation5 [shape = 's32[1]{0}', space=sflag, size = 0x4, scoped, tag = 'scoped memory for tpu_custom_call.1']
    #allocation6 [shape = 's32[1]{0}', space=sflag, size = 0x4, scoped, tag = 'scoped memory for tpu_custom_call.1']
    #allocation7 [shape = 'u8[4096]{0}', space=vmem, size = 0x1000, scoped, tag = 'input window, operand 2, single buffered']
    #allocation8 [shape = 's32[1]{0}', space=sflag, size = 0x4, scoped, tag = 'scoped memory for tpu_custom_call.1']
    #allocation9 [shape = 'u8[512]{0}', space=vmem, size = 0x400, scoped, tag = 'input window, operand 4, single buffered']
    #allocation10 [shape = 'u8[512]{0}', space=vmem, size = 0x400, scoped, tag = 'input window, operand 5, single buffered']
    #allocation11 [shape = 's32[1]{0}', space=sflag, size = 0x4, scoped, tag = 'scoped memory for tpu_custom_call.1']
    #allocation12 [shape = 'u8[512]{0}', space=vmem, size = 0x400, scoped, tag = 'input window, operand 7, single buffered']
    #allocation13 [shape = 'u8[8192]{0}', space=vmem, size = 0x2000, scoped, tag = 'output window, operand 0, single buffered']
    %22 = vsyncpa [#allocation5], 0
    %23 = vsyncpa [#allocation8], 0
    %24 = vsyncpa [#allocation11], 0
    %25 = vsyncpa [#allocation6], 0
    // Predicated region
    $region2: #{tpu_custom_call.1} parent=1 // pred_check
      _
    $region3: #{tpu_custom_call.1} parent=1 // pred_check_branch
      %27 = sbr.rel (0) target = $region5
    $region4: #{tpu_custom_call.1} parent=1 // pred_region
      %29 = vsyncadd [#allocation5], 0
      %s30 = sshll.u32 %s0, 4
      %s31 = int_to_ptr.hbm [resolvable:$true] %s30
      %s32 = sshll.u32 [#allocation4], 4
      %s33 = int_to_ptr.vmem [resolvable:$true] %s32
      %38 = dma.hbm_to_vmem [thread:$0]  %s31, 1024, %s33, [#allocation5], 64, 64, 4
    $region5: #{tpu_custom_call.1} parent=1 // pred_fallthru
      _
    // Predicated region
    $region6: #{tpu_custom_call.1} parent=1 // pred_check
      _
    $region7: #{tpu_custom_call.1} parent=1 // pred_check_branch
      %40 = sbr.rel (0) target = $region9
    $region8: #{tpu_custom_call.1} parent=1 // pred_region
      _
    $region9: #{tpu_custom_call.1} parent=1 // pred_fallthru
      _
    // Predicated region
    $region10: #{tpu_custom_call.1} parent=1 // pred_check
      _
    $region11: #{tpu_custom_call.1} parent=1 // pred_check_branch
      %42 = sbr.rel (0) target = $region13
    $region12: #{tpu_custom_call.1} parent=1 // pred_region
      %44 = vsyncadd [#allocation8], 0
      %s45 = sshll.u32 %s2, 4
      %s46 = int_to_ptr.hbm [resolvable:$true] %s45
      %s47 = sshll.u32 [#allocation7], 4
      %s48 = int_to_ptr.vmem [resolvable:$true] %s47
      %53 = dma.hbm_to_vmem [thread:$0]  %s46, 128, %s48, [#allocation8], 64, 64, 4
    $region13: #{tpu_custom_call.1} parent=1 // pred_fallthru
      _
    // Predicated region
    $region14: #{tpu_custom_call.1} parent=1 // pred_check
      _
    $region15: #{tpu_custom_call.1} parent=1 // pred_check_branch
      %55 = sbr.rel (0) target = $region17
    $region16: #{tpu_custom_call.1} parent=1 // pred_region
      _
    $region17: #{tpu_custom_call.1} parent=1 // pred_fallthru
      _
    // Predicated region
    $region18: #{tpu_custom_call.1} parent=1 // pred_check
      _
    $region19: #{tpu_custom_call.1} parent=1 // pred_check_branch
      %57 = sbr.rel (0) target = $region21
    $region20: #{tpu_custom_call.1} parent=1 // pred_region
      %59 = vsyncadd [#allocation8], 0
      %s61 = sshll.u32 %s4, 4
      %s62 = int_to_ptr.hbm [resolvable:$true] %s61
      %s63 = sshll.u32 [#allocation9], 4
      %s64 = int_to_ptr.vmem [resolvable:$true] %s63
      %66 = dma.hbm_to_vmem [thread:$0]  %s62, 16, %s64, [#allocation8]
    $region21: #{tpu_custom_call.1} parent=1 // pred_fallthru
      _
    // Predicated region
    $region22: #{tpu_custom_call.1} parent=1 // pred_check
      _
    $region23: #{tpu_custom_call.1} parent=1 // pred_check_branch
      %68 = sbr.rel (0) target = $region25
    $region24: #{tpu_custom_call.1} parent=1 // pred_region
      %70 = vsyncadd [#allocation11], 0
      %s72 = sshll.u32 %s5, 4
      %s73 = int_to_ptr.hbm [resolvable:$true] %s72
      %s74 = sshll.u32 [#allocation10], 4
      %s75 = int_to_ptr.vmem [resolvable:$true] %s74
      %77 = dma.hbm_to_vmem [thread:$0]  %s73, 16, %s75, [#allocation11]
    $region25: #{tpu_custom_call.1} parent=1 // pred_fallthru
      _
    // Predicated region
    $region26: #{tpu_custom_call.1} parent=1 // pred_check
      _
    $region27: #{tpu_custom_call.1} parent=1 // pred_check_branch
      %79 = sbr.rel (0) target = $region29
    $region28: #{tpu_custom_call.1} parent=1 // pred_region
      _
    $region29: #{tpu_custom_call.1} parent=1 // pred_fallthru
      _
    // Predicated region
    $region30: #{tpu_custom_call.1} parent=1 // pred_check
      _
    $region31: #{tpu_custom_call.1} parent=1 // pred_check_branch
      %81 = sbr.rel (0) target = $region33
    $region32: #{tpu_custom_call.1} parent=1 // pred_region
      %83 = vsyncadd [#allocation11], 0
      %s85 = sshll.u32 %s7, 4
      %s86 = int_to_ptr.hbm [resolvable:$true] %s85
      %s87 = sshll.u32 [#allocation12], 4
      %s88 = int_to_ptr.vmem [resolvable:$true] %s87
      %90 = dma.hbm_to_vmem [thread:$0]  %s86, 16, %s88, [#allocation11]
    $region33: #{tpu_custom_call.1} parent=1 // pred_fallthru
      _
    // Predicated region
    $region34: #{tpu_custom_call.1} parent=1 // pred_check
      _
    $region35: #{tpu_custom_call.1} parent=1 // pred_check_branch
      %92 = sbr.rel (0) target = $region37
    $region36: #{tpu_custom_call.1} parent=1 // pred_region
      _
    $region37: #{tpu_custom_call.1} parent=1 // pred_fallthru
      _
    // Predicated region
    $region38: #{tpu_custom_call.1} parent=1 // pred_check
      _
    $region39: #{tpu_custom_call.1} parent=1 // pred_check_branch
      %94 = sbr.rel (0) target = $region41
    $region40: #{tpu_custom_call.1} parent=1 // pred_region
      _
    $region41: #{tpu_custom_call.1} parent=1 // pred_fallthru
      _
    // Predicated region
    $region42: #{tpu_custom_call.1} parent=1 // pred_check
      _
    $region43: #{tpu_custom_call.1} parent=1 // pred_check_branch
      %96 = sbr.rel (0) target = $region45
    $region44: #{tpu_custom_call.1} parent=1 // pred_region
      _
    $region45: #{tpu_custom_call.1} parent=1 // pred_fallthru
      _
    // Predicated region
    $region46: #{tpu_custom_call.1} parent=1 // pred_check
      _
    $region47: #{tpu_custom_call.1} parent=1 // pred_check_branch
      %98 = sbr.rel (0) target = $region49
    $region48: #{tpu_custom_call.1} parent=1 // pred_region
      _
    $region49: #{tpu_custom_call.1} parent=1 // pred_fallthru
      _
    // Predicated region
    $region50: #{tpu_custom_call.1} parent=1 // pred_check
      _
    $region51: #{tpu_custom_call.1} parent=1 // pred_check_branch
      %100 = sbr.rel (0) target = $region53
    $region52: #{tpu_custom_call.1} parent=1 // pred_region
      _
    $region53: #{tpu_custom_call.1} parent=1 // pred_fallthru
      _
    // Predicated region
    $region54: #{tpu_custom_call.1} parent=1 // pred_check
      _
    $region55: #{tpu_custom_call.1} parent=1 // pred_check_branch
      %102 = sbr.rel (0) target = $region57
    $region56: #{tpu_custom_call.1} parent=1 // pred_region
      _
    $region57: #{tpu_custom_call.1} parent=1 // pred_fallthru
      _
    // Predicated region
    $region58: #{tpu_custom_call.1} parent=1 // pred_check
      _
    $region59: #{tpu_custom_call.1} parent=1 // pred_check_branch
      %104 = sbr.rel (0) target = $region61
    $region60: #{tpu_custom_call.1} parent=1 // pred_region
      _
    $region61: #{tpu_custom_call.1} parent=1 // pred_fallthru
      _
    // Predicated region
    $region62: #{tpu_custom_call.1} parent=1 // pred_check
      _
    $region63: #{tpu_custom_call.1} parent=1 // pred_check_branch
      %106 = sbr.rel (0) target = $region65
    $region64: #{tpu_custom_call.1} parent=1 // pred_region
      %108 = dma.done [#allocation5], 1024
    $region65: #{tpu_custom_call.1} parent=1 // pred_fallthru
      _
    // Predicated region
    $region66: #{tpu_custom_call.1} parent=1 // pred_check
      _
    $region67: #{tpu_custom_call.1} parent=1 // pred_check_branch
      %110 = sbr.rel (0) target = $region69
    $region68: #{tpu_custom_call.1} parent=1 // pred_region
      %112 = dma.done [#allocation8], 128
    $region69: #{tpu_custom_call.1} parent=1 // pred_fallthru
      _
    // Predicated region
    $region70: #{tpu_custom_call.1} parent=1 // pred_check
      _
    $region71: #{tpu_custom_call.1} parent=1 // pred_check_branch
      %114 = sbr.rel (0) target = $region73
    $region72: #{tpu_custom_call.1} parent=1 // pred_region
      %116 = dma.done [#allocation8], 16
    $region73: #{tpu_custom_call.1} parent=1 // pred_fallthru
      _
    // Predicated region
    $region74: #{tpu_custom_call.1} parent=1 // pred_check
      _
    $region75: #{tpu_custom_call.1} parent=1 // pred_check_branch
      %118 = sbr.rel (0) target = $region77
    $region76: #{tpu_custom_call.1} parent=1 // pred_region
      %120 = dma.done [#allocation11], 16
    $region77: #{tpu_custom_call.1} parent=1 // pred_fallthru
      _
    // Predicated region
    $region78: #{tpu_custom_call.1} parent=1 // pred_check
      _
    $region79: #{tpu_custom_call.1} parent=1 // pred_check_branch
      %122 = sbr.rel (0) target = $region81
    $region80: #{tpu_custom_call.1} parent=1 // pred_region
      %124 = dma.done [#allocation11], 16
    $region81: #{tpu_custom_call.1} parent=1 // pred_fallthru
      _
    %v126 = vld [vmem:[#allocation7] sm:$0xf]
    %v127 = vld [vmem:[#allocation7 + $0x4] sm:$0xf]
    %v128 = vld [vmem:[%s3] sm:$0xf]
    %v129 = vld [vmem:[%s3 + $0x4] sm:$0xf]
    %v130 = vld [vmem:[%s3 + $0x8] sm:$0xf]
    %v131 = vld [vmem:[%s3 + $0xc] sm:$0xf]
    %v132 = vld [vmem:[#allocation9] sm:$0x1]
    %v133 = vld [vmem:[#allocation10] sm:$0x1]
    %v134 = vld [vmem:[#allocation4] sm:$0xf]
    %v135 = vld [vmem:[#allocation4 + $0x4] sm:$0xf]
    %v136 = vld [vmem:[#allocation4 + $0x8] sm:$0xf]
    %v137 = vld [vmem:[#allocation4 + $0xc] sm:$0xf]
    %v138 = vld [vmem:[#allocation4 + $0x10] sm:$0xf]
    %v139 = vld [vmem:[#allocation4 + $0x14] sm:$0xf]
    %v140 = vld [vmem:[#allocation4 + $0x18] sm:$0xf]
    %v141 = vld [vmem:[#allocation4 + $0x1c] sm:$0xf]
    %v142 = vld [vmem:[#allocation4 + $0x20] sm:$0xf]
    %v143 = vld [vmem:[#allocation4 + $0x24] sm:$0xf]
    %v144 = vld [vmem:[#allocation4 + $0x28] sm:$0xf]
    %v145 = vld [vmem:[#allocation4 + $0x2c] sm:$0xf]
    %v146 = vld [vmem:[#allocation4 + $0x30] sm:$0xf]
    %v147 = vld [vmem:[#allocation4 + $0x34] sm:$0xf]
    %v148 = vld [vmem:[#allocation4 + $0x38] sm:$0xf]
    %v149 = vld [vmem:[#allocation4 + $0x3c] sm:$0xf]
    %v151 = vperm.slane %v132, 0
    %v169 = vunpack.c.l.b16 %v134
    %v170 = vunpack.c.l.b16 %v135
    %v171 = vunpack.c.l.b16 %v136
    %v172 = vunpack.c.l.b16 %v137
    %v173 = vunpack.c.l.b16 %v138
    %v174 = vunpack.c.l.b16 %v139
    %v175 = vunpack.c.l.b16 %v140
    %v176 = vunpack.c.l.b16 %v141
    %v177 = vunpack.c.l.b16 %v142
    %v178 = vunpack.c.l.b16 %v143
    %v179 = vunpack.c.l.b16 %v144
    %v180 = vunpack.c.l.b16 %v145
    %v181 = vunpack.c.l.b16 %v146
    %v182 = vunpack.c.l.b16 %v147
    %v183 = vunpack.c.l.b16 %v148
    %v184 = vunpack.c.l.b16 %v149
    %v185 = vpack.c.b16 %v170, %v169
    %v186 = vpack.c.b16 %v172, %v171
    %v187 = vpack.c.b16 %v174, %v173
    %v188 = vpack.c.b16 %v176, %v175
    %v189 = vpack.c.b16 %v178, %v177
    %v190 = vpack.c.b16 %v180, %v179
    %v191 = vpack.c.b16 %v182, %v181
    %v192 = vpack.c.b16 %v184, %v183
    %v195 = vunpack.c.l.b16 %v126
    %v196 = vunpack.c.l.b16 %v127
    %v197 = vpack.c.b16 %v196, %v195
    %vm199 = vcmask 130048
    %v201 = vsel %vm199, %v185, 0
    %v204 = vsel %vm199, %v186, 0
    %v207 = vsel %vm199, %v187, 0
    %v210 = vsel %vm199, %v188, 0
    %v213 = vsel %vm199, %v189, 0
    %v216 = vsel %vm199, %v190, 0
    %v219 = vsel %vm199, %v191, 0
    %v222 = vsel %vm199, %v192, 0
    %224 = vmatpush.bf16.msra.mxu0 0
    %225 = vmatpush.bf16.msra.mxu0 0
    %226 = vmatpush.bf16.msra.mxu0 0
    %227 = vmatpush.bf16.msra.mxu0 0
    %228 = vmatpush.bf16.msra.mxu0 0
    %229 = vmatpush.bf16.msra.mxu0 0
    %230 = vmatpush.bf16.msra.mxu0 0
    %231 = vmatpush.bf16.msra.mxu0 %v197
    %232 = vmatmul.bf16.gmra.mxu0 %v201
    %v233 = vpop.f32.mrf.mxu0
    %v234 = vadd.f32 %v151, %v233
    %v235 = vpop.f32.mrf.mxu0
    %v236 = vadd.f32 %v151, %v235
    %237 = vmatmul.bf16.gmra.mxu0 %v204
    %v238 = vpop.f32.mrf.mxu0
    %v239 = vadd.f32 %v151, %v238
    %v240 = vpop.f32.mrf.mxu0
    %v241 = vadd.f32 %v151, %v240
    %242 = vmatmul.bf16.gmra.mxu0 %v207
    %v243 = vpop.f32.mrf.mxu0
    %v244 = vadd.f32 %v151, %v243
    %v245 = vpop.f32.mrf.mxu0
    %v246 = vadd.f32 %v151, %v245
    %247 = vmatmul.bf16.gmra.mxu0 %v210
    %v248 = vpop.f32.mrf.mxu0
    %v249 = vadd.f32 %v151, %v248
    %v250 = vpop.f32.mrf.mxu0
    %v251 = vadd.f32 %v151, %v250
    %252 = vmatmul.bf16.gmra.mxu0 %v213
    %v253 = vpop.f32.mrf.mxu0
    %v254 = vadd.f32 %v151, %v253
    %v255 = vpop.f32.mrf.mxu0
    %v256 = vadd.f32 %v151, %v255
    %257 = vmatmul.bf16.gmra.mxu0 %v216
    %v258 = vpop.f32.mrf.mxu0
    %v259 = vadd.f32 %v151, %v258
    %v260 = vpop.f32.mrf.mxu0
    %v261 = vadd.f32 %v151, %v260
    %262 = vmatmul.bf16.gmra.mxu0 %v219
    %v263 = vpop.f32.mrf.mxu0
    %v264 = vadd.f32 %v151, %v263
    %v265 = vpop.f32.mrf.mxu0
    %v266 = vadd.f32 %v151, %v265
    %267 = vmatmul.bf16.gmra.mxu0 %v222
    %v268 = vpop.f32.mrf.mxu0
    %v269 = vadd.f32 %v151, %v268
    %v270 = vpop.f32.mrf.mxu0
    %v271 = vadd.f32 %v151, %v270
    %272 = vdwg.mxu0
    %v274 = vperm.slane %v133, 0
    %v280 = vunpack.c.l.b16 %v128
    %v281 = vunpack.c.l.b16 %v129
    %v282 = vunpack.c.l.b16 %v130
    %v283 = vunpack.c.l.b16 %v131
    %v284 = vpack.c.b16 %v281, %v280
    %v285 = vpack.c.b16 %v283, %v282
    %vm288 = vcmask 261120
    %v290 = vsel %vm288, 0, 0
    %292 = vmatpush.bf16.msra.mxu0 0
    %293 = vmatpush.bf16.msra.mxu0 0
    %294 = vmatpush.bf16.msra.mxu0 0
    %295 = vmatpush.bf16.msra.mxu0 0
    %296 = vmatpush.bf16.msra.mxu0 0
    %297 = vmatpush.bf16.msra.mxu0 0
    %298 = vmatpush.bf16.msra.mxu0 %v285
    %299 = vmatpush.bf16.msra.mxu0 %v284
    %300 = vmatmul.bf16.gmra.mxu0 %v290
    %v301 = vpop.f32.mrf.mxu0
    %v302 = vadd.f32 %v274, %v301
    %v303 = vpop.f32.mrf.mxu0
    %304 = vdwg.mxu0
    %v305 = vadd.f32 %v234, %v302
    %v306 = vxor.u32 %v305, 2147483648
    %v307 = vmul.f32 %v306, 1.442695
    %v308 = vpow.pop %v307
    %v309 = vadd.f32 %v308, 1.0
    %v310 = vrcp.pop %v309
    %v311 = vmul.f32 %v309, %v310
    %v312 = vsub.f32 1.0, %v311
    %v313 = vmul.f32 %v310, %v312
    %v314 = vadd.f32 %v310, %v313
    %vm315 = vweird.f32 %v309
    %vm316 = vweird.f32 %v310
    %vm317 = vmor %vm315, %vm316
    %v318 = vsel %vm317, %v310, %v314
    %v319 = vand.u32 2147483647, %v309
    %vm320 = vcmp.eq.f32.partialorder %v319, 8.507059e+37
    %v321 = vand.u32 %v309, 2147483648
    %v322 = vor.u32 1.1754944e-38, %v321
    %v323 = vsel %vm320, %v322, %v318
    %v324 = vmul.f32 1.0, %v323
    %326 = vrot.lane.b32.xlu0 %v302, 64
    %v327 = vpop.permute.xlu0 %326
    %v329 = vmul.f32 %v324, %v327
    %331 = vrot.lane.b32.xlu0 %v329, 64
    %v332 = vpop.permute.xlu0 %331
    %v334 = vadd.f32 %v234, %v332
    %v335 = vtanh.pop %v334
    %v336 = vsub.f32 1.0, %v324
    %338 = vrot.lane.b32.xlu0 %v335, 96
    %v339 = vpop.permute.xlu0 %338
    %v341 = vmul.f32 %v336, %v339
    %v342 = vmul.f32 %v324, 0.0
    %v343 = vadd.f32 %v341, %v342
    %v344 = vpack.c.bf16 %v343, %v343
    %346 = vrot.lane.b32.xlu0 %v344, 96
    %v347 = vpop.permute.xlu0 %346
    %vm349 = vcmask 257024
    %350 = vst.msk [vmem:[#allocation2] sm:$0xf] %vm349, %v347
    %v351 = vadd.f32 %v236, %v302
    %v352 = vxor.u32 %v351, 2147483648
    %v353 = vmul.f32 %v352, 1.442695
    %v354 = vpow.pop %v353
    %v355 = vadd.f32 %v354, 1.0
    %v356 = vrcp.pop %v355
    %v357 = vmul.f32 %v355, %v356
    %v358 = vsub.f32 1.0, %v357
    %v359 = vmul.f32 %v356, %v358
    %v360 = vadd.f32 %v356, %v359
    %vm361 = vweird.f32 %v355
    %vm362 = vweird.f32 %v356
    %vm363 = vmor %vm361, %vm362
    %v364 = vsel %vm363, %v356, %v360
    %v365 = vand.u32 2147483647, %v355
    %vm366 = vcmp.eq.f32.partialorder %v365, 8.507059e+37
    %v367 = vand.u32 %v355, 2147483648
    %v368 = vor.u32 1.1754944e-38, %v367
    %v369 = vsel %vm366, %v368, %v364
    %v370 = vmul.f32 1.0, %v369
    %v371 = vmul.f32 %v370, %v327
    %373 = vrot.lane.b32.xlu0 %v371, 64
    %v374 = vpop.permute.xlu0 %373
    %v376 = vadd.f32 %v236, %v374
    %v377 = vtanh.pop %v376
    %v378 = vsub.f32 1.0, %v370
    %380 = vrot.lane.b32.xlu0 %v377, 96
    %v381 = vpop.permute.xlu0 %380
    %v383 = vmul.f32 %v378, %v381
    %v384 = vmul.f32 %v370, 0.0
    %v385 = vadd.f32 %v383, %v384
    %v386 = vpack.c.bf16 %v385, %v385
    %388 = vrot.lane.b32.xlu0 %v386, 96
    %v389 = vpop.permute.xlu0 %388
    %391 = vst.msk [vmem:[#allocation2 + $0x4] sm:$0xf] %vm349, %v389
    %v392 = vunpack.c.l.b16 %v344
    %v393 = vpack.c.b16 %v392, %v392
    %394 = vrot.lane.b32.xlu0 %v393, 96
    %v395 = vpop.permute.xlu0 %394
    %v397 = vsel %vm288, %v395, 0
    %399 = vmatpush.bf16.msra.mxu0 0
    %400 = vmatpush.bf16.msra.mxu0 0
    %401 = vmatpush.bf16.msra.mxu0 0
    %402 = vmatpush.bf16.msra.mxu0 0
    %403 = vmatpush.bf16.msra.mxu0 0
    %404 = vmatpush.bf16.msra.mxu0 0
    %405 = vmatpush.bf16.msra.mxu0 %v285
    %406 = vmatpush.bf16.msra.mxu0 %v284
    %407 = vmatmul.bf16.gmra.mxu0 %v397
    %v408 = vpop.f32.mrf.mxu0
    %v409 = vadd.f32 %v274, %v408
    %v410 = vpop.f32.mrf.mxu0
    %411 = vdwg.mxu0
    %v412 = vadd.f32 %v239, %v409
    %v413 = vxor.u32 %v412, 2147483648
    %v414 = vmul.f32 %v413, 1.442695
    %v415 = vpow.pop %v414
    %v416 = vadd.f32 %v415, 1.0
    %v417 = vrcp.pop %v416
    %v418 = vmul.f32 %v416, %v417
    %v419 = vsub.f32 1.0, %v418
    %v420 = vmul.f32 %v417, %v419
    %v421 = vadd.f32 %v417, %v420
    %vm422 = vweird.f32 %v416
    %vm423 = vweird.f32 %v417
    %vm424 = vmor %vm422, %vm423
    %v425 = vsel %vm424, %v417, %v421
    %v426 = vand.u32 2147483647, %v416
    %vm427 = vcmp.eq.f32.partialorder %v426, 8.507059e+37
    %v428 = vand.u32 %v416, 2147483648
    %v429 = vor.u32 1.1754944e-38, %v428
    %v430 = vsel %vm427, %v429, %v425
    %v431 = vmul.f32 1.0, %v430
    %433 = vrot.lane.b32.xlu0 %v409, 64
    %v434 = vpop.permute.xlu0 %433
    %v436 = vmul.f32 %v431, %v434
    %438 = vrot.lane.b32.xlu0 %v436, 64
    %v439 = vpop.permute.xlu0 %438
    %v441 = vadd.f32 %v239, %v439
    %v442 = vtanh.pop %v441
    %v443 = vsub.f32 1.0, %v431
    %445 = vrot.lane.b32.xlu0 %v442, 96
    %v446 = vpop.permute.xlu0 %445
    %v448 = vmul.f32 %v443, %v446
    %v449 = vmul.f32 %v431, %v343
    %v450 = vadd.f32 %v448, %v449
    %v451 = vpack.c.bf16 %v450, %v450
    %453 = vrot.lane.b32.xlu0 %v451, 96
    %v454 = vpop.permute.xlu0 %453
    %s456 = scalar_lea.vmem [#allocation2], 8
    %457 = vst.msk [vmem:[%s456] sm:$0xf] %vm349, %v454
    %v458 = vunpack.c.l.b16 %v386
    %v459 = vpack.c.b16 %v458, %v458
    %460 = vrot.lane.b32.xlu0 %v459, 96
    %v461 = vpop.permute.xlu0 %460
    %v463 = vsel %vm288, %v461, 0
    %465 = vmatpush.bf16.msra.mxu0 0
    %466 = vmatpush.bf16.msra.mxu0 0
    %467 = vmatpush.bf16.msra.mxu0 0
    %468 = vmatpush.bf16.msra.mxu0 0
    %469 = vmatpush.bf16.msra.mxu0 0
    %470 = vmatpush.bf16.msra.mxu0 0
    %471 = vmatpush.bf16.msra.mxu0 %v285
    %472 = vmatpush.bf16.msra.mxu0 %v284
    %473 = vmatmul.bf16.gmra.mxu0 %v463
    %v474 = vpop.f32.mrf.mxu0
    %v475 = vadd.f32 %v274, %v474
    %v476 = vpop.f32.mrf.mxu0
    %477 = vdwg.mxu0
    %v478 = vadd.f32 %v241, %v475
    %v479 = vxor.u32 %v478, 2147483648
    %v480 = vmul.f32 %v479, 1.442695
    %v481 = vpow.pop %v480
    %v482 = vadd.f32 %v481, 1.0
    %v483 = vrcp.pop %v482
    %v484 = vmul.f32 %v482, %v483
    %v485 = vsub.f32 1.0, %v484
    %v486 = vmul.f32 %v483, %v485
    %v487 = vadd.f32 %v483, %v486
    %vm488 = vweird.f32 %v482
    %vm489 = vweird.f32 %v483
    %vm490 = vmor %vm488, %vm489
    %v491 = vsel %vm490, %v483, %v487
    %v492 = vand.u32 2147483647, %v482
    %vm493 = vcmp.eq.f32.partialorder %v492, 8.507059e+37
    %v494 = vand.u32 %v482, 2147483648
    %v495 = vor.u32 1.1754944e-38, %v494
    %v496 = vsel %vm493, %v495, %v491
    %v497 = vmul.f32 1.0, %v496
    %499 = vrot.lane.b32.xlu0 %v475, 64
    %v500 = vpop.permute.xlu0 %499
    %v502 = vmul.f32 %v497, %v500
    %504 = vrot.lane.b32.xlu0 %v502, 64
    %v505 = vpop.permute.xlu0 %504
    %v507 = vadd.f32 %v241, %v505
    %v508 = vtanh.pop %v507
    %v509 = vsub.f32 1.0, %v497
    %511 = vrot.lane.b32.xlu0 %v508, 96
    %v512 = vpop.permute.xlu0 %511
    %v514 = vmul.f32 %v509, %v512
    %v515 = vmul.f32 %v497, %v385
    %v516 = vadd.f32 %v514, %v515
    %v517 = vpack.c.bf16 %v516, %v516
    %519 = vrot.lane.b32.xlu0 %v517, 96
    %v520 = vpop.permute.xlu0 %519
    %522 = vst.msk [vmem:[%s456 + $0x4] sm:$0xf] %vm349, %v520
    %v523 = vunpack.c.l.b16 %v451
    %v524 = vpack.c.b16 %v523, %v523
    %525 = vrot.lane.b32.xlu0 %v524, 96
    %v526 = vpop.permute.xlu0 %525
    %v528 = vsel %vm288, %v526, 0
    %530 = vmatpush.bf16.msra.mxu0 0
    %531 = vmatpush.bf16.msra.mxu0 0
    %532 = vmatpush.bf16.msra.mxu0 0
    %533 = vmatpush.bf16.msra.mxu0 0
    %534 = vmatpush.bf16.msra.mxu0 0
    %535 = vmatpush.bf16.msra.mxu0 0
    %536 = vmatpush.bf16.msra.mxu0 %v285
    %537 = vmatpush.bf16.msra.mxu0 %v284
    %538 = vmatmul.bf16.gmra.mxu0 %v528
    %v539 = vpop.f32.mrf.mxu0
    %v540 = vadd.f32 %v274, %v539
    %v541 = vpop.f32.mrf.mxu0
    %542 = vdwg.mxu0
    %v543 = vadd.f32 %v244, %v540
    %v544 = vxor.u32 %v543, 2147483648
    %v545 = vmul.f32 %v544, 1.442695
    %v546 = vpow.pop %v545
    %v547 = vadd.f32 %v546, 1.0
    %v548 = vrcp.pop %v547
    %v549 = vmul.f32 %v547, %v548
    %v550 = vsub.f32 1.0, %v549
    %v551 = vmul.f32 %v548, %v550
    %v552 = vadd.f32 %v548, %v551
    %vm553 = vweird.f32 %v547
    %vm554 = vweird.f32 %v548
    %vm555 = vmor %vm553, %vm554
    %v556 = vsel %vm555, %v548, %v552
    %v557 = vand.u32 2147483647, %v547
    %vm558 = vcmp.eq.f32.partialorder %v557, 8.507059e+37
    %v559 = vand.u32 %v547, 2147483648
    %v560 = vor.u32 1.1754944e-38, %v559
    %v561 = vsel %vm558, %v560, %v556
    %v562 = vmul.f32 1.0, %v561
    %564 = vrot.lane.b32.xlu0 %v540, 64
    %v565 = vpop.permute.xlu0 %564
    %v567 = vmul.f32 %v562, %v565
    %569 = vrot.lane.b32.xlu0 %v567, 64
    %v570 = vpop.permute.xlu0 %569
    %v572 = vadd.f32 %v244, %v570
    %v573 = vtanh.pop %v572
    %v574 = vsub.f32 1.0, %v562
    %576 = vrot.lane.b32.xlu0 %v573, 96
    %v577 = vpop.permute.xlu0 %576
    %v579 = vmul.f32 %v574, %v577
    %v580 = vmul.f32 %v562, %v450
    %v581 = vadd.f32 %v579, %v580
    %v582 = vpack.c.bf16 %v581, %v581
    %584 = vrot.lane.b32.xlu0 %v582, 96
    %v585 = vpop.permute.xlu0 %584
    %s587 = scalar_lea.vmem [#allocation2], 16
    %588 = vst.msk [vmem:[%s587] sm:$0xf] %vm349, %v585
    %v589 = vunpack.c.l.b16 %v517
    %v590 = vpack.c.b16 %v589, %v589
    %591 = vrot.lane.b32.xlu0 %v590, 96
    %v592 = vpop.permute.xlu0 %591
    %v594 = vsel %vm288, %v592, 0
    %596 = vmatpush.bf16.msra.mxu0 0
    %597 = vmatpush.bf16.msra.mxu0 0
    %598 = vmatpush.bf16.msra.mxu0 0
    %599 = vmatpush.bf16.msra.mxu0 0
    %600 = vmatpush.bf16.msra.mxu0 0
    %601 = vmatpush.bf16.msra.mxu0 0
    %602 = vmatpush.bf16.msra.mxu0 %v285
    %603 = vmatpush.bf16.msra.mxu0 %v284
    %604 = vmatmul.bf16.gmra.mxu0 %v594
    %v605 = vpop.f32.mrf.mxu0
    %v606 = vadd.f32 %v274, %v605
    %v607 = vpop.f32.mrf.mxu0
    %608 = vdwg.mxu0
    %v609 = vadd.f32 %v246, %v606
    %v610 = vxor.u32 %v609, 2147483648
    %v611 = vmul.f32 %v610, 1.442695
    %v612 = vpow.pop %v611
    %v613 = vadd.f32 %v612, 1.0
    %v614 = vrcp.pop %v613
    %v615 = vmul.f32 %v613, %v614
    %v616 = vsub.f32 1.0, %v615
    %v617 = vmul.f32 %v614, %v616
    %v618 = vadd.f32 %v614, %v617
    %vm619 = vweird.f32 %v613
    %vm620 = vweird.f32 %v614
    %vm621 = vmor %vm619, %vm620
    %v622 = vsel %vm621, %v614, %v618
    %v623 = vand.u32 2147483647, %v613
    %vm624 = vcmp.eq.f32.partialorder %v623, 8.507059e+37
    %v625 = vand.u32 %v613, 2147483648
    %v626 = vor.u32 1.1754944e-38, %v625
    %v627 = vsel %vm624, %v626, %v622
    %v628 = vmul.f32 1.0, %v627
    %630 = vrot.lane.b32.xlu0 %v606, 64
    %v631 = vpop.permute.xlu0 %630
    %v633 = vmul.f32 %v628, %v631
    %635 = vrot.lane.b32.xlu0 %v633, 64
    %v636 = vpop.permute.xlu0 %635
    %v638 = vadd.f32 %v246, %v636
    %v639 = vtanh.pop %v638
    %v640 = vsub.f32 1.0, %v628
    %642 = vrot.lane.b32.xlu0 %v639, 96
    %v643 = vpop.permute.xlu0 %642
    %v645 = vmul.f32 %v640, %v643
    %v646 = vmul.f32 %v628, %v516
    %v647 = vadd.f32 %v645, %v646
    %v648 = vpack.c.bf16 %v647, %v647
    %650 = vrot.lane.b32.xlu0 %v648, 96
    %v651 = vpop.permute.xlu0 %650
    %653 = vst.msk [vmem:[%s587 + $0x4] sm:$0xf] %vm349, %v651
    %v654 = vunpack.c.l.b16 %v582
    %v655 = vpack.c.b16 %v654, %v654
    %656 = vrot.lane.b32.xlu0 %v655, 96
    %v657 = vpop.permute.xlu0 %656
    %v659 = vsel %vm288, %v657, 0
    %661 = vmatpush.bf16.msra.mxu0 0
    %662 = vmatpush.bf16.msra.mxu0 0
    %663 = vmatpush.bf16.msra.mxu0 0
    %664 = vmatpush.bf16.msra.mxu0 0
    %665 = vmatpush.bf16.msra.mxu0 0
    %666 = vmatpush.bf16.msra.mxu0 0
    %667 = vmatpush.bf16.msra.mxu0 %v285
    %668 = vmatpush.bf16.msra.mxu0 %v284
    %669 = vmatmul.bf16.gmra.mxu0 %v659
    %v670 = vpop.f32.mrf.mxu0
    %v671 = vadd.f32 %v274, %v670
    %v672 = vpop.f32.mrf.mxu0
    %673 = vdwg.mxu0
    %v674 = vadd.f32 %v249, %v671
    %v675 = vxor.u32 %v674, 2147483648
    %v676 = vmul.f32 %v675, 1.442695
    %v677 = vpow.pop %v676
    %v678 = vadd.f32 %v677, 1.0
    %v679 = vrcp.pop %v678
    %v680 = vmul.f32 %v678, %v679
    %v681 = vsub.f32 1.0, %v680
    %v682 = vmul.f32 %v679, %v681
    %v683 = vadd.f32 %v679, %v682
    %vm684 = vweird.f32 %v678
    %vm685 = vweird.f32 %v679
    %vm686 = vmor %vm684, %vm685
    %v687 = vsel %vm686, %v679, %v683
    %v688 = vand.u32 2147483647, %v678
    %vm689 = vcmp.eq.f32.partialorder %v688, 8.507059e+37
    %v690 = vand.u32 %v678, 2147483648
    %v691 = vor.u32 1.1754944e-38, %v690
    %v692 = vsel %vm689, %v691, %v687
    %v693 = vmul.f32 1.0, %v692
    %695 = vrot.lane.b32.xlu0 %v671, 64
    %v696 = vpop.permute.xlu0 %695
    %v698 = vmul.f32 %v693, %v696
    %700 = vrot.lane.b32.xlu0 %v698, 64
    %v701 = vpop.permute.xlu0 %700
    %v703 = vadd.f32 %v249, %v701
    %v704 = vtanh.pop %v703
    %v705 = vsub.f32 1.0, %v693
    %707 = vrot.lane.b32.xlu0 %v704, 96
    %v708 = vpop.permute.xlu0 %707
    %v710 = vmul.f32 %v705, %v708
    %v711 = vmul.f32 %v693, %v581
    %v712 = vadd.f32 %v710, %v711
    %v713 = vpack.c.bf16 %v712, %v712
    %715 = vrot.lane.b32.xlu0 %v713, 96
    %v716 = vpop.permute.xlu0 %715
    %s718 = scalar_lea.vmem [#allocation2], 24
    %719 = vst.msk [vmem:[%s718] sm:$0xf] %vm349, %v716
    %v720 = vunpack.c.l.b16 %v648
    %v721 = vpack.c.b16 %v720, %v720
    %722 = vrot.lane.b32.xlu0 %v721, 96
    %v723 = vpop.permute.xlu0 %722
    %v725 = vsel %vm288, %v723, 0
    %727 = vmatpush.bf16.msra.mxu0 0
    %728 = vmatpush.bf16.msra.mxu0 0
    %729 = vmatpush.bf16.msra.mxu0 0
    %730 = vmatpush.bf16.msra.mxu0 0
    %731 = vmatpush.bf16.msra.mxu0 0
    %732 = vmatpush.bf16.msra.mxu0 0
    %733 = vmatpush.bf16.msra.mxu0 %v285
    %734 = vmatpush.bf16.msra.mxu0 %v284
    %735 = vmatmul.bf16.gmra.mxu0 %v725
    %v736 = vpop.f32.mrf.mxu0
    %v737 = vadd.f32 %v274, %v736
    %v738 = vpop.f32.mrf.mxu0
    %739 = vdwg.mxu0
    %v740 = vadd.f32 %v251, %v737
    %v741 = vxor.u32 %v740, 2147483648
    %v742 = vmul.f32 %v741, 1.442695
    %v743 = vpow.pop %v742
    %v744 = vadd.f32 %v743, 1.0
    %v745 = vrcp.pop %v744
    %v746 = vmul.f32 %v744, %v745
    %v747 = vsub.f32 1.0, %v746
    %v748 = vmul.f32 %v745, %v747
    %v749 = vadd.f32 %v745, %v748
    %vm750 = vweird.f32 %v744
    %vm751 = vweird.f32 %v745
    %vm752 = vmor %vm750, %vm751
    %v753 = vsel %vm752, %v745, %v749
    %v754 = vand.u32 2147483647, %v744
    %vm755 = vcmp.eq.f32.partialorder %v754, 8.507059e+37
    %v756 = vand.u32 %v744, 2147483648
    %v757 = vor.u32 1.1754944e-38, %v756
    %v758 = vsel %vm755, %v757, %v753
    %v759 = vmul.f32 1.0, %v758
    %761 = vrot.lane.b32.xlu0 %v737, 64
    %v762 = vpop.permute.xlu0 %761
    %v764 = vmul.f32 %v759, %v762
    %766 = vrot.lane.b32.xlu0 %v764, 64
    %v767 = vpop.permute.xlu0 %766
    %v769 = vadd.f32 %v251, %v767
    %v770 = vtanh.pop %v769
    %v771 = vsub.f32 1.0, %v759
    %773 = vrot.lane.b32.xlu0 %v770, 96
    %v774 = vpop.permute.xlu0 %773
    %v776 = vmul.f32 %v771, %v774
    %v777 = vmul.f32 %v759, %v647
    %v778 = vadd.f32 %v776, %v777
    %v779 = vpack.c.bf16 %v778, %v778
    %781 = vrot.lane.b32.xlu0 %v779, 96
    %v782 = vpop.permute.xlu0 %781
    %784 = vst.msk [vmem:[%s718 + $0x4] sm:$0xf] %vm349, %v782
    %v785 = vunpack.c.l.b16 %v713
    %v786 = vpack.c.b16 %v785, %v785
    %787 = vrot.lane.b32.xlu0 %v786, 96
    %v788 = vpop.permute.xlu0 %787
    %v790 = vsel %vm288, %v788, 0
    %792 = vmatpush.bf16.msra.mxu0 0
    %793 = vmatpush.bf16.msra.mxu0 0
    %794 = vmatpush.bf16.msra.mxu0 0
    %795 = vmatpush.bf16.msra.mxu0 0
    %796 = vmatpush.bf16.msra.mxu0 0
    %797 = vmatpush.bf16.msra.mxu0 0
    %798 = vmatpush.bf16.msra.mxu0 %v285
    %799 = vmatpush.bf16.msra.mxu0 %v284
    %800 = vmatmul.bf16.gmra.mxu0 %v790
    %v801 = vpop.f32.mrf.mxu0
    %v802 = vadd.f32 %v274, %v801
    %v803 = vpop.f32.mrf.mxu0
    %804 = vdwg.mxu0
    %v805 = vadd.f32 %v254, %v802
    %v806 = vxor.u32 %v805, 2147483648
    %v807 = vmul.f32 %v806, 1.442695
    %v808 = vpow.pop %v807
    %v809 = vadd.f32 %v808, 1.0
    %v810 = vrcp.pop %v809
    %v811 = vmul.f32 %v809, %v810
    %v812 = vsub.f32 1.0, %v811
    %v813 = vmul.f32 %v810, %v812
    %v814 = vadd.f32 %v810, %v813
    %vm815 = vweird.f32 %v809
    %vm816 = vweird.f32 %v810
    %vm817 = vmor %vm815, %vm816
    %v818 = vsel %vm817, %v810, %v814
    %v819 = vand.u32 2147483647, %v809
    %vm820 = vcmp.eq.f32.partialorder %v819, 8.507059e+37
    %v821 = vand.u32 %v809, 2147483648
    %v822 = vor.u32 1.1754944e-38, %v821
    %v823 = vsel %vm820, %v822, %v818
    %v824 = vmul.f32 1.0, %v823
    %826 = vrot.lane.b32.xlu0 %v802, 64
    %v827 = vpop.permute.xlu0 %826
    %v829 = vmul.f32 %v824, %v827
    %831 = vrot.lane.b32.xlu0 %v829, 64
    %v832 = vpop.permute.xlu0 %831
    %v834 = vadd.f32 %v254, %v832
    %v835 = vtanh.pop %v834
    %v836 = vsub.f32 1.0, %v824
    %838 = vrot.lane.b32.xlu0 %v835, 96
    %v839 = vpop.permute.xlu0 %838
    %v841 = vmul.f32 %v836, %v839
    %v842 = vmul.f32 %v824, %v712
    %v843 = vadd.f32 %v841, %v842
    %v844 = vpack.c.bf16 %v843, %v843
    %846 = vrot.lane.b32.xlu0 %v844, 96
    %v847 = vpop.permute.xlu0 %846
    %s849 = scalar_lea.vmem [#allocation2], 32
    %850 = vst.msk [vmem:[%s849] sm:$0xf] %vm349, %v847
    %v851 = vunpack.c.l.b16 %v779
    %v852 = vpack.c.b16 %v851, %v851
    %853 = vrot.lane.b32.xlu0 %v852, 96
    %v854 = vpop.permute.xlu0 %853
    %v856 = vsel %vm288, %v854, 0
    %858 = vmatpush.bf16.msra.mxu0 0
    %859 = vmatpush.bf16.msra.mxu0 0
    %860 = vmatpush.bf16.msra.mxu0 0
    %861 = vmatpush.bf16.msra.mxu0 0
    %862 = vmatpush.bf16.msra.mxu0 0
    %863 = vmatpush.bf16.msra.mxu0 0
    %864 = vmatpush.bf16.msra.mxu0 %v285
    %865 = vmatpush.bf16.msra.mxu0 %v284
    %866 = vmatmul.bf16.gmra.mxu0 %v856
    %v867 = vpop.f32.mrf.mxu0
    %v868 = vadd.f32 %v274, %v867
    %v869 = vpop.f32.mrf.mxu0
    %870 = vdwg.mxu0
    %v871 = vadd.f32 %v256, %v868
    %v872 = vxor.u32 %v871, 2147483648
    %v873 = vmul.f32 %v872, 1.442695
    %v874 = vpow.pop %v873
    %v875 = vadd.f32 %v874, 1.0
    %v876 = vrcp.pop %v875
    %v877 = vmul.f32 %v875, %v876
    %v878 = vsub.f32 1.0, %v877
    %v879 = vmul.f32 %v876, %v878
    %v880 = vadd.f32 %v876, %v879
    %vm881 = vweird.f32 %v875
    %vm882 = vweird.f32 %v876
    %vm883 = vmor %vm881, %vm882
    %v884 = vsel %vm883, %v876, %v880
    %v885 = vand.u32 2147483647, %v875
    %vm886 = vcmp.eq.f32.partialorder %v885, 8.507059e+37
    %v887 = vand.u32 %v875, 2147483648
    %v888 = vor.u32 1.1754944e-38, %v887
    %v889 = vsel %vm886, %v888, %v884
    %v890 = vmul.f32 1.0, %v889
    %892 = vrot.lane.b32.xlu0 %v868, 64
    %v893 = vpop.permute.xlu0 %892
    %v895 = vmul.f32 %v890, %v893
    %897 = vrot.lane.b32.xlu0 %v895, 64
    %v898 = vpop.permute.xlu0 %897
    %v900 = vadd.f32 %v256, %v898
    %v901 = vtanh.pop %v900
    %v902 = vsub.f32 1.0, %v890
    %904 = vrot.lane.b32.xlu0 %v901, 96
    %v905 = vpop.permute.xlu0 %904
    %v907 = vmul.f32 %v902, %v905
    %v908 = vmul.f32 %v890, %v778
    %v909 = vadd.f32 %v907, %v908
    %v910 = vpack.c.bf16 %v909, %v909
    %912 = vrot.lane.b32.xlu0 %v910, 96
    %v913 = vpop.permute.xlu0 %912
    %915 = vst.msk [vmem:[%s849 + $0x4] sm:$0xf] %vm349, %v913
    %v916 = vunpack.c.l.b16 %v844
    %v917 = vpack.c.b16 %v916, %v916
    %918 = vrot.lane.b32.xlu0 %v917, 96
    %v919 = vpop.permute.xlu0 %918
    %v921 = vsel %vm288, %v919, 0
    %923 = vmatpush.bf16.msra.mxu0 0
    %924 = vmatpush.bf16.msra.mxu0 0
    %925 = vmatpush.bf16.msra.mxu0 0
    %926 = vmatpush.bf16.msra.mxu0 0
    %927 = vmatpush.bf16.msra.mxu0 0
    %928 = vmatpush.bf16.msra.mxu0 0
    %929 = vmatpush.bf16.msra.mxu0 %v285
    %930 = vmatpush.bf16.msra.mxu0 %v284
    %931 = vmatmul.bf16.gmra.mxu0 %v921
    %v932 = vpop.f32.mrf.mxu0
    %v933 = vadd.f32 %v274, %v932
    %v934 = vpop.f32.mrf.mxu0
    %935 = vdwg.mxu0
    %v936 = vadd.f32 %v259, %v933
    %v937 = vxor.u32 %v936, 2147483648
    %v938 = vmul.f32 %v937, 1.442695
    %v939 = vpow.pop %v938
    %v940 = vadd.f32 %v939, 1.0
    %v941 = vrcp.pop %v940
    %v942 = vmul.f32 %v940, %v941
    %v943 = vsub.f32 1.0, %v942
    %v944 = vmul.f32 %v941, %v943
    %v945 = vadd.f32 %v941, %v944
    %vm946 = vweird.f32 %v940
    %vm947 = vweird.f32 %v941
    %vm948 = vmor %vm946, %vm947
    %v949 = vsel %vm948, %v941, %v945
    %v950 = vand.u32 2147483647, %v940
    %vm951 = vcmp.eq.f32.partialorder %v950, 8.507059e+37
    %v952 = vand.u32 %v940, 2147483648
    %v953 = vor.u32 1.1754944e-38, %v952
    %v954 = vsel %vm951, %v953, %v949
    %v955 = vmul.f32 1.0, %v954
    %957 = vrot.lane.b32.xlu0 %v933, 64
    %v958 = vpop.permute.xlu0 %957
    %v960 = vmul.f32 %v955, %v958
    %962 = vrot.lane.b32.xlu0 %v960, 64
    %v963 = vpop.permute.xlu0 %962
    %v965 = vadd.f32 %v259, %v963
    %v966 = vtanh.pop %v965
    %v967 = vsub.f32 1.0, %v955
    %969 = vrot.lane.b32.xlu0 %v966, 96
    %v970 = vpop.permute.xlu0 %969
    %v972 = vmul.f32 %v967, %v970
    %v973 = vmul.f32 %v955, %v843
    %v974 = vadd.f32 %v972, %v973
    %v975 = vpack.c.bf16 %v974, %v974
    %977 = vrot.lane.b32.xlu0 %v975, 96
    %v978 = vpop.permute.xlu0 %977
    %s980 = scalar_lea.vmem [#allocation2], 40
    %981 = vst.msk [vmem:[%s980] sm:$0xf] %vm349, %v978
    %v982 = vunpack.c.l.b16 %v910
    %v983 = vpack.c.b16 %v982, %v982
    %984 = vrot.lane.b32.xlu0 %v983, 96
    %v985 = vpop.permute.xlu0 %984
    %v987 = vsel %vm288, %v985, 0
    %989 = vmatpush.bf16.msra.mxu0 0
    %990 = vmatpush.bf16.msra.mxu0 0
    %991 = vmatpush.bf16.msra.mxu0 0
    %992 = vmatpush.bf16.msra.mxu0 0
    %993 = vmatpush.bf16.msra.mxu0 0
    %994 = vmatpush.bf16.msra.mxu0 0
    %995 = vmatpush.bf16.msra.mxu0 %v285
    %996 = vmatpush.bf16.msra.mxu0 %v284
    %997 = vmatmul.bf16.gmra.mxu0 %v987
    %v998 = vpop.f32.mrf.mxu0
    %v999 = vadd.f32 %v274, %v998
    %v1000 = vpop.f32.mrf.mxu0
    %1001 = vdwg.mxu0
    %v1002 = vadd.f32 %v261, %v999
    %v1003 = vxor.u32 %v1002, 2147483648
    %v1004 = vmul.f32 %v1003, 1.442695
    %v1005 = vpow.pop %v1004
    %v1006 = vadd.f32 %v1005, 1.0
    %v1007 = vrcp.pop %v1006
    %v1008 = vmul.f32 %v1006, %v1007
    %v1009 = vsub.f32 1.0, %v1008
    %v1010 = vmul.f32 %v1007, %v1009
    %v1011 = vadd.f32 %v1007, %v1010
    %vm1012 = vweird.f32 %v1006
    %vm1013 = vweird.f32 %v1007
    %vm1014 = vmor %vm1012, %vm1013
    %v1015 = vsel %vm1014, %v1007, %v1011
    %v1016 = vand.u32 2147483647, %v1006
    %vm1017 = vcmp.eq.f32.partialorder %v1016, 8.507059e+37
    %v1018 = vand.u32 %v1006, 2147483648
    %v1019 = vor.u32 1.1754944e-38, %v1018
    %v1020 = vsel %vm1017, %v1019, %v1015
    %v1021 = vmul.f32 1.0, %v1020
    %1023 = vrot.lane.b32.xlu0 %v999, 64
    %v1024 = vpop.permute.xlu0 %1023
    %v1026 = vmul.f32 %v1021, %v1024
    %1028 = vrot.lane.b32.xlu0 %v1026, 64
    %v1029 = vpop.permute.xlu0 %1028
    %v1031 = vadd.f32 %v261, %v1029
    %v1032 = vtanh.pop %v1031
    %v1033 = vsub.f32 1.0, %v1021
    %1035 = vrot.lane.b32.xlu0 %v1032, 96
    %v1036 = vpop.permute.xlu0 %1035
    %v1038 = vmul.f32 %v1033, %v1036
    %v1039 = vmul.f32 %v1021, %v909
    %v1040 = vadd.f32 %v1038, %v1039
    %v1041 = vpack.c.bf16 %v1040, %v1040
    %1043 = vrot.lane.b32.xlu0 %v1041, 96
    %v1044 = vpop.permute.xlu0 %1043
    %1046 = vst.msk [vmem:[%s980 + $0x4] sm:$0xf] %vm349, %v1044
    %v1047 = vunpack.c.l.b16 %v975
    %v1048 = vpack.c.b16 %v1047, %v1047
    %1049 = vrot.lane.b32.xlu0 %v1048, 96
    %v1050 = vpop.permute.xlu0 %1049
    %v1052 = vsel %vm288, %v1050, 0
    %1054 = vmatpush.bf16.msra.mxu0 0
    %1055 = vmatpush.bf16.msra.mxu0 0
    %1056 = vmatpush.bf16.msra.mxu0 0
    %1057 = vmatpush.bf16.msra.mxu0 0
    %1058 = vmatpush.bf16.msra.mxu0 0
    %1059 = vmatpush.bf16.msra.mxu0 0
    %1060 = vmatpush.bf16.msra.mxu0 %v285
    %1061 = vmatpush.bf16.msra.mxu0 %v284
    %1062 = vmatmul.bf16.gmra.mxu0 %v1052
    %v1063 = vpop.f32.mrf.mxu0
    %v1064 = vadd.f32 %v274, %v1063
    %v1065 = vpop.f32.mrf.mxu0
    %1066 = vdwg.mxu0
    %v1067 = vadd.f32 %v264, %v1064
    %v1068 = vxor.u32 %v1067, 2147483648
    %v1069 = vmul.f32 %v1068, 1.442695
    %v1070 = vpow.pop %v1069
    %v1071 = vadd.f32 %v1070, 1.0
    %v1072 = vrcp.pop %v1071
    %v1073 = vmul.f32 %v1071, %v1072
    %v1074 = vsub.f32 1.0, %v1073
    %v1075 = vmul.f32 %v1072, %v1074
    %v1076 = vadd.f32 %v1072, %v1075
    %vm1077 = vweird.f32 %v1071
    %vm1078 = vweird.f32 %v1072
    %vm1079 = vmor %vm1077, %vm1078
    %v1080 = vsel %vm1079, %v1072, %v1076
    %v1081 = vand.u32 2147483647, %v1071
    %vm1082 = vcmp.eq.f32.partialorder %v1081, 8.507059e+37
    %v1083 = vand.u32 %v1071, 2147483648
    %v1084 = vor.u32 1.1754944e-38, %v1083
    %v1085 = vsel %vm1082, %v1084, %v1080
    %v1086 = vmul.f32 1.0, %v1085
    %1088 = vrot.lane.b32.xlu0 %v1064, 64
    %v1089 = vpop.permute.xlu0 %1088
    %v1091 = vmul.f32 %v1086, %v1089
    %1093 = vrot.lane.b32.xlu0 %v1091, 64
    %v1094 = vpop.permute.xlu0 %1093
    %v1096 = vadd.f32 %v264, %v1094
    %v1097 = vtanh.pop %v1096
    %v1098 = vsub.f32 1.0, %v1086
    %1100 = vrot.lane.b32.xlu0 %v1097, 96
    %v1101 = vpop.permute.xlu0 %1100
    %v1103 = vmul.f32 %v1098, %v1101
    %v1104 = vmul.f32 %v1086, %v974
    %v1105 = vadd.f32 %v1103, %v1104
    %v1106 = vpack.c.bf16 %v1105, %v1105
    %1108 = vrot.lane.b32.xlu0 %v1106, 96
    %v1109 = vpop.permute.xlu0 %1108
    %s1111 = scalar_lea.vmem [#allocation2], 48
    %1112 = vst.msk [vmem:[%s1111] sm:$0xf] %vm349, %v1109
    %v1113 = vunpack.c.l.b16 %v1041
    %v1114 = vpack.c.b16 %v1113, %v1113
    %1115 = vrot.lane.b32.xlu0 %v1114, 96
    %v1116 = vpop.permute.xlu0 %1115
    %v1118 = vsel %vm288, %v1116, 0
    %1120 = vmatpush.bf16.msra.mxu0 0
    %1121 = vmatpush.bf16.msra.mxu0 0
    %1122 = vmatpush.bf16.msra.mxu0 0
    %1123 = vmatpush.bf16.msra.mxu0 0
    %1124 = vmatpush.bf16.msra.mxu0 0
    %1125 = vmatpush.bf16.msra.mxu0 0
    %1126 = vmatpush.bf16.msra.mxu0 %v285
    %1127 = vmatpush.bf16.msra.mxu0 %v284
    %1128 = vmatmul.bf16.gmra.mxu0 %v1118
    %v1129 = vpop.f32.mrf.mxu0
    %v1130 = vadd.f32 %v274, %v1129
    %v1131 = vpop.f32.mrf.mxu0
    %1132 = vdwg.mxu0
    %v1133 = vadd.f32 %v266, %v1130
    %v1134 = vxor.u32 %v1133, 2147483648
    %v1135 = vmul.f32 %v1134, 1.442695
    %v1136 = vpow.pop %v1135
    %v1137 = vadd.f32 %v1136, 1.0
    %v1138 = vrcp.pop %v1137
    %v1139 = vmul.f32 %v1137, %v1138
    %v1140 = vsub.f32 1.0, %v1139
    %v1141 = vmul.f32 %v1138, %v1140
    %v1142 = vadd.f32 %v1138, %v1141
    %vm1143 = vweird.f32 %v1137
    %vm1144 = vweird.f32 %v1138
    %vm1145 = vmor %vm1143, %vm1144
    %v1146 = vsel %vm1145, %v1138, %v1142
    %v1147 = vand.u32 2147483647, %v1137
    %vm1148 = vcmp.eq.f32.partialorder %v1147, 8.507059e+37
    %v1149 = vand.u32 %v1137, 2147483648
    %v1150 = vor.u32 1.1754944e-38, %v1149
    %v1151 = vsel %vm1148, %v1150, %v1146
    %v1152 = vmul.f32 1.0, %v1151
    %1154 = vrot.lane.b32.xlu0 %v1130, 64
    %v1155 = vpop.permute.xlu0 %1154
    %v1157 = vmul.f32 %v1152, %v1155
    %1159 = vrot.lane.b32.xlu0 %v1157, 64
    %v1160 = vpop.permute.xlu0 %1159
    %v1162 = vadd.f32 %v266, %v1160
    %v1163 = vtanh.pop %v1162
    %v1164 = vsub.f32 1.0, %v1152
    %1166 = vrot.lane.b32.xlu0 %v1163, 96
    %v1167 = vpop.permute.xlu0 %1166
    %v1169 = vmul.f32 %v1164, %v1167
    %v1170 = vmul.f32 %v1152, %v1040
    %v1171 = vadd.f32 %v1169, %v1170
    %v1172 = vpack.c.bf16 %v1171, %v1171
    %1174 = vrot.lane.b32.xlu0 %v1172, 96
    %v1175 = vpop.permute.xlu0 %1174
    %1177 = vst.msk [vmem:[%s1111 + $0x4] sm:$0xf] %vm349, %v1175
    %v1178 = vunpack.c.l.b16 %v1106
    %v1179 = vpack.c.b16 %v1178, %v1178
    %1180 = vrot.lane.b32.xlu0 %v1179, 96
    %v1181 = vpop.permute.xlu0 %1180
    %v1183 = vsel %vm288, %v1181, 0
    %1185 = vmatpush.bf16.msra.mxu0 0
    %1186 = vmatpush.bf16.msra.mxu0 0
    %1187 = vmatpush.bf16.msra.mxu0 0
    %1188 = vmatpush.bf16.msra.mxu0 0
    %1189 = vmatpush.bf16.msra.mxu0 0
    %1190 = vmatpush.bf16.msra.mxu0 0
    %1191 = vmatpush.bf16.msra.mxu0 %v285
    %1192 = vmatpush.bf16.msra.mxu0 %v284
    %1193 = vmatmul.bf16.gmra.mxu0 %v1183
    %v1194 = vpop.f32.mrf.mxu0
    %v1195 = vadd.f32 %v274, %v1194
    %v1196 = vpop.f32.mrf.mxu0
    %1197 = vdwg.mxu0
    %v1198 = vadd.f32 %v269, %v1195
    %v1199 = vxor.u32 %v1198, 2147483648
    %v1200 = vmul.f32 %v1199, 1.442695
    %v1201 = vpow.pop %v1200
    %v1202 = vadd.f32 %v1201, 1.0
    %v1203 = vrcp.pop %v1202
    %v1204 = vmul.f32 %v1202, %v1203
    %v1205 = vsub.f32 1.0, %v1204
    %v1206 = vmul.f32 %v1203, %v1205
    %v1207 = vadd.f32 %v1203, %v1206
    %vm1208 = vweird.f32 %v1202
    %vm1209 = vweird.f32 %v1203
    %vm1210 = vmor %vm1208, %vm1209
    %v1211 = vsel %vm1210, %v1203, %v1207
    %v1212 = vand.u32 2147483647, %v1202
    %vm1213 = vcmp.eq.f32.partialorder %v1212, 8.507059e+37
    %v1214 = vand.u32 %v1202, 2147483648
    %v1215 = vor.u32 1.1754944e-38, %v1214
    %v1216 = vsel %vm1213, %v1215, %v1211
    %v1217 = vmul.f32 1.0, %v1216
    %1219 = vrot.lane.b32.xlu0 %v1195, 64
    %v1220 = vpop.permute.xlu0 %1219
    %v1222 = vmul.f32 %v1217, %v1220
    %1224 = vrot.lane.b32.xlu0 %v1222, 64
    %v1225 = vpop.permute.xlu0 %1224
    %v1227 = vadd.f32 %v269, %v1225
    %v1228 = vtanh.pop %v1227
    %v1229 = vsub.f32 1.0, %v1217
    %1231 = vrot.lane.b32.xlu0 %v1228, 96
    %v1232 = vpop.permute.xlu0 %1231
    %v1234 = vmul.f32 %v1229, %v1232
    %v1235 = vmul.f32 %v1217, %v1105
    %v1236 = vadd.f32 %v1234, %v1235
    %v1237 = vpack.c.bf16 %v1236, %v1236
    %1239 = vrot.lane.b32.xlu0 %v1237, 96
    %v1240 = vpop.permute.xlu0 %1239
    %s1242 = scalar_lea.vmem [#allocation2], 56
    %1243 = vst.msk [vmem:[%s1242] sm:$0xf] %vm349, %v1240
    %v1244 = vunpack.c.l.b16 %v1172
    %v1245 = vpack.c.b16 %v1244, %v1244
    %1246 = vrot.lane.b32.xlu0 %v1245, 96
    %v1247 = vpop.permute.xlu0 %1246
    %v1249 = vsel %vm288, %v1247, 0
    %1251 = vmatpush.bf16.msra.mxu0 0
    %1252 = vmatpush.bf16.msra.mxu0 0
    %1253 = vmatpush.bf16.msra.mxu0 0
    %1254 = vmatpush.bf16.msra.mxu0 0
    %1255 = vmatpush.bf16.msra.mxu0 0
    %1256 = vmatpush.bf16.msra.mxu0 0
    %1257 = vmatpush.bf16.msra.mxu0 %v285
    %1258 = vmatpush.bf16.msra.mxu0 %v284
    %1259 = vmatmul.bf16.gmra.mxu0 %v1249
    %v1260 = vpop.f32.mrf.mxu0
    %v1261 = vadd.f32 %v274, %v1260
    %v1262 = vpop.f32.mrf.mxu0
    %1263 = vdwg.mxu0
    %v1264 = vadd.f32 %v271, %v1261
    %v1265 = vxor.u32 %v1264, 2147483648
    %v1266 = vmul.f32 %v1265, 1.442695
    %v1267 = vpow.pop %v1266
    %v1268 = vadd.f32 %v1267, 1.0
    %v1269 = vrcp.pop %v1268
    %v1270 = vmul.f32 %v1268, %v1269
    %v1271 = vsub.f32 1.0, %v1270
    %v1272 = vmul.f32 %v1269, %v1271
    %v1273 = vadd.f32 %v1269, %v1272
    %vm1274 = vweird.f32 %v1268
    %vm1275 = vweird.f32 %v1269
    %vm1276 = vmor %vm1274, %vm1275
    %v1277 = vsel %vm1276, %v1269, %v1273
    %v1278 = vand.u32 2147483647, %v1268
    %vm1279 = vcmp.eq.f32.partialorder %v1278, 8.507059e+37
    %v1280 = vand.u32 %v1268, 2147483648
    %v1281 = vor.u32 1.1754944e-38, %v1280
    %v1282 = vsel %vm1279, %v1281, %v1277
    %v1283 = vmul.f32 1.0, %v1282
    %1285 = vrot.lane.b32.xlu0 %v1261, 64
    %v1286 = vpop.permute.xlu0 %1285
    %v1288 = vmul.f32 %v1283, %v1286
    %1290 = vrot.lane.b32.xlu0 %v1288, 64
    %v1291 = vpop.permute.xlu0 %1290
    %v1293 = vadd.f32 %v271, %v1291
    %v1294 = vtanh.pop %v1293
    %v1295 = vsub.f32 1.0, %v1283
    %1297 = vrot.lane.b32.xlu0 %v1294, 96
    %v1298 = vpop.permute.xlu0 %1297
    %v1300 = vmul.f32 %v1295, %v1298
    %v1301 = vmul.f32 %v1283, %v1171
    %v1302 = vadd.f32 %v1300, %v1301
    %v1303 = vpack.c.bf16 %v1302, %v1302
    %1305 = vrot.lane.b32.xlu0 %v1303, 96
    %v1306 = vpop.permute.xlu0 %1305
    %1308 = vst.msk [vmem:[%s1242 + $0x4] sm:$0xf] %vm349, %v1306
    %v1309 = vld [vmem:[#allocation2] sm:$0xf]
    %v1310 = vld [vmem:[#allocation2 + $0x4] sm:$0xf]
    %v1311 = vld [vmem:[#allocation2 + $0x8] sm:$0xf]
    %v1312 = vld [vmem:[#allocation2 + $0xc] sm:$0xf]
    %v1313 = vld [vmem:[#allocation2 + $0x10] sm:$0xf]
    %v1314 = vld [vmem:[#allocation2 + $0x14] sm:$0xf]
    %v1315 = vld [vmem:[#allocation2 + $0x18] sm:$0xf]
    %v1316 = vld [vmem:[#allocation2 + $0x1c] sm:$0xf]
    %v1317 = vld [vmem:[#allocation2 + $0x20] sm:$0xf]
    %v1318 = vld [vmem:[#allocation2 + $0x24] sm:$0xf]
    %v1319 = vld [vmem:[#allocation2 + $0x28] sm:$0xf]
    %v1320 = vld [vmem:[#allocation2 + $0x2c] sm:$0xf]
    %v1321 = vld [vmem:[#allocation2 + $0x30] sm:$0xf]
    %v1322 = vld [vmem:[#allocation2 + $0x34] sm:$0xf]
    %v1323 = vld [vmem:[#allocation2 + $0x38] sm:$0xf]
    %v1324 = vld [vmem:[#allocation2 + $0x3c] sm:$0xf]
    %v1325 = vld [vmem:[%s6] sm:$0xf]
    %v1326 = vld [vmem:[%s6 + $0x4] sm:$0xf]
    %v1327 = vld [vmem:[%s6 + $0x8] sm:$0xf]
    %v1328 = vld [vmem:[%s6 + $0xc] sm:$0xf]
    %v1329 = vld [vmem:[#allocation12] sm:$0x1]
    %v1331 = vperm.slane %v1329, 0
    %v1349 = vunpack.c.l.b16 %v1309
    %v1350 = vunpack.c.l.b16 %v1310
    %v1351 = vunpack.c.l.b16 %v1311
    %v1352 = vunpack.c.l.b16 %v1312
    %v1353 = vunpack.c.l.b16 %v1313
    %v1354 = vunpack.c.l.b16 %v1314
    %v1355 = vunpack.c.l.b16 %v1315
    %v1356 = vunpack.c.l.b16 %v1316
    %v1357 = vunpack.c.l.b16 %v1317
    %v1358 = vunpack.c.l.b16 %v1318
    %v1359 = vunpack.c.l.b16 %v1319
    %v1360 = vunpack.c.l.b16 %v1320
    %v1361 = vunpack.c.l.b16 %v1321
    %v1362 = vunpack.c.l.b16 %v1322
    %v1363 = vunpack.c.l.b16 %v1323
    %v1364 = vunpack.c.l.b16 %v1324
    %v1365 = vpack.c.b16 %v1350, %v1349
    %v1366 = vpack.c.b16 %v1352, %v1351
    %v1367 = vpack.c.b16 %v1354, %v1353
    %v1368 = vpack.c.b16 %v1356, %v1355
    %v1369 = vpack.c.b16 %v1358, %v1357
    %v1370 = vpack.c.b16 %v1360, %v1359
    %v1371 = vpack.c.b16 %v1362, %v1361
    %v1372 = vpack.c.b16 %v1364, %v1363
    %v1377 = vunpack.c.l.b16 %v1325
    %v1378 = vunpack.c.l.b16 %v1326
    %v1379 = vunpack.c.l.b16 %v1327
    %v1380 = vunpack.c.l.b16 %v1328
    %v1381 = vpack.c.b16 %v1378, %v1377
    %v1382 = vpack.c.b16 %v1380, %v1379
    %v1386 = vsel %vm288, %v1365, 0
    %v1389 = vsel %vm288, %v1366, 0
    %v1392 = vsel %vm288, %v1367, 0
    %v1395 = vsel %vm288, %v1368, 0
    %v1398 = vsel %vm288, %v1369, 0
    %v1401 = vsel %vm288, %v1370, 0
    %v1404 = vsel %vm288, %v1371, 0
    %v1407 = vsel %vm288, %v1372, 0
    %1409 = vmatpush.bf16.msra.mxu0 0
    %1410 = vmatpush.bf16.msra.mxu0 0
    %1411 = vmatpush.bf16.msra.mxu0 0
    %1412 = vmatpush.bf16.msra.mxu0 0
    %1413 = vmatpush.bf16.msra.mxu0 0
    %1414 = vmatpush.bf16.msra.mxu0 0
    %1415 = vmatpush.bf16.msra.mxu0 %v1382
    %1416 = vmatpush.bf16.msra.mxu0 %v1381
    %1417 = vmatmul.bf16.gmra.mxu0 %v1386
    %v1418 = vpop.f32.mrf.mxu0
    %v1419 = vadd.f32 %v1331, %v1418
    %v1420 = vpop.f32.mrf.mxu0
    %v1421 = vadd.f32 %v1331, %v1420
    %1422 = vmatmul.bf16.gmra.mxu0 %v1389
    %v1423 = vpop.f32.mrf.mxu0
    %v1424 = vadd.f32 %v1331, %v1423
    %v1425 = vpop.f32.mrf.mxu0
    %v1426 = vadd.f32 %v1331, %v1425
    %1427 = vmatmul.bf16.gmra.mxu0 %v1392
    %v1428 = vpop.f32.mrf.mxu0
    %v1429 = vadd.f32 %v1331, %v1428
    %v1430 = vpop.f32.mrf.mxu0
    %v1431 = vadd.f32 %v1331, %v1430
    %1432 = vmatmul.bf16.gmra.mxu0 %v1395
    %v1433 = vpop.f32.mrf.mxu0
    %v1434 = vadd.f32 %v1331, %v1433
    %v1435 = vpop.f32.mrf.mxu0
    %v1436 = vadd.f32 %v1331, %v1435
    %1437 = vmatmul.bf16.gmra.mxu0 %v1398
    %v1438 = vpop.f32.mrf.mxu0
    %v1439 = vadd.f32 %v1331, %v1438
    %v1440 = vpop.f32.mrf.mxu0
    %v1441 = vadd.f32 %v1331, %v1440
    %1442 = vmatmul.bf16.gmra.mxu0 %v1401
    %v1443 = vpop.f32.mrf.mxu0
    %v1444 = vadd.f32 %v1331, %v1443
    %v1445 = vpop.f32.mrf.mxu0
    %v1446 = vadd.f32 %v1331, %v1445
    %1447 = vmatmul.bf16.gmra.mxu0 %v1404
    %v1448 = vpop.f32.mrf.mxu0
    %v1449 = vadd.f32 %v1331, %v1448
    %v1450 = vpop.f32.mrf.mxu0
    %v1451 = vadd.f32 %v1331, %v1450
    %1452 = vmatmul.bf16.gmra.mxu0 %v1407
    %v1453 = vpop.f32.mrf.mxu0
    %v1454 = vadd.f32 %v1331, %v1453
    %v1455 = vpop.f32.mrf.mxu0
    %v1456 = vadd.f32 %v1331, %v1455
    %1457 = vdwg.mxu0
    %v1458 = vmax.f32 %v1419, 0.0
    %v1459 = vmax.f32 %v1421, 0.0
    %v1460 = vmax.f32 %v1424, 0.0
    %v1461 = vmax.f32 %v1426, 0.0
    %v1462 = vmax.f32 %v1429, 0.0
    %v1463 = vmax.f32 %v1431, 0.0
    %v1464 = vmax.f32 %v1434, 0.0
    %v1465 = vmax.f32 %v1436, 0.0
    %v1466 = vmax.f32 %v1439, 0.0
    %v1467 = vmax.f32 %v1441, 0.0
    %v1468 = vmax.f32 %v1444, 0.0
    %v1469 = vmax.f32 %v1446, 0.0
    %v1470 = vmax.f32 %v1449, 0.0
    %v1471 = vmax.f32 %v1451, 0.0
    %v1472 = vmax.f32 %v1454, 0.0
    %v1473 = vmax.f32 %v1456, 0.0
    %v1474 = vld [vmem:[%s8] sm:$0x1]
    %v1476 = vperm.slane %v1474, 0
    %v1478 = vmul.f32 %v1458, %v1476
    %v1479 = vmul.f32 %v1459, %v1476
    %v1480 = vmul.f32 %v1460, %v1476
    %v1481 = vmul.f32 %v1461, %v1476
    %v1482 = vmul.f32 %v1462, %v1476
    %v1483 = vmul.f32 %v1463, %v1476
    %v1484 = vmul.f32 %v1464, %v1476
    %v1485 = vmul.f32 %v1465, %v1476
    %v1486 = vmul.f32 %v1466, %v1476
    %v1487 = vmul.f32 %v1467, %v1476
    %v1488 = vmul.f32 %v1468, %v1476
    %v1489 = vmul.f32 %v1469, %v1476
    %v1490 = vmul.f32 %v1470, %v1476
    %v1491 = vmul.f32 %v1471, %v1476
    %v1492 = vmul.f32 %v1472, %v1476
    %v1493 = vmul.f32 %v1473, %v1476
    %v1494 = vsel %vm199, %v1478, 0.0
    %1495 = vadd.xlane.f32.xlu0 %v1494
    %v1496 = vpop.xlane.xlu0 %1495
    %v1497 = vsel %vm199, %v1479, 0.0
    %1498 = vadd.xlane.f32.xlu0 %v1497
    %v1499 = vpop.xlane.xlu0 %1498
    %v1500 = vsel %vm199, %v1480, 0.0
    %1501 = vadd.xlane.f32.xlu0 %v1500
    %v1502 = vpop.xlane.xlu0 %1501
    %v1503 = vsel %vm199, %v1481, 0.0
    %1504 = vadd.xlane.f32.xlu0 %v1503
    %v1505 = vpop.xlane.xlu0 %1504
    %v1506 = vsel %vm199, %v1482, 0.0
    %1507 = vadd.xlane.f32.xlu0 %v1506
    %v1508 = vpop.xlane.xlu0 %1507
    %v1509 = vsel %vm199, %v1483, 0.0
    %1510 = vadd.xlane.f32.xlu0 %v1509
    %v1511 = vpop.xlane.xlu0 %1510
    %v1512 = vsel %vm199, %v1484, 0.0
    %1513 = vadd.xlane.f32.xlu0 %v1512
    %v1514 = vpop.xlane.xlu0 %1513
    %v1515 = vsel %vm199, %v1485, 0.0
    %1516 = vadd.xlane.f32.xlu0 %v1515
    %v1517 = vpop.xlane.xlu0 %1516
    %v1518 = vsel %vm199, %v1486, 0.0
    %1519 = vadd.xlane.f32.xlu0 %v1518
    %v1520 = vpop.xlane.xlu0 %1519
    %v1521 = vsel %vm199, %v1487, 0.0
    %1522 = vadd.xlane.f32.xlu0 %v1521
    %v1523 = vpop.xlane.xlu0 %1522
    %v1524 = vsel %vm199, %v1488, 0.0
    %1525 = vadd.xlane.f32.xlu0 %v1524
    %v1526 = vpop.xlane.xlu0 %1525
    %v1527 = vsel %vm199, %v1489, 0.0
    %1528 = vadd.xlane.f32.xlu0 %v1527
    %v1529 = vpop.xlane.xlu0 %1528
    %v1530 = vsel %vm199, %v1490, 0.0
    %1531 = vadd.xlane.f32.xlu0 %v1530
    %v1532 = vpop.xlane.xlu0 %1531
    %v1533 = vsel %vm199, %v1491, 0.0
    %1534 = vadd.xlane.f32.xlu0 %v1533
    %v1535 = vpop.xlane.xlu0 %1534
    %v1536 = vsel %vm199, %v1492, 0.0
    %1537 = vadd.xlane.f32.xlu0 %v1536
    %v1538 = vpop.xlane.xlu0 %1537
    %v1539 = vsel %vm199, %v1493, 0.0
    %1540 = vadd.xlane.f32.xlu0 %v1539
    %v1541 = vpop.xlane.xlu0 %1540
    %v1542 = vld [vmem:[#allocation3] sm:$0x1]
    %v1544 = vperm.slane %v1542, 0
    %v1546 = vadd.f32 %v1496, %v1544
    %v1547 = vadd.f32 %v1499, %v1544
    %v1548 = vadd.f32 %v1502, %v1544
    %v1549 = vadd.f32 %v1505, %v1544
    %v1550 = vadd.f32 %v1508, %v1544
    %v1551 = vadd.f32 %v1511, %v1544
    %v1552 = vadd.f32 %v1514, %v1544
    %v1553 = vadd.f32 %v1517, %v1544
    %v1554 = vadd.f32 %v1520, %v1544
    %v1555 = vadd.f32 %v1523, %v1544
    %v1556 = vadd.f32 %v1526, %v1544
    %v1557 = vadd.f32 %v1529, %v1544
    %v1558 = vadd.f32 %v1532, %v1544
    %v1559 = vadd.f32 %v1535, %v1544
    %v1560 = vadd.f32 %v1538, %v1544
    %v1561 = vadd.f32 %v1541, %v1544
    %v1562 = vmax.f32 %v1546, %v1548
    %v1563 = vmax.f32 %v1547, %v1549
    %v1564 = vmax.f32 %v1562, %v1550
    %v1565 = vmax.f32 %v1563, %v1551
    %v1566 = vmax.f32 %v1564, %v1552
    %v1567 = vmax.f32 %v1565, %v1553
    %v1568 = vmax.f32 %v1566, %v1554
    %v1569 = vmax.f32 %v1567, %v1555
    %v1570 = vmax.f32 %v1568, %v1556
    %v1571 = vmax.f32 %v1569, %v1557
    %v1572 = vmax.f32 %v1570, %v1558
    %v1573 = vmax.f32 %v1571, %v1559
    %v1574 = vmax.f32 %v1572, %v1560
    %v1575 = vmax.f32 %v1573, %v1561
    %v1576 = vsub.f32 %v1546, %v1574
    %v1577 = vsub.f32 %v1547, %v1575
    %v1578 = vmul.f32 %v1576, 1.442695
    %v1579 = vpow.pop %v1578
    %v1580 = vmul.f32 %v1577, 1.442695
    %v1581 = vpow.pop %v1580
    %v1582 = vadd.f32 %v1579, 0.0
    %v1583 = vadd.f32 %v1581, 0.0
    %v1584 = vld [vmem:[#allocation2] sm:$0xf]
    %v1585 = vld [vmem:[#allocation2 + $0x4] sm:$0xf]
    %v1586 = vunpack.c.l.bf16 %v1584
    %v1587 = vunpack.c.l.bf16 %v1585
    %1589 = vset.pattern.permute.xlu0 0
    %1590 = vperm.xlu0 %1589, %v1579
    %v1591 = vpop.permute.xlu0 %1590
    %1594 = vset.pattern.permute.xlu0 0
    %1595 = vperm.xlu0 %1594, %v1581
    %v1596 = vpop.permute.xlu0 %1595
    %v1598 = vmul.f32 %v1586, %v1591
    %v1599 = vmul.f32 %v1587, %v1596
    %v1600 = vadd.f32 %v1598, 0.0
    %v1601 = vadd.f32 %v1599, 0.0
    %v1602 = vsub.f32 %v1548, %v1574
    %v1603 = vsub.f32 %v1549, %v1575
    %v1604 = vmul.f32 %v1602, 1.442695
    %v1605 = vpow.pop %v1604
    %v1606 = vmul.f32 %v1603, 1.442695
    %v1607 = vpow.pop %v1606
    %v1608 = vadd.f32 %v1582, %v1605
    %v1609 = vadd.f32 %v1583, %v1607
    %v1610 = vld [vmem:[%s456] sm:$0xf]
    %v1611 = vld [vmem:[%s456 + $0x4] sm:$0xf]
    %v1612 = vunpack.c.l.bf16 %v1610
    %v1613 = vunpack.c.l.bf16 %v1611
    %1615 = vset.pattern.permute.xlu0 0
    %1616 = vperm.xlu0 %1615, %v1605
    %v1617 = vpop.permute.xlu0 %1616
    %1620 = vset.pattern.permute.xlu0 0
    %1621 = vperm.xlu0 %1620, %v1607
    %v1622 = vpop.permute.xlu0 %1621
    %v1624 = vmul.f32 %v1612, %v1617
    %v1625 = vmul.f32 %v1613, %v1622
    %v1626 = vadd.f32 %v1600, %v1624
    %v1627 = vadd.f32 %v1601, %v1625
    %v1628 = vsub.f32 %v1550, %v1574
    %v1629 = vsub.f32 %v1551, %v1575
    %v1630 = vmul.f32 %v1628, 1.442695
    %v1631 = vpow.pop %v1630
    %v1632 = vmul.f32 %v1629, 1.442695
    %v1633 = vpow.pop %v1632
    %v1634 = vadd.f32 %v1608, %v1631
    %v1635 = vadd.f32 %v1609, %v1633
    %v1636 = vld [vmem:[%s587] sm:$0xf]
    %v1637 = vld [vmem:[%s587 + $0x4] sm:$0xf]
    %v1638 = vunpack.c.l.bf16 %v1636
    %v1639 = vunpack.c.l.bf16 %v1637
    %1641 = vset.pattern.permute.xlu0 0
    %1642 = vperm.xlu0 %1641, %v1631
    %v1643 = vpop.permute.xlu0 %1642
    %1646 = vset.pattern.permute.xlu0 0
    %1647 = vperm.xlu0 %1646, %v1633
    %v1648 = vpop.permute.xlu0 %1647
    %v1650 = vmul.f32 %v1638, %v1643
    %v1651 = vmul.f32 %v1639, %v1648
    %v1652 = vadd.f32 %v1626, %v1650
    %v1653 = vadd.f32 %v1627, %v1651
    %v1654 = vsub.f32 %v1552, %v1574
    %v1655 = vsub.f32 %v1553, %v1575
    %v1656 = vmul.f32 %v1654, 1.442695
    %v1657 = vpow.pop %v1656
    %v1658 = vmul.f32 %v1655, 1.442695
    %v1659 = vpow.pop %v1658
    %v1660 = vadd.f32 %v1634, %v1657
    %v1661 = vadd.f32 %v1635, %v1659
    %v1662 = vld [vmem:[%s718] sm:$0xf]
    %v1663 = vld [vmem:[%s718 + $0x4] sm:$0xf]
    %v1664 = vunpack.c.l.bf16 %v1662
    %v1665 = vunpack.c.l.bf16 %v1663
    %1667 = vset.pattern.permute.xlu0 0
    %1668 = vperm.xlu0 %1667, %v1657
    %v1669 = vpop.permute.xlu0 %1668
    %1672 = vset.pattern.permute.xlu0 0
    %1673 = vperm.xlu0 %1672, %v1659
    %v1674 = vpop.permute.xlu0 %1673
    %v1676 = vmul.f32 %v1664, %v1669
    %v1677 = vmul.f32 %v1665, %v1674
    %v1678 = vadd.f32 %v1652, %v1676
    %v1679 = vadd.f32 %v1653, %v1677
    %v1680 = vsub.f32 %v1554, %v1574
    %v1681 = vsub.f32 %v1555, %v1575
    %v1682 = vmul.f32 %v1680, 1.442695
    %v1683 = vpow.pop %v1682
    %v1684 = vmul.f32 %v1681, 1.442695
    %v1685 = vpow.pop %v1684
    %v1686 = vadd.f32 %v1660, %v1683
    %v1687 = vadd.f32 %v1661, %v1685
    %v1688 = vld [vmem:[%s849] sm:$0xf]
    %v1689 = vld [vmem:[%s849 + $0x4] sm:$0xf]
    %v1690 = vunpack.c.l.bf16 %v1688
    %v1691 = vunpack.c.l.bf16 %v1689
    %1693 = vset.pattern.permute.xlu0 0
    %1694 = vperm.xlu0 %1693, %v1683
    %v1695 = vpop.permute.xlu0 %1694
    %1698 = vset.pattern.permute.xlu0 0
    %1699 = vperm.xlu0 %1698, %v1685
    %v1700 = vpop.permute.xlu0 %1699
    %v1702 = vmul.f32 %v1690, %v1695
    %v1703 = vmul.f32 %v1691, %v1700
    %v1704 = vadd.f32 %v1678, %v1702
    %v1705 = vadd.f32 %v1679, %v1703
    %v1706 = vsub.f32 %v1556, %v1574
    %v1707 = vsub.f32 %v1557, %v1575
    %v1708 = vmul.f32 %v1706, 1.442695
    %v1709 = vpow.pop %v1708
    %v1710 = vmul.f32 %v1707, 1.442695
    %v1711 = vpow.pop %v1710
    %v1712 = vadd.f32 %v1686, %v1709
    %v1713 = vadd.f32 %v1687, %v1711
    %v1714 = vld [vmem:[%s980] sm:$0xf]
    %v1715 = vld [vmem:[%s980 + $0x4] sm:$0xf]
    %v1716 = vunpack.c.l.bf16 %v1714
    %v1717 = vunpack.c.l.bf16 %v1715
    %1719 = vset.pattern.permute.xlu0 0
    %1720 = vperm.xlu0 %1719, %v1709
    %v1721 = vpop.permute.xlu0 %1720
    %1724 = vset.pattern.permute.xlu0 0
    %1725 = vperm.xlu0 %1724, %v1711
    %v1726 = vpop.permute.xlu0 %1725
    %v1728 = vmul.f32 %v1716, %v1721
    %v1729 = vmul.f32 %v1717, %v1726
    %v1730 = vadd.f32 %v1704, %v1728
    %v1731 = vadd.f32 %v1705, %v1729
    %v1732 = vsub.f32 %v1558, %v1574
    %v1733 = vsub.f32 %v1559, %v1575
    %v1734 = vmul.f32 %v1732, 1.442695
    %v1735 = vpow.pop %v1734
    %v1736 = vmul.f32 %v1733, 1.442695
    %v1737 = vpow.pop %v1736
    %v1738 = vadd.f32 %v1712, %v1735
    %v1739 = vadd.f32 %v1713, %v1737
    %v1740 = vld [vmem:[%s1111] sm:$0xf]
    %v1741 = vld [vmem:[%s1111 + $0x4] sm:$0xf]
    %v1742 = vunpack.c.l.bf16 %v1740
    %v1743 = vunpack.c.l.bf16 %v1741
    %1745 = vset.pattern.permute.xlu0 0
    %1746 = vperm.xlu0 %1745, %v1735
    %v1747 = vpop.permute.xlu0 %1746
    %1750 = vset.pattern.permute.xlu0 0
    %1751 = vperm.xlu0 %1750, %v1737
    %v1752 = vpop.permute.xlu0 %1751
    %v1754 = vmul.f32 %v1742, %v1747
    %v1755 = vmul.f32 %v1743, %v1752
    %v1756 = vadd.f32 %v1730, %v1754
    %v1757 = vadd.f32 %v1731, %v1755
    %v1758 = vsub.f32 %v1560, %v1574
    %v1759 = vsub.f32 %v1561, %v1575
    %v1760 = vmul.f32 %v1758, 1.442695
    %v1761 = vpow.pop %v1760
    %v1762 = vmul.f32 %v1759, 1.442695
    %v1763 = vpow.pop %v1762
    %v1764 = vadd.f32 %v1738, %v1761
    %v1765 = vadd.f32 %v1739, %v1763
    %v1766 = vld [vmem:[%s1242] sm:$0xf]
    %v1767 = vld [vmem:[%s1242 + $0x4] sm:$0xf]
    %v1768 = vunpack.c.l.bf16 %v1766
    %v1769 = vunpack.c.l.bf16 %v1767
    %1771 = vset.pattern.permute.xlu0 0
    %1772 = vperm.xlu0 %1771, %v1761
    %v1773 = vpop.permute.xlu0 %1772
    %1776 = vset.pattern.permute.xlu0 0
    %1777 = vperm.xlu0 %1776, %v1763
    %v1778 = vpop.permute.xlu0 %1777
    %v1780 = vmul.f32 %v1768, %v1773
    %v1781 = vmul.f32 %v1769, %v1778
    %v1782 = vadd.f32 %v1756, %v1780
    %v1783 = vadd.f32 %v1757, %v1781
    %v1784 = vrcp.pop %v1764
    %v1785 = vmul.f32 %v1764, %v1784
    %v1786 = vsub.f32 1.0, %v1785
    %v1787 = vmul.f32 %v1784, %v1786
    %v1788 = vadd.f32 %v1784, %v1787
    %vm1789 = vweird.f32 %v1764
    %vm1790 = vweird.f32 %v1784
    %vm1791 = vmor %vm1789, %vm1790
    %v1792 = vsel %vm1791, %v1784, %v1788
    %v1793 = vand.u32 2147483647, %v1764
    %vm1794 = vcmp.eq.f32.partialorder %v1793, 8.507059e+37
    %v1795 = vand.u32 %v1764, 2147483648
    %v1796 = vor.u32 1.1754944e-38, %v1795
    %v1797 = vsel %vm1794, %v1796, %v1792
    %v1798 = vmul.f32 1.0, %v1797
    %v1799 = vrcp.pop %v1765
    %v1800 = vmul.f32 %v1765, %v1799
    %v1801 = vsub.f32 1.0, %v1800
    %v1802 = vmul.f32 %v1799, %v1801
    %v1803 = vadd.f32 %v1799, %v1802
    %vm1804 = vweird.f32 %v1765
    %vm1805 = vweird.f32 %v1799
    %vm1806 = vmor %vm1804, %vm1805
    %v1807 = vsel %vm1806, %v1799, %v1803
    %v1808 = vand.u32 2147483647, %v1765
    %vm1809 = vcmp.eq.f32.partialorder %v1808, 8.507059e+37
    %v1810 = vand.u32 %v1765, 2147483648
    %v1811 = vor.u32 1.1754944e-38, %v1810
    %v1812 = vsel %vm1809, %v1811, %v1807
    %v1813 = vmul.f32 1.0, %v1812
    %1815 = vset.pattern.permute.xlu0 0
    %1816 = vperm.xlu0 %1815, %v1798
    %v1817 = vpop.permute.xlu0 %1816
    %1820 = vset.pattern.permute.xlu0 0
    %1821 = vperm.xlu0 %1820, %v1813
    %v1822 = vpop.permute.xlu0 %1821
    %v1824 = vmul.f32 %v1782, %v1817
    %v1825 = vmul.f32 %v1783, %v1822
    %v1826 = vld [vmem:[%s10] sm:$0xf]
    %v1827 = vld [vmem:[%s10 + $0x4] sm:$0xf]
    %v1828 = vld [vmem:[%s10 + $0x8] sm:$0xf]
    %v1829 = vld [vmem:[%s10 + $0xc] sm:$0xf]
    %v1830 = vld [vmem:[%s12] sm:$0xf]
    %v1831 = vld [vmem:[%s12 + $0x4] sm:$0xf]
    %v1832 = vld [vmem:[%s12 + $0x8] sm:$0xf]
    %v1833 = vld [vmem:[%s12 + $0xc] sm:$0xf]
    %v1834 = vpack.c.bf16 %v1825, %v1824
    %v1835 = vld [vmem:[%s11] sm:$0x1]
    %v1837 = vperm.slane %v1835, 0
    %v1843 = vunpack.c.l.b16 %v1826
    %v1844 = vunpack.c.l.b16 %v1827
    %v1845 = vunpack.c.l.b16 %v1828
    %v1846 = vunpack.c.l.b16 %v1829
    %v1847 = vpack.c.b16 %v1844, %v1843
    %v1848 = vpack.c.b16 %v1846, %v1845
    %v1852 = vsel %vm288, %v1834, 0
    %1854 = vmatpush.bf16.msra.mxu0 0
    %1855 = vmatpush.bf16.msra.mxu0 0
    %1856 = vmatpush.bf16.msra.mxu0 0
    %1857 = vmatpush.bf16.msra.mxu0 0
    %1858 = vmatpush.bf16.msra.mxu0 0
    %1859 = vmatpush.bf16.msra.mxu0 0
    %1860 = vmatpush.bf16.msra.mxu0 %v1848
    %1861 = vmatpush.bf16.msra.mxu0 %v1847
    %1862 = vmatmul.bf16.gmra.mxu0 %v1852
    %v1863 = vpop.f32.mrf.mxu0
    %v1864 = vadd.f32 %v1837, %v1863
    %v1865 = vpop.f32.mrf.mxu0
    %v1866 = vadd.f32 %v1837, %v1865
    %1867 = vdwg.mxu0
    %v1868 = vmax.f32 %v1864, 0.0
    %v1869 = vmax.f32 %v1866, 0.0
    %v1870 = vpack.c.bf16 %v1869, %v1868
    %v1871 = vld [vmem:[%s13] sm:$0x1]
    %v1873 = vperm.slane %v1871, 0
    %v1879 = vunpack.c.l.b16 %v1830
    %v1880 = vunpack.c.l.b16 %v1831
    %v1881 = vunpack.c.l.b16 %v1832
    %v1882 = vunpack.c.l.b16 %v1833
    %v1883 = vpack.c.b16 %v1880, %v1879
    %v1884 = vpack.c.b16 %v1882, %v1881
    %v1888 = vsel %vm288, %v1870, 0
    %1890 = vmatpush.bf16.msra.mxu0 0
    %1891 = vmatpush.bf16.msra.mxu0 0
    %1892 = vmatpush.bf16.msra.mxu0 0
    %1893 = vmatpush.bf16.msra.mxu0 0
    %1894 = vmatpush.bf16.msra.mxu0 0
    %1895 = vmatpush.bf16.msra.mxu0 0
    %1896 = vmatpush.bf16.msra.mxu0 %v1884
    %1897 = vmatpush.bf16.msra.mxu0 %v1883
    %1898 = vmatmul.bf16.gmra.mxu0 %v1888
    %v1899 = vpop.f32.mrf.mxu0
    %v1900 = vadd.f32 %v1873, %v1899
    %v1901 = vpop.f32.mrf.mxu0
    %v1902 = vadd.f32 %v1873, %v1901
    %1903 = vdwg.mxu0
    %v1904 = vld [vmem:[%s14] sm:$0x1]
    %vm1905 = vcmp.gt.f32.partialorder %v1904, 0.0
    %v1906 = vld [vmem:[%s1] sm:$0xff]
    %v1907 = vld [vmem:[%s1 + $0x8] sm:$0xff]
    %v1908 = vsel %vm1905, 1, 0
    %v1909 = vperm.slane %v1908, 0
    %vm1910 = vcmp.eq.s32.totalorder %v1909, 1
    %v1911 = vsel %vm1910, %v1900, %v1906
    %v1912 = vsel %vm1910, %v1902, %v1907
    %1913 = vst.msk [vmem:[#allocation13] sm:$0xff] %vm199, %v1911
    %1914 = vst.msk [vmem:[#allocation13 + $0x8] sm:$0xff] %vm199, %v1912
    // Predicated region
    $region82: #{tpu_custom_call.1} parent=1 // pred_check
      _
    $region83: #{tpu_custom_call.1} parent=1 // pred_check_branch
      %1916 = sbr.rel (0) target = $region85
    $region84: #{tpu_custom_call.1} parent=1 // pred_region
      %1918 = vsyncadd [#allocation6], 0
      %s1919 = sshll.u32 [#allocation13], 4
      %s1920 = int_to_ptr.vmem [resolvable:$true] %s1919
      %s1921 = sshll.u32 %s15, 4
      %s1922 = int_to_ptr.hbm [resolvable:$true] %s1921
      %1927 = dma.vmem_to_hbm [thread:$0]  %s1920, 256, %s1922, [#allocation6], 128, 128, 8
    $region85: #{tpu_custom_call.1} parent=1 // pred_fallthru
      _
    // Predicated region
    $region86: #{tpu_custom_call.1} parent=1 // pred_check
      _
    $region87: #{tpu_custom_call.1} parent=1 // pred_check_branch
      %1929 = sbr.rel (0) target = $region89
    $region88: #{tpu_custom_call.1} parent=1 // pred_region
      %1931 = dma.done [#allocation6], 256
    $region89: #{tpu_custom_call.1} parent=1 // pred_fallthru
      _
    %1932 = vsyncpa [#allocation5], 1
    %1933 = vsyncpa [#allocation8], 1
    %1934 = vsyncpa [#allocation11], 1
    %1935 = vsyncpa [#allocation6], 1

</llo_original>
